<compile_context>
chip_gen: v6e
topology: v6e:2x2x1
jax: 0.10.0
libtpu: 0.0.40
codegen_flags: <defaults>
</compile_context>

<pallas_src>
import jax
import jax.numpy as jnp
from jax.experimental import pallas as pl
from jax.experimental.pallas import tpu as pltpu

# ---------------- config (small, deterministic) ----------------
GX, GY = 16, 16          # BEV grid
VSIZE = 1.0              # voxel (pillar) size in x/y
MAX_PTS = 8              # max points per pillar
N_POINTS = 256           # points per batch element
BATCH = 2
F_AUG = 10               # augmented per-point features (xyzr + cluster(3) + center(3))
F_PAD = 16               # F_AUG zero-padded
C_VFE = 32               # pillar feature channels
C_BEV = 64               # backbone channels
NUM_ANCHORS = 2
NUM_CLASSES = 3
BOX_CODE = 7
DIR_BINS = 2
HEAD_PAD = 128           # head channels (24 real) zero-padded to one full lane width
HB, WB = GY // 2, GX // 2          # conv1 output spatial (stride 2) = 8 x 8
HWB = HB * WB                      # 64 positions


# ---------------- Pallas kernels ----------------

def _vfe_kernel(feat_ref, mask_ref, w_ref, shift_ref, out_ref):
    # feat_ref : (P, M*F=128) bf16   mask_ref: (P, M*C=256) bf16 (lane-dense slot mask)
    # w_ref    : (128, 256) bf16 block-diag (BN scale folded)   shift_ref: (1, 256) f32
    # out_ref  : (P, C_VFE) bf16
    y = jnp.dot(feat_ref[...], w_ref[...], preferred_element_type=jnp.float32)
    y = jnp.maximum(y + shift_ref[...], 0.0)        # per-slot BN shift + ReLU
    y = y * mask_ref[...]                           # mask AFTER BN+ReLU (padded slots -> 0)
    # masked max over the M=8 point slots: slot-major columns -> lane tree-reduce
    half = y.shape[1] // 2
    while half >= C_VFE:
        y = jnp.maximum(y[:, :half], y[:, half:])
        half //= 2
    out_ref[...] = y.astype(out_ref.dtype)


def vfe_pallas(feats_flat, mask_exp, w_bd, shift):
    n, kf = feats_flat.shape          # (B*P, 128)
    kc = w_bd.shape[1]                # 256
    tp = GX * GY                      # one batch element of pillars per grid step
    grid = (n // tp,)
    return pl.pallas_call(
        _vfe_kernel,
        out_shape=jax.ShapeDtypeStruct((n, C_VFE), jnp.bfloat16),
        grid_spec=pltpu.PrefetchScalarGridSpec(
            num_scalar_prefetch=0,
            grid=grid,
            in_specs=[
                pl.BlockSpec((tp, kf), lambda i: (i, 0)),
                pl.BlockSpec((tp, kc), lambda i: (i, 0)),
                pl.BlockSpec((kf, kc), lambda i: (0, 0)),
                pl.BlockSpec((1, kc), lambda i: (0, 0)),
            ],
            out_specs=pl.BlockSpec((tp, C_VFE), lambda i: (i, 0)),
        ),
        compiler_params=pltpu.CompilerParams(dimension_semantics=("parallel",)),
    )(feats_flat, mask_exp, w_bd, shift)


def _backbone_head_kernel(im_ref, w1_ref, s1_ref, w2_ref, s2_ref,
                          wd_ref, sd_ref, wh_ref, bh_ref, up_ref, head_ref):
    # im_ref : (HWB, 9*C_VFE) bf16   -- stride-2 conv1 im2col, one batch element
    # w1_ref : (288, 64)  w2_ref: (9, 64, 64)  wd_ref: (64, 256)  wh_ref: (256, 512) bf16
    # s1/s2/sd/bh : (1, .) f32 shifts / bias (BN scale already folded into weights)
    # up_ref : (HWB, 4*C_BEV) bf16   head_ref: (HWB, 4*HEAD_PAD) f32
    f32 = jnp.float32

    # --- conv1: 3x3 stride-2 as ONE matmul (K = 288) + BN shift + ReLU
    y1 = jnp.dot(im_ref[...], w1_ref[...], preferred_element_type=f32)       # (64, 64)
    y1 = jnp.maximum(y1 + s1_ref[...], 0.0)

    # --- conv2: 3x3 stride-1 pad-1 on the VMEM-resident flattened (H*W, C) map.
    #     Each tap patch is a pure sublane shift (static slice + zero pad); only the
    #     w-boundary needs a lane mask, so there is no per-tap reshape/relayout.
    col = jax.lax.broadcasted_iota(jnp.int32, (HWB, C_BEV), 0) % WB
    ok_m1 = col >= 1
    ok_p1 = col < WB - 1
    acc = jnp.zeros((HWB, C_BEV), f32)
    for a in (-1, 0, 1):
        for b in (-1, 0, 1):
            k = a * WB + b
            if k > 0:
                shifted = jnp.concatenate(
                    [y1[k:, :], jnp.zeros((k, C_BEV), f32)], axis=0)
            elif k < 0:
                shifted = jnp.concatenate(
                    [jnp.zeros((-k, C_BEV), f32), y1[:k, :]], axis=0)
            else:
                shifted = y1
            if b == -1:
                shifted = jnp.where(ok_m1, shifted, 0.0)
            elif b == 1:
                shifted = jnp.where(ok_p1, shifted, 0.0)
            acc = acc + jnp.dot(shifted.astype(jnp.bfloat16),
                                w2_ref[(a + 1) * 3 + (b + 1)],
                                preferred_element_type=f32)
    y2 = jnp.maximum(acc + s2_ref[...], 0.0).astype(jnp.bfloat16)            # (64, 64)

    # --- deconv 2x2 stride-2 + BN + ReLU in packed layout: column = (di, dj, cout);
    #     the pixel shuffle happens as a cheap reshape in glue.
    yd = jnp.dot(y2, wd_ref[...], preferred_element_type=f32)                # (64, 256)
    up = jnp.maximum(yd + sd_ref[...], 0.0)
    up_bf = up.astype(jnp.bfloat16)
    up_ref[...] = up_bf

    # --- fused 1x1 head (cls | box | dir, zero-padded to 128 cols), applied in the
    #     packed layout via a block-diagonal weight over the 4 deconv sub-positions.
    head_ref[...] = jnp.dot(up_bf, wh_ref[...],
                            preferred_element_type=f32) + bh_ref[...]


def backbone_head_pallas(im2col1, p):
    B = im2col1.shape[0]
    out_shape = (jax.ShapeDtypeStruct((B, HWB, 4 * C_BEV), jnp.bfloat16),
                 jax.ShapeDtypeStruct((B, HWB, 4 * HEAD_PAD), jnp.float32))
    return pl.pallas_call(
        _backbone_head_kernel,
        out_shape=out_shape,
        grid_spec=pltpu.PrefetchScalarGridSpec(
            num_scalar_prefetch=0,
            grid=(B,),
            in_specs=[
                pl.BlockSpec((None, HWB, 9 * C_VFE), lambda b: (b, 0, 0)),
                pl.BlockSpec((9 * C_VFE, C_BEV), lambda b: (0, 0)),
                pl.BlockSpec((1, C_BEV), lambda b: (0, 0)),
                pl.BlockSpec((9, C_BEV, C_BEV), lambda b: (0, 0, 0)),
                pl.BlockSpec((1, C_BEV), lambda b: (0, 0)),
                pl.BlockSpec((C_BEV, 4 * C_BEV), lambda b: (0, 0)),
                pl.BlockSpec((1, 4 * C_BEV), lambda b: (0, 0)),
                pl.BlockSpec((4 * C_BEV, 4 * HEAD_PAD), lambda b: (0, 0)),
                pl.BlockSpec((1, 4 * HEAD_PAD), lambda b: (0, 0)),
            ],
            out_specs=[
                pl.BlockSpec((None, HWB, 4 * C_BEV), lambda b: (b, 0, 0)),
                pl.BlockSpec((None, HWB, 4 * HEAD_PAD), lambda b: (b, 0, 0)),
            ],
        ),
        compiler_params=pltpu.CompilerParams(dimension_semantics=("parallel",)),
    )(im2col1, p['w1'], p['shift1'], p['w2'], p['shift2'],
      p['wd'], p['shiftd'], p['wh_bd'], p['bh'])


# ---------------- glue: Point2Voxel (dense pillars, data-dependent scatter) ----------------
# TODO(synk): true sparse voxelization / PointPillarScatter is data-dependent; we use a
#             dense pillar grid (every cell is a pillar) so the scatter becomes a reshape.
#             The O(N^2) rank + scatter stays in plain XLA (per review: candidate for a
#             sort/segment-rank reformulation if N_POINTS grows).

def point2voxel(points):
    # points: (B, N, 4) with x,y in [0, GX*VSIZE)
    B, N, _ = points.shape
    vx = jnp.clip(jnp.floor(points[..., 0] / VSIZE).astype(jnp.int32), 0, GX - 1)
    vy = jnp.clip(jnp.floor(points[..., 1] / VSIZE).astype(jnp.int32), 0, GY - 1)
    vid = vy * GX + vx                                     # (B, N)
    same = vid[:, :, None] == vid[:, None, :]              # (B, N, N)
    lower = jnp.tril(jnp.ones((N, N), dtype=bool), k=-1)
    slot = jnp.sum(jnp.logical_and(same, lower[None]), axis=-1)   # rank within its pillar
    valid = slot < MAX_PTS
    P = GX * GY
    dump = P * MAX_PTS
    flat = jnp.where(valid, vid * MAX_PTS + slot, dump)    # (B, N)

    def scat_one(pts_b, flat_b, valid_b):
        vox = jnp.zeros((P * MAX_PTS + 1, 4), jnp.float32).at[flat_b].set(pts_b)
        msk = jnp.zeros((P * MAX_PTS + 1,), jnp.float32).at[flat_b].set(
            valid_b.astype(jnp.float32))
        return vox[:-1].reshape(P, MAX_PTS, 4), msk[:-1].reshape(P, MAX_PTS)

    voxels, mask = jax.vmap(scat_one)(points, flat, valid)
    return voxels, mask                                    # (B,P,M,4), (B,P,M)


def vfe_augment(voxels, mask):
    # builds the 10-d PillarVFE input features (elementwise glue), zero-padded to F_PAD
    B, P, M, _ = voxels.shape
    cnt = jnp.clip(mask.sum(-1, keepdims=True), 1.0, None)[..., None]   # (B,P,1,1)
    xyz = voxels[..., :3]
    mean = (xyz * mask[..., None]).sum(axis=2, keepdims=True) / cnt
    f_cluster = xyz - mean
    p_idx = jnp.arange(P)
    cx = ((p_idx % GX).astype(jnp.float32) + 0.5) * VSIZE
    cy = ((p_idx // GX).astype(jnp.float32) + 0.5) * VSIZE
    cz = jnp.zeros_like(cx)
    centers = jnp.stack([cx, cy, cz], -1)[None, :, None, :]             # (1,P,1,3)
    f_center = xyz - centers
    feats = jnp.concatenate([voxels, f_cluster, f_center], axis=-1)     # (B,P,M,10)
    feats = feats * mask[..., None]
    feats = jnp.pad(feats, ((0, 0), (0, 0), (0, 0), (0, F_PAD - F_AUG)))
    return feats                                                        # (B,P,M,F_PAD)


def conv1_im2col(spatial):
    # spatial: (B, GY, GX, C_VFE) bf16 -> stride-2 pad-1 3x3 patches (B, HWB, 9*C_VFE)
    B = spatial.shape[0]
    xp = jnp.pad(spatial, ((0, 0), (1, 1), (1, 1), (0, 0)))
    cols = []
    for di in range(3):
        for dj in range(3):
            cols.append(xp[:, di:di + 2 * HB:2, dj:dj + 2 * WB:2, :])   # (B, HB, WB, C)
    return jnp.concatenate(cols, axis=-1).reshape(B, HWB, 9 * C_VFE)


# ---------------- deterministic parameters (BN scale folded into weights) ----------------

def bn_affine(key, c):
    k1, k2 = jax.random.split(key)
    gamma = 1.0 + 0.05 * jax.random.normal(k1, (c,), jnp.float32)
    beta = 0.05 * jax.random.normal(k2, (c,), jnp.float32)
    mean = jnp.zeros((c,), jnp.float32)
    var = jnp.ones((c,), jnp.float32)
    eps = 1e-3
    scale = gamma / jnp.sqrt(var + eps)
    shift = beta - mean * scale
    return scale, shift


def init_params(key):
    ks = jax.random.split(key, 16)
    p = {}
    # VFE linear (10->32) + BN; scale folded; block-diag over the M=8 point slots
    vfe_w = 0.05 * jax.random.normal(ks[0], (F_PAD, C_VFE), jnp.float32)
    vfe_w = vfe_w.at[F_AUG:].set(0.0)
    s, b = bn_affine(ks[1], C_VFE)
    p['vfe_w_bd'] = jnp.kron(jnp.eye(MAX_PTS, dtype=jnp.float32),
                             vfe_w * s[None, :]).astype(jnp.bfloat16)        # (128, 256)
    p['vfe_shift'] = jnp.tile(b[None, :], (1, MAX_PTS))                      # (1, 256)
    # conv1 3x3 stride-2: (9, Cin, Cout), scale folded, flattened for the im2col dot
    w1 = 0.05 * jax.random.normal(ks[2], (9, C_VFE, C_BEV), jnp.float32)
    s, b = bn_affine(ks[3], C_BEV)
    p['w1'] = (w1 * s[None, None, :]).reshape(9 * C_VFE, C_BEV).astype(jnp.bfloat16)
    p['shift1'] = b[None, :]
    # conv2 3x3 stride-1
    w2 = 0.05 * jax.random.normal(ks[4], (9, C_BEV, C_BEV), jnp.float32)
    s, b = bn_affine(ks[5], C_BEV)
    p['w2'] = (w2 * s[None, None, :]).astype(jnp.bfloat16)
    p['shift2'] = b[None, :]
    # deconv 2x2 stride-2: (Cin, 2, 2, Cout) -> (Cin, 4*Cout), columns packed (di, dj, co)
    # NOTE: a real PyTorch ConvTranspose2d checkpoint stores (Cin, Cout, kH, kW) and
    #       would need an explicit permute before this flattening.
    wd = 0.05 * jax.random.normal(ks[6], (C_BEV, 2, 2, C_BEV), jnp.float32)
    s, b = bn_affine(ks[7], C_BEV)
    p['wd'] = (wd * s[None, None, None, :]).reshape(C_BEV, 4 * C_BEV).astype(jnp.bfloat16)
    p['shiftd'] = jnp.tile(b[None, :], (1, 4))                               # (1, 256)
    # fused head (cls|box|dir), zero-padded 24 -> 128 output cols, block-diag over the
    # 4 deconv sub-positions so the 1x1 conv applies directly in the packed layout
    nc, nb, nd = NUM_ANCHORS * NUM_CLASSES, NUM_ANCHORS * BOX_CODE, NUM_ANCHORS * DIR_BINS
    cls_w = 0.05 * jax.random.normal(ks[8], (C_BEV, nc), jnp.float32)
    cls_b = 0.01 * jax.random.normal(ks[9], (1, nc), jnp.float32)
    box_w = 0.05 * jax.random.normal(ks[10], (C_BEV, nb), jnp.float32)
    box_b = 0.01 * jax.random.normal(ks[11], (1, nb), jnp.float32)
    dir_w = 0.05 * jax.random.normal(ks[12], (C_BEV, nd), jnp.float32)
    dir_b = 0.01 * jax.random.normal(ks[13], (1, nd), jnp.float32)
    wh = jnp.concatenate([cls_w, box_w, dir_w], axis=1)                      # (64, 24)
    wh = jnp.pad(wh, ((0, 0), (0, HEAD_PAD - wh.shape[1])))                  # (64, 128)
    bh = jnp.concatenate([cls_b, box_b, dir_b], axis=1)
    bh = jnp.pad(bh, ((0, 0), (0, HEAD_PAD - bh.shape[1])))                  # (1, 128)
    p['wh_bd'] = jnp.kron(jnp.eye(4, dtype=jnp.float32), wh).astype(jnp.bfloat16)  # (256,512)
    p['bh'] = jnp.tile(bh, (1, 4))                                            # (1, 512)
    return p


# ---------------- full forward ----------------

def pointpillar_forward(points, params):
    # Point2Voxel (dense pillar grid; data-dependent scatter stays in XLA glue)
    voxels, mask = point2voxel(points)                     # (B,P,M,4), (B,P,M)
    # PillarVFE (Pallas): one block-diag matmul (K=128, N=256) + BN + ReLU + masked max
    feats = vfe_augment(voxels, mask)                      # (B,P,M,F_PAD), input-masked
    B, P, M, F = feats.shape
    feats_flat = feats.reshape(B * P, M * F).astype(jnp.bfloat16)            # (512, 128)
    mask_exp = jnp.repeat(mask.reshape(B * P, M), C_VFE,
                          axis=1).astype(jnp.bfloat16)                       # (512, 256)
    pillar = vfe_pallas(feats_flat, mask_exp,
                        params['vfe_w_bd'], params['vfe_shift'])             # (512, 32) bf16
    # PointPillarScatter (dense pillars -> pure reshape), NHWC; empty pillars are exactly 0
    spatial_bf = pillar.reshape(B, GY, GX, C_VFE)
    # BaseBEVBackbone + Head: ONE fused Pallas kernel (conv1 + conv2 + deconv + head)
    im2col1 = conv1_im2col(spatial_bf)                     # (B, 64, 288) bf16
    up_packed, head_packed = backbone_head_pallas(im2col1, params)
    # unpack the (di, dj)-packed deconv / head outputs (pixel shuffle in glue)
    up = up_packed.reshape(B, HB, WB, 2, 2, C_BEV).transpose(0, 1, 3, 2, 4, 5)
    up = up.reshape(B, GY, GX, C_BEV).astype(jnp.float32)
    hp = head_packed.reshape(B, HB, WB, 2, 2, HEAD_PAD).transpose(0, 1, 3, 2, 4, 5)
    hp = hp.reshape(B, GY, GX, HEAD_PAD)
    nc = NUM_ANCHORS * NUM_CLASSES
    nb = NUM_ANCHORS * BOX_CODE
    nd = NUM_ANCHORS * DIR_BINS
    cls = hp[..., :nc]
    box = hp[..., nc:nc + nb]
    dirp = hp[..., nc + nb:nc + nb + nd]

    batch_dict = {
        'voxels': voxels,
        'voxel_mask': mask,
        'pillar_features': pillar.reshape(B, P, C_VFE).astype(jnp.float32),
        'spatial_features': spatial_bf.astype(jnp.float32),
        'spatial_features_2d': up,
    }
    batch_pred = {'cls_preds': cls, 'box_preds': box, 'dir_cls_preds': dirp}
    return batch_dict, batch_pred


if __name__ == "__main__":
    key = jax.random.PRNGKey(0)
    kp, kx, ky, kz, kr = jax.random.split(key, 5)
    params = init_params(kp)
    px = jax.random.uniform(kx, (BATCH, N_POINTS, 1), minval=0.0, maxval=GX * VSIZE)
    py = jax.random.uniform(ky, (BATCH, N_POINTS, 1), minval=0.0, maxval=GY * VSIZE)
    pz = jax.random.uniform(kz, (BATCH, N_POINTS, 1), minval=-1.0, maxval=1.0)
    pr = jax.random.uniform(kr, (BATCH, N_POINTS, 1), minval=0.0, maxval=1.0)
    points = jnp.concatenate([px, py, pz, pr], axis=-1).astype(jnp.float32)

    fwd = jax.jit(pointpillar_forward)
    batch_dict, batch_pred = fwd(points, params)
    jax.block_until_ready((batch_dict, batch_pred))

    assert batch_pred['cls_preds'].shape == (BATCH, GY, GX, NUM_ANCHORS * NUM_CLASSES)
    assert batch_pred['box_preds'].shape == (BATCH, GY, GX, NUM_ANCHORS * BOX_CODE)
    assert batch_pred['dir_cls_preds'].shape == (BATCH, GY, GX, NUM_ANCHORS * DIR_BINS)
    assert batch_dict['spatial_features_2d'].shape == (BATCH, GY, GX, C_BEV)
    # sanity: empty pillars must produce exactly-zero pillar features (masked max semantics)
    cnt = batch_dict['voxel_mask'].sum(-1)
    empty_max = jnp.max(jnp.where(cnt[..., None] == 0,
                                  jnp.abs(batch_dict['pillar_features']), 0.0))
    assert float(empty_max) == 0.0
    assert bool(jnp.all(jnp.isfinite(batch_pred['box_preds'])))
    print("KERNEL_OK")
</pallas_src>

<mosaic_0001>
module attributes {stable_mosaic.version = 11 : i64} {
  func.func @_vfe_kernel(%arg0: i32, %arg1: memref<256x128xbf16, #tpu.memory_space<vmem>>, %arg2: memref<256x256xbf16, #tpu.memory_space<vmem>>, %arg3: memref<128x256xbf16, #tpu.memory_space<vmem>>, %arg4: memref<1x256xf32, #tpu.memory_space<vmem>>, %arg5: memref<256x32xbf16, #tpu.memory_space<vmem>>) attributes {dimension_semantics = [#tpu.dimension_semantics<parallel>], iteration_bounds = array<i64: 2>, scalar_prefetch = 0 : i64, scratch_operands = 0 : i64, tpu.core_type = #tpu.core_type<tc>, window_params = [{transform_indices = @transform_0, window_bounds = array<i64: 256, 128>}, {transform_indices = @transform_1, window_bounds = array<i64: 256, 256>}, {pipeline_mode = #tpu.pipeline_mode<synchronous>, transform_indices = @transform_2, window_bounds = array<i64: 128, 256>}, {pipeline_mode = #tpu.pipeline_mode<synchronous>, transform_indices = @transform_3, window_bounds = array<i64: 1, 256>}, {transform_indices = @transform_4, window_bounds = array<i64: 256, 32>}]} {
    %c0 = arith.constant 0 : index
    %c0_0 = arith.constant 0 : index
    %0 = vector.load %arg1[%c0, %c0_0] : memref<256x128xbf16, #tpu.memory_space<vmem>>, vector<256x128xbf16>
    %c0_1 = arith.constant 0 : index
    %c0_2 = arith.constant 0 : index
    %1 = vector.load %arg3[%c0_1, %c0_2] : memref<128x256xbf16, #tpu.memory_space<vmem>>, vector<128x256xbf16>
    %cst = arith.constant dense<0.000000e+00> : vector<256x256xf32>
    %2 = tpu.matmul %0, %1, %cst {dimension_numbers = #tpu.dot_dimension_numbers<[1], [0], [0], [1], [0, 0, 1, 1], [], []>} : vector<256x128xbf16>, vector<128x256xbf16>, vector<256x256xf32> -> vector<256x256xf32>
    %c0_3 = arith.constant 0 : index
    %c0_4 = arith.constant 0 : index
    %3 = vector.load %arg4[%c0_3, %c0_4] : memref<1x256xf32, #tpu.memory_space<vmem>>, vector<1x256xf32>
    %4 = vector.broadcast %3 : vector<1x256xf32> to vector<256x256xf32>
    %5 = arith.addf %2, %4 : vector<256x256xf32>
    %cst_5 = arith.constant 0.000000e+00 : f32
    %6 = vector.broadcast %cst_5 : f32 to vector<256x256xf32>
    %7 = arith.maximumf %5, %6 : vector<256x256xf32>
    %c0_6 = arith.constant 0 : index
    %c0_7 = arith.constant 0 : index
    %8 = vector.load %arg2[%c0_6, %c0_7] : memref<256x256xbf16, #tpu.memory_space<vmem>>, vector<256x256xbf16>
    %9 = arith.extf %8 : vector<256x256xbf16> to vector<256x256xf32>
    %10 = arith.mulf %7, %9 : vector<256x256xf32>
    %11 = vector.extract_strided_slice %10 {offsets = [0, 0], sizes = [256, 128], strides = [1, 1]} : vector<256x256xf32> to vector<256x128xf32>
    %12 = vector.extract_strided_slice %10 {offsets = [0, 128], sizes = [256, 128], strides = [1, 1]} : vector<256x256xf32> to vector<256x128xf32>
    %13 = arith.maximumf %11, %12 : vector<256x128xf32>
    %14 = vector.extract_strided_slice %13 {offsets = [0, 0], sizes = [256, 64], strides = [1, 1]} : vector<256x128xf32> to vector<256x64xf32>
    %15 = vector.extract_strided_slice %13 {offsets = [0, 64], sizes = [256, 64], strides = [1, 1]} : vector<256x128xf32> to vector<256x64xf32>
    %16 = arith.maximumf %14, %15 : vector<256x64xf32>
    %17 = vector.extract_strided_slice %16 {offsets = [0, 0], sizes = [256, 32], strides = [1, 1]} : vector<256x64xf32> to vector<256x32xf32>
    %18 = vector.extract_strided_slice %16 {offsets = [0, 32], sizes = [256, 32], strides = [1, 1]} : vector<256x64xf32> to vector<256x32xf32>
    %19 = arith.maximumf %17, %18 : vector<256x32xf32>
    %20 = arith.truncf %19 : vector<256x32xf32> to vector<256x32xbf16>
    %c0_8 = arith.constant 0 : index
    %c0_9 = arith.constant 0 : index
    %21 = vector.load %arg5[%c0_8, %c0_9] : memref<256x32xbf16, #tpu.memory_space<vmem>>, vector<256x32xbf16>
    tpu.vector_store %arg5[%c0_8, %c0_9], %20 {strides = array<i32>} : memref<256x32xbf16, #tpu.memory_space<vmem>>, vector<256x32xbf16>,
    return
  }
  func.func @transform_0(%arg0: i32) -> (i32, i32) {
    %c0_i32 = arith.constant 0 : i32
    %c0_i32_0 = arith.constant 0 : i32
    return %arg0, %c0_i32 : i32, i32
  }
  func.func @transform_1(%arg0: i32) -> (i32, i32) {
    %c0_i32 = arith.constant 0 : i32
    %c0_i32_0 = arith.constant 0 : i32
    return %arg0, %c0_i32 : i32, i32
  }
  func.func @transform_2(%arg0: i32) -> (i32, i32) {
    %c0_i32 = arith.constant 0 : i32
    %c0_i32_0 = arith.constant 0 : i32
    %c0_i32_1 = arith.constant 0 : i32
    return %c0_i32, %c0_i32_0 : i32, i32
  }
  func.func @transform_3(%arg0: i32) -> (i32, i32) {
    %c0_i32 = arith.constant 0 : i32
    %c0_i32_0 = arith.constant 0 : i32
    %c0_i32_1 = arith.constant 0 : i32
    return %c0_i32, %c0_i32_0 : i32, i32
  }
  func.func @transform_4(%arg0: i32) -> (i32, i32) {
    %c0_i32 = arith.constant 0 : i32
    %c0_i32_0 = arith.constant 0 : i32
    return %arg0, %c0_i32 : i32, i32
  }
}

module attributes {stable_mosaic.version = 11 : i64} {
  func.func @_backbone_head_kernel(%arg0: i32, %arg1: memref<1x64x288xbf16, #tpu.memory_space<vmem>>, %arg2: memref<288x64xbf16, #tpu.memory_space<vmem>>, %arg3: memref<1x64xf32, #tpu.memory_space<vmem>>, %arg4: memref<9x64x64xbf16, #tpu.memory_space<vmem>>, %arg5: memref<1x64xf32, #tpu.memory_space<vmem>>, %arg6: memref<64x256xbf16, #tpu.memory_space<vmem>>, %arg7: memref<1x256xf32, #tpu.memory_space<vmem>>, %arg8: memref<256x512xbf16, #tpu.memory_space<vmem>>, %arg9: memref<1x512xf32, #tpu.memory_space<vmem>>, %arg10: memref<1x64x256xbf16, #tpu.memory_space<vmem>>, %arg11: memref<1x64x512xf32, #tpu.memory_space<vmem>>) attributes {dimension_semantics = [#tpu.dimension_semantics<parallel>], iteration_bounds = array<i64: 2>, scalar_prefetch = 0 : i64, scratch_operands = 0 : i64, tpu.core_type = #tpu.core_type<tc>, window_params = [{transform_indices = @transform_0, window_bounds = array<i64: 1, 64, 288>}, {pipeline_mode = #tpu.pipeline_mode<synchronous>, transform_indices = @transform_1, window_bounds = array<i64: 288, 64>}, {pipeline_mode = #tpu.pipeline_mode<synchronous>, transform_indices = @transform_2, window_bounds = array<i64: 1, 64>}, {pipeline_mode = #tpu.pipeline_mode<synchronous>, transform_indices = @transform_3, window_bounds = array<i64: 9, 64, 64>}, {pipeline_mode = #tpu.pipeline_mode<synchronous>, transform_indices = @transform_4, window_bounds = array<i64: 1, 64>}, {pipeline_mode = #tpu.pipeline_mode<synchronous>, transform_indices = @transform_5, window_bounds = array<i64: 64, 256>}, {pipeline_mode = #tpu.pipeline_mode<synchronous>, transform_indices = @transform_6, window_bounds = array<i64: 1, 256>}, {pipeline_mode = #tpu.pipeline_mode<synchronous>, transform_indices = @transform_7, window_bounds = array<i64: 256, 512>}, {pipeline_mode = #tpu.pipeline_mode<synchronous>, transform_indices = @transform_8, window_bounds = array<i64: 1, 512>}, {transform_indices = @transform_9, window_bounds = array<i64: 1, 64, 256>}, {transform_indices = @transform_10, window_bounds = array<i64: 1, 64, 512>}]} {
    %c0 = arith.constant 0 : index
    %c0_0 = arith.constant 0 : index
    %c0_1 = arith.constant 0 : index
    %0 = vector.load %arg1[%c0, %c0_0, %c0_1] : memref<1x64x288xbf16, #tpu.memory_space<vmem>>, vector<1x64x288xbf16>
    %1 = vector.shape_cast %0 : vector<1x64x288xbf16> to vector<64x288xbf16>
    %c0_2 = arith.constant 0 : index
    %c0_3 = arith.constant 0 : index
    %2 = vector.load %arg2[%c0_2, %c0_3] : memref<288x64xbf16, #tpu.memory_space<vmem>>, vector<288x64xbf16>
    %cst = arith.constant dense<0.000000e+00> : vector<64x64xf32>
    %3 = tpu.matmul %1, %2, %cst {dimension_numbers = #tpu.dot_dimension_numbers<[1], [0], [0], [1], [0, 0, 1, 1], [], []>} : vector<64x288xbf16>, vector<288x64xbf16>, vector<64x64xf32> -> vector<64x64xf32>
    %c0_4 = arith.constant 0 : index
    %c0_5 = arith.constant 0 : index
    %4 = vector.load %arg3[%c0_4, %c0_5] : memref<1x64xf32, #tpu.memory_space<vmem>>, vector<1x64xf32>
    %5 = vector.broadcast %4 : vector<1x64xf32> to vector<64x64xf32>
    %6 = arith.addf %3, %5 : vector<64x64xf32>
    %cst_6 = arith.constant 0.000000e+00 : f32
    %7 = vector.broadcast %cst_6 : f32 to vector<64x64xf32>
    %8 = arith.maximumf %6, %7 : vector<64x64xf32>
    %9 = tpu.iota {dimensions = array<i32: 0>} : vector<64x64xi32>
    %c8_i32 = arith.constant 8 : i32
    %c0_i32 = arith.constant 0 : i32
    %10 = arith.cmpi eq, %c8_i32, %c0_i32 : i32
    %c1_i32 = arith.constant 1 : i32
    %11 = arith.select %10, %c1_i32, %c8_i32 : i32
    %12 = vector.broadcast %11 : i32 to vector<64x64xi32>
    %13 = arith.remsi %9, %12 : vector<64x64xi32>
    %c0_i32_7 = arith.constant 0 : i32
    %14 = vector.broadcast %c0_i32_7 : i32 to vector<64x64xi32>
    %15 = arith.cmpi ne, %13, %14 : vector<64x64xi32>
    %c0_i32_8 = arith.constant 0 : i32
    %16 = vector.broadcast %c0_i32_8 : i32 to vector<64x64xi32>
    %17 = arith.cmpi slt, %13, %16 : vector<64x64xi32>
    %c0_i32_9 = arith.constant 0 : i32
    %18 = arith.cmpi slt, %11, %c0_i32_9 : i32
    %19 = vector.broadcast %18 : i1 to vector<64x64xi1>
    %20 = vector.broadcast %19 : vector<64x64xi1> to vector<64x64xi1>
    %21 = arith.xori %17, %20 : vector<64x64xi1>
    %22 = arith.andi %21, %15 : vector<64x64xi1>
    %23 = vector.broadcast %11 : i32 to vector<64x64xi32>
    %24 = arith.addi %13, %23 : vector<64x64xi32>
    %25 = arith.select %22, %24, %13 : vector<64x64xi1>, vector<64x64xi32>
    %c1_i32_10 = arith.constant 1 : i32
    %26 = vector.broadcast %c1_i32_10 : i32 to vector<64x64xi32>
    %27 = arith.cmpi sge, %25, %26 : vector<64x64xi32>
    %c7_i32 = arith.constant 7 : i32
    %28 = vector.broadcast %c7_i32 : i32 to vector<64x64xi32>
    %29 = arith.cmpi slt, %25, %28 : vector<64x64xi32>
    %cst_11 = arith.constant 0.000000e+00 : f32
    %30 = vector.broadcast %cst_11 : f32 to vector<64x64xf32>
    %cst_12 = arith.constant 0.000000e+00 : f32
    %31 = vector.broadcast %cst_12 : f32 to vector<9x64xf32>
    %32 = vector.extract_strided_slice %8 {offsets = [0, 0], sizes = [55, 64], strides = [1, 1]} : vector<64x64xf32> to vector<55x64xf32>
    %33 = tpu.concatenate %31, %32 in 0 : vector<9x64xf32>, vector<55x64xf32> -> vector<64x64xf32>
    %cst_13 = arith.constant 0.000000e+00 : f32
    %34 = vector.broadcast %cst_13 : f32 to vector<64x64xf32>
    %35 = arith.select %27, %33, %34 : vector<64x64xi1>, vector<64x64xf32>
    %36 = arith.truncf %35 : vector<64x64xf32> to vector<64x64xbf16>
    %c0_14 = arith.constant 0 : index
    %c0_15 = arith.constant 0 : index
    %c0_16 = arith.constant 0 : index
    %37 = vector.load %arg4[%c0_14, %c0_15, %c0_16] : memref<9x64x64xbf16, #tpu.memory_space<vmem>>, vector<1x64x64xbf16>
    %38 = vector.shape_cast %37 : vector<1x64x64xbf16> to vector<64x64xbf16>
    %cst_17 = arith.constant dense<0.000000e+00> : vector<64x64xf32>
    %39 = tpu.matmul %36, %38, %cst_17 {dimension_numbers = #tpu.dot_dimension_numbers<[1], [0], [0], [1], [0, 0, 1, 1], [], []>} : vector<64x64xbf16>, vector<64x64xbf16>, vector<64x64xf32> -> vector<64x64xf32>
    %40 = arith.addf %30, %39 : vector<64x64xf32>
    %cst_18 = arith.constant 0.000000e+00 : f32
    %41 = vector.broadcast %cst_18 : f32 to vector<8x64xf32>
    %42 = vector.extract_strided_slice %8 {offsets = [0, 0], sizes = [56, 64], strides = [1, 1]} : vector<64x64xf32> to vector<56x64xf32>
    %43 = tpu.concatenate %41, %42 in 0 : vector<8x64xf32>, vector<56x64xf32> -> vector<64x64xf32>
    %44 = arith.truncf %43 : vector<64x64xf32> to vector<64x64xbf16>
    %c1 = arith.constant 1 : index
    %c0_19 = arith.constant 0 : index
    %c0_20 = arith.constant 0 : index
    %45 = vector.load %arg4[%c1, %c0_19, %c0_20] : memref<9x64x64xbf16, #tpu.memory_space<vmem>>, vector<1x64x64xbf16>
    %46 = vector.shape_cast %45 : vector<1x64x64xbf16> to vector<64x64xbf16>
    %cst_21 = arith.constant dense<0.000000e+00> : vector<64x64xf32>
    %47 = tpu.matmul %44, %46, %cst_21 {dimension_numbers = #tpu.dot_dimension_numbers<[1], [0], [0], [1], [0, 0, 1, 1], [], []>} : vector<64x64xbf16>, vector<64x64xbf16>, vector<64x64xf32> -> vector<64x64xf32>
    %48 = arith.addf %40, %47 : vector<64x64xf32>
    %cst_22 = arith.constant 0.000000e+00 : f32
    %49 = vector.broadcast %cst_22 : f32 to vector<7x64xf32>
    %50 = vector.extract_strided_slice %8 {offsets = [0, 0], sizes = [57, 64], strides = [1, 1]} : vector<64x64xf32> to vector<57x64xf32>
    %51 = tpu.concatenate %49, %50 in 0 : vector<7x64xf32>, vector<57x64xf32> -> vector<64x64xf32>
    %cst_23 = arith.constant 0.000000e+00 : f32
    %52 = vector.broadcast %cst_23 : f32 to vector<64x64xf32>
    %53 = arith.select %29, %51, %52 : vector<64x64xi1>, vector<64x64xf32>
    %54 = arith.truncf %53 : vector<64x64xf32> to vector<64x64xbf16>
    %c2 = arith.constant 2 : index
    %c0_24 = arith.constant 0 : index
    %c0_25 = arith.constant 0 : index
    %55 = vector.load %arg4[%c2, %c0_24, %c0_25] : memref<9x64x64xbf16, #tpu.memory_space<vmem>>, vector<1x64x64xbf16>
    %56 = vector.shape_cast %55 : vector<1x64x64xbf16> to vector<64x64xbf16>
    %cst_26 = arith.constant dense<0.000000e+00> : vector<64x64xf32>
    %57 = tpu.matmul %54, %56, %cst_26 {dimension_numbers = #tpu.dot_dimension_numbers<[1], [0], [0], [1], [0, 0, 1, 1], [], []>} : vector<64x64xbf16>, vector<64x64xbf16>, vector<64x64xf32> -> vector<64x64xf32>
    %58 = arith.addf %48, %57 : vector<64x64xf32>
    %cst_27 = arith.constant 0.000000e+00 : f32
    %59 = vector.broadcast %cst_27 : f32 to vector<1x64xf32>
    %60 = vector.extract_strided_slice %8 {offsets = [0, 0], sizes = [63, 64], strides = [1, 1]} : vector<64x64xf32> to vector<63x64xf32>
    %61 = tpu.concatenate %59, %60 in 0 : vector<1x64xf32>, vector<63x64xf32> -> vector<64x64xf32>
    %cst_28 = arith.constant 0.000000e+00 : f32
    %62 = vector.broadcast %cst_28 : f32 to vector<64x64xf32>
    %63 = arith.select %27, %61, %62 : vector<64x64xi1>, vector<64x64xf32>
    %64 = arith.truncf %63 : vector<64x64xf32> to vector<64x64xbf16>
    %c3 = arith.constant 3 : index
    %c0_29 = arith.constant 0 : index
    %c0_30 = arith.constant 0 : index
    %65 = vector.load %arg4[%c3, %c0_29, %c0_30] : memref<9x64x64xbf16, #tpu.memory_space<vmem>>, vector<1x64x64xbf16>
    %66 = vector.shape_cast %65 : vector<1x64x64xbf16> to vector<64x64xbf16>
    %cst_31 = arith.constant dense<0.000000e+00> : vector<64x64xf32>
    %67 = tpu.matmul %64, %66, %cst_31 {dimension_numbers = #tpu.dot_dimension_numbers<[1], [0], [0], [1], [0, 0, 1, 1], [], []>} : vector<64x64xbf16>, vector<64x64xbf16>, vector<64x64xf32> -> vector<64x64xf32>
    %68 = arith.addf %58, %67 : vector<64x64xf32>
    %69 = arith.truncf %8 : vector<64x64xf32> to vector<64x64xbf16>
    %c4 = arith.constant 4 : index
    %c0_32 = arith.constant 0 : index
    %c0_33 = arith.constant 0 : index
    %70 = vector.load %arg4[%c4, %c0_32, %c0_33] : memref<9x64x64xbf16, #tpu.memory_space<vmem>>, vector<1x64x64xbf16>
    %71 = vector.shape_cast %70 : vector<1x64x64xbf16> to vector<64x64xbf16>
    %cst_34 = arith.constant dense<0.000000e+00> : vector<64x64xf32>
    %72 = tpu.matmul %69, %71, %cst_34 {dimension_numbers = #tpu.dot_dimension_numbers<[1], [0], [0], [1], [0, 0, 1, 1], [], []>} : vector<64x64xbf16>, vector<64x64xbf16>, vector<64x64xf32> -> vector<64x64xf32>
    %73 = arith.addf %68, %72 : vector<64x64xf32>
    %74 = vector.extract_strided_slice %8 {offsets = [1, 0], sizes = [63, 64], strides = [1, 1]} : vector<64x64xf32> to vector<63x64xf32>
    %cst_35 = arith.constant 0.000000e+00 : f32
    %75 = vector.broadcast %cst_35 : f32 to vector<1x64xf32>
    %76 = tpu.concatenate %74, %75 in 0 : vector<63x64xf32>, vector<1x64xf32> -> vector<64x64xf32>
    %cst_36 = arith.constant 0.000000e+00 : f32
    %77 = vector.broadcast %cst_36 : f32 to vector<64x64xf32>
    %78 = arith.select %29, %76, %77 : vector<64x64xi1>, vector<64x64xf32>
    %79 = arith.truncf %78 : vector<64x64xf32> to vector<64x64xbf16>
    %c5 = arith.constant 5 : index
    %c0_37 = arith.constant 0 : index
    %c0_38 = arith.constant 0 : index
    %80 = vector.load %arg4[%c5, %c0_37, %c0_38] : memref<9x64x64xbf16, #tpu.memory_space<vmem>>, vector<1x64x64xbf16>
    %81 = vector.shape_cast %80 : vector<1x64x64xbf16> to vector<64x64xbf16>
    %cst_39 = arith.constant dense<0.000000e+00> : vector<64x64xf32>
    %82 = tpu.matmul %79, %81, %cst_39 {dimension_numbers = #tpu.dot_dimension_numbers<[1], [0], [0], [1], [0, 0, 1, 1], [], []>} : vector<64x64xbf16>, vector<64x64xbf16>, vector<64x64xf32> -> vector<64x64xf32>
    %83 = arith.addf %73, %82 : vector<64x64xf32>
    %84 = vector.extract_strided_slice %8 {offsets = [7, 0], sizes = [57, 64], strides = [1, 1]} : vector<64x64xf32> to vector<57x64xf32>
    %cst_40 = arith.constant 0.000000e+00 : f32
    %85 = vector.broadcast %cst_40 : f32 to vector<7x64xf32>
    %86 = tpu.concatenate %84, %85 in 0 : vector<57x64xf32>, vector<7x64xf32> -> vector<64x64xf32>
    %cst_41 = arith.constant 0.000000e+00 : f32
    %87 = vector.broadcast %cst_41 : f32 to vector<64x64xf32>
    %88 = arith.select %27, %86, %87 : vector<64x64xi1>, vector<64x64xf32>
    %89 = arith.truncf %88 : vector<64x64xf32> to vector<64x64xbf16>
    %c6 = arith.constant 6 : index
    %c0_42 = arith.constant 0 : index
    %c0_43 = arith.constant 0 : index
    %90 = vector.load %arg4[%c6, %c0_42, %c0_43] : memref<9x64x64xbf16, #tpu.memory_space<vmem>>, vector<1x64x64xbf16>
    %91 = vector.shape_cast %90 : vector<1x64x64xbf16> to vector<64x64xbf16>
    %cst_44 = arith.constant dense<0.000000e+00> : vector<64x64xf32>
    %92 = tpu.matmul %89, %91, %cst_44 {dimension_numbers = #tpu.dot_dimension_numbers<[1], [0], [0], [1], [0, 0, 1, 1], [], []>} : vector<64x64xbf16>, vector<64x64xbf16>, vector<64x64xf32> -> vector<64x64xf32>
    %93 = arith.addf %83, %92 : vector<64x64xf32>
    %94 = vector.extract_strided_slice %8 {offsets = [8, 0], sizes = [56, 64], strides = [1, 1]} : vector<64x64xf32> to vector<56x64xf32>
    %cst_45 = arith.constant 0.000000e+00 : f32
    %95 = vector.broadcast %cst_45 : f32 to vector<8x64xf32>
    %96 = tpu.concatenate %94, %95 in 0 : vector<56x64xf32>, vector<8x64xf32> -> vector<64x64xf32>
    %97 = arith.truncf %96 : vector<64x64xf32> to vector<64x64xbf16>
    %c7 = arith.constant 7 : index
    %c0_46 = arith.constant 0 : index
    %c0_47 = arith.constant 0 : index
    %98 = vector.load %arg4[%c7, %c0_46, %c0_47] : memref<9x64x64xbf16, #tpu.memory_space<vmem>>, vector<1x64x64xbf16>
    %99 = vector.shape_cast %98 : vector<1x64x64xbf16> to vector<64x64xbf16>
    %cst_48 = arith.constant dense<0.000000e+00> : vector<64x64xf32>
    %100 = tpu.matmul %97, %99, %cst_48 {dimension_numbers = #tpu.dot_dimension_numbers<[1], [0], [0], [1], [0, 0, 1, 1], [], []>} : vector<64x64xbf16>, vector<64x64xbf16>, vector<64x64xf32> -> vector<64x64xf32>
    %101 = arith.addf %93, %100 : vector<64x64xf32>
    %102 = vector.extract_strided_slice %8 {offsets = [9, 0], sizes = [55, 64], strides = [1, 1]} : vector<64x64xf32> to vector<55x64xf32>
    %cst_49 = arith.constant 0.000000e+00 : f32
    %103 = vector.broadcast %cst_49 : f32 to vector<9x64xf32>
    %104 = tpu.concatenate %102, %103 in 0 : vector<55x64xf32>, vector<9x64xf32> -> vector<64x64xf32>
    %cst_50 = arith.constant 0.000000e+00 : f32
    %105 = vector.broadcast %cst_50 : f32 to vector<64x64xf32>
    %106 = arith.select %29, %104, %105 : vector<64x64xi1>, vector<64x64xf32>
    %107 = arith.truncf %106 : vector<64x64xf32> to vector<64x64xbf16>
    %c8 = arith.constant 8 : index
    %c0_51 = arith.constant 0 : index
    %c0_52 = arith.constant 0 : index
    %108 = vector.load %arg4[%c8, %c0_51, %c0_52] : memref<9x64x64xbf16, #tpu.memory_space<vmem>>, vector<1x64x64xbf16>
    %109 = vector.shape_cast %108 : vector<1x64x64xbf16> to vector<64x64xbf16>
    %cst_53 = arith.constant dense<0.000000e+00> : vector<64x64xf32>
    %110 = tpu.matmul %107, %109, %cst_53 {dimension_numbers = #tpu.dot_dimension_numbers<[1], [0], [0], [1], [0, 0, 1, 1], [], []>} : vector<64x64xbf16>, vector<64x64xbf16>, vector<64x64xf32> -> vector<64x64xf32>
    %111 = arith.addf %101, %110 : vector<64x64xf32>
    %c0_54 = arith.constant 0 : index
    %c0_55 = arith.constant 0 : index
    %112 = vector.load %arg5[%c0_54, %c0_55] : memref<1x64xf32, #tpu.memory_space<vmem>>, vector<1x64xf32>
    %113 = vector.broadcast %112 : vector<1x64xf32> to vector<64x64xf32>
    %114 = arith.addf %111, %113 : vector<64x64xf32>
    %cst_56 = arith.constant 0.000000e+00 : f32
    %115 = vector.broadcast %cst_56 : f32 to vector<64x64xf32>
    %116 = arith.maximumf %114, %115 : vector<64x64xf32>
    %117 = arith.truncf %116 : vector<64x64xf32> to vector<64x64xbf16>
    %c0_57 = arith.constant 0 : index
    %c0_58 = arith.constant 0 : index
    %118 = vector.load %arg6[%c0_57, %c0_58] : memref<64x256xbf16, #tpu.memory_space<vmem>>, vector<64x256xbf16>
    %cst_59 = arith.constant dense<0.000000e+00> : vector<64x256xf32>
    %119 = tpu.matmul %117, %118, %cst_59 {dimension_numbers = #tpu.dot_dimension_numbers<[1], [0], [0], [1], [0, 0, 1, 1], [], []>} : vector<64x64xbf16>, vector<64x256xbf16>, vector<64x256xf32> -> vector<64x256xf32>
    %c0_60 = arith.constant 0 : index
    %c0_61 = arith.constant 0 : index
    %120 = vector.load %arg7[%c0_60, %c0_61] : memref<1x256xf32, #tpu.memory_space<vmem>>, vector<1x256xf32>
    %121 = vector.broadcast %120 : vector<1x256xf32> to vector<64x256xf32>
    %122 = arith.addf %119, %121 : vector<64x256xf32>
    %cst_62 = arith.constant 0.000000e+00 : f32
    %123 = vector.broadcast %cst_62 : f32 to vector<64x256xf32>
    %124 = arith.maximumf %122, %123 : vector<64x256xf32>
    %125 = arith.truncf %124 : vector<64x256xf32> to vector<64x256xbf16>
    %c0_63 = arith.constant 0 : index
    %c0_64 = arith.constant 0 : index
    %c0_65 = arith.constant 0 : index
    %126 = vector.load %arg10[%c0_63, %c0_64, %c0_65] : memref<1x64x256xbf16, #tpu.memory_space<vmem>>, vector<1x64x256xbf16>
    %127 = vector.shape_cast %126 : vector<1x64x256xbf16> to vector<64x256xbf16>
    %128 = vector.shape_cast %125 : vector<64x256xbf16> to vector<1x64x256xbf16>
    tpu.vector_store %arg10[%c0_63, %c0_64, %c0_65], %128 {strides = array<i32>} : memref<1x64x256xbf16, #tpu.memory_space<vmem>>, vector<1x64x256xbf16>,
    %c0_66 = arith.constant 0 : index
    %c0_67 = arith.constant 0 : index
    %129 = vector.load %arg8[%c0_66, %c0_67] : memref<256x512xbf16, #tpu.memory_space<vmem>>, vector<256x512xbf16>
    %cst_68 = arith.constant dense<0.000000e+00> : vector<64x512xf32>
    %130 = tpu.matmul %125, %129, %cst_68 {dimension_numbers = #tpu.dot_dimension_numbers<[1], [0], [0], [1], [0, 0, 1, 1], [], []>} : vector<64x256xbf16>, vector<256x512xbf16>, vector<64x512xf32> -> vector<64x512xf32>
    %c0_69 = arith.constant 0 : index
    %c0_70 = arith.constant 0 : index
    %131 = vector.load %arg9[%c0_69, %c0_70] : memref<1x512xf32, #tpu.memory_space<vmem>>, vector<1x512xf32>
    %132 = vector.broadcast %131 : vector<1x512xf32> to vector<64x512xf32>
    %133 = arith.addf %130, %132 : vector<64x512xf32>
    %c0_71 = arith.constant 0 : index
    %c0_72 = arith.constant 0 : index
    %c0_73 = arith.constant 0 : index
    %134 = vector.load %arg11[%c0_71, %c0_72, %c0_73] : memref<1x64x512xf32, #tpu.memory_space<vmem>>, vector<1x64x512xf32>
    %135 = vector.shape_cast %134 : vector<1x64x512xf32> to vector<64x512xf32>
    %136 = vector.shape_cast %133 : vector<64x512xf32> to vector<1x64x512xf32>
    tpu.vector_store %arg11[%c0_71, %c0_72, %c0_73], %136 {strides = array<i32>} : memref<1x64x512xf32, #tpu.memory_space<vmem>>, vector<1x64x512xf32>,
    return
  }
  func.func @transform_0(%arg0: i32) -> (i32, i32, i32) {
    %c0_i32 = arith.constant 0 : i32
    %c0_i32_0 = arith.constant 0 : i32
    %c0_i32_1 = arith.constant 0 : i32
    return %arg0, %c0_i32, %c0_i32_0 : i32, i32, i32
  }
  func.func @transform_1(%arg0: i32) -> (i32, i32) {
    %c0_i32 = arith.constant 0 : i32
    %c0_i32_0 = arith.constant 0 : i32
    %c0_i32_1 = arith.constant 0 : i32
    return %c0_i32, %c0_i32_0 : i32, i32
  }
  func.func @transform_2(%arg0: i32) -> (i32, i32) {
    %c0_i32 = arith.constant 0 : i32
    %c0_i32_0 = arith.constant 0 : i32
    %c0_i32_1 = arith.constant 0 : i32
    return %c0_i32, %c0_i32_0 : i32, i32
  }
  func.func @transform_3(%arg0: i32) -> (i32, i32, i32) {
    %c0_i32 = arith.constant 0 : i32
    %c0_i32_0 = arith.constant 0 : i32
    %c0_i32_1 = arith.constant 0 : i32
    %c0_i32_2 = arith.constant 0 : i32
    return %c0_i32, %c0_i32_0, %c0_i32_1 : i32, i32, i32
  }
  func.func @transform_4(%arg0: i32) -> (i32, i32) {
    %c0_i32 = arith.constant 0 : i32
    %c0_i32_0 = arith.constant 0 : i32
    %c0_i32_1 = arith.constant 0 : i32
    return %c0_i32, %c0_i32_0 : i32, i32
  }
  func.func @transform_5(%arg0: i32) -> (i32, i32) {
    %c0_i32 = arith.constant 0 : i32
    %c0_i32_0 = arith.constant 0 : i32
    %c0_i32_1 = arith.constant 0 : i32
    return %c0_i32, %c0_i32_0 : i32, i32
  }
  func.func @transform_6(%arg0: i32) -> (i32, i32) {
    %c0_i32 = arith.constant 0 : i32
    %c0_i32_0 = arith.constant 0 : i32
    %c0_i32_1 = arith.constant 0 : i32
    return %c0_i32, %c0_i32_0 : i32, i32
  }
  func.func @transform_7(%arg0: i32) -> (i32, i32) {
    %c0_i32 = arith.constant 0 : i32
    %c0_i32_0 = arith.constant 0 : i32
    %c0_i32_1 = arith.constant 0 : i32
    return %c0_i32, %c0_i32_0 : i32, i32
  }
  func.func @transform_8(%arg0: i32) -> (i32, i32) {
    %c0_i32 = arith.constant 0 : i32
    %c0_i32_0 = arith.constant 0 : i32
    %c0_i32_1 = arith.constant 0 : i32
    return %c0_i32, %c0_i32_0 : i32, i32
  }
  func.func @transform_9(%arg0: i32) -> (i32, i32, i32) {
    %c0_i32 = arith.constant 0 : i32
    %c0_i32_0 = arith.constant 0 : i32
    %c0_i32_1 = arith.constant 0 : i32
    return %arg0, %c0_i32, %c0_i32_0 : i32, i32, i32
  }
  func.func @transform_10(%arg0: i32) -> (i32, i32, i32) {
    %c0_i32 = arith.constant 0 : i32
    %c0_i32_0 = arith.constant 0 : i32
    %c0_i32_1 = arith.constant 0 : i32
    return %arg0, %c0_i32, %c0_i32_0 : i32, i32, i32
  }
}

</mosaic_0001>

<llo_original>
// kernel: mul.15
$region0: #{mul.15}
  %s0 = inlined_call_operand.vmem [shape: f32[2,2048], index: 0, kind: input, shape index: {}]
  %s1 = inlined_call_operand.vmem [shape: f32[2,256,8], index: 1, kind: output, shape index: {}]
  $region1: #{mul.15} parent=0
    #allocation0 [shape = 'u8[65536]{0}', space=vmem, size = 0x10000, scoped, tag = 'scoped mem for input reshape']
    %s3 = sshll.u32 1, 2
    %s4 = ssub.s32 %s3, 1
    %s5 = smul.addr 2, 15
    %s6 = scalar_lea.vmem %s0, %s5
    %v7 = vld [vmem:[%s6] sm:%s4]
    %s8 = scalar_lea.vmem [#allocation0], 120
    %9 = vst [vmem:[%s8] sm:%s4] %v7
    %s10 = smul.addr 2, 14
    %s11 = scalar_lea.vmem %s0, %s10
    %v12 = vld [vmem:[%s11] sm:%s4]
    %s13 = scalar_lea.vmem [#allocation0], 112
    %14 = vst [vmem:[%s13] sm:%s4] %v12
    %s15 = smul.addr 2, 13
    %s16 = scalar_lea.vmem %s0, %s15
    %v17 = vld [vmem:[%s16] sm:%s4]
    %s18 = scalar_lea.vmem [#allocation0], 104
    %19 = vst [vmem:[%s18] sm:%s4] %v17
    %s20 = smul.addr 2, 12
    %s21 = scalar_lea.vmem %s0, %s20
    %v22 = vld [vmem:[%s21] sm:%s4]
    %s23 = scalar_lea.vmem [#allocation0], 96
    %24 = vst [vmem:[%s23] sm:%s4] %v22
    %s25 = smul.addr 2, 11
    %s26 = scalar_lea.vmem %s0, %s25
    %v27 = vld [vmem:[%s26] sm:%s4]
    %s28 = scalar_lea.vmem [#allocation0], 88
    %29 = vst [vmem:[%s28] sm:%s4] %v27
    %s30 = smul.addr 2, 10
    %s31 = scalar_lea.vmem %s0, %s30
    %v32 = vld [vmem:[%s31] sm:%s4]
    %s33 = scalar_lea.vmem [#allocation0], 80
    %34 = vst [vmem:[%s33] sm:%s4] %v32
    %s35 = smul.addr 2, 9
    %s36 = scalar_lea.vmem %s0, %s35
    %v37 = vld [vmem:[%s36] sm:%s4]
    %s38 = scalar_lea.vmem [#allocation0], 72
    %39 = vst [vmem:[%s38] sm:%s4] %v37
    %s40 = smul.addr 2, 8
    %s41 = scalar_lea.vmem %s0, %s40
    %v42 = vld [vmem:[%s41] sm:%s4]
    %s43 = scalar_lea.vmem [#allocation0], 64
    %44 = vst [vmem:[%s43] sm:%s4] %v42
    %s45 = smul.addr 2, 7
    %s46 = scalar_lea.vmem %s0, %s45
    %v47 = vld [vmem:[%s46] sm:%s4]
    %s48 = scalar_lea.vmem [#allocation0], 56
    %49 = vst [vmem:[%s48] sm:%s4] %v47
    %s50 = smul.addr 2, 6
    %s51 = scalar_lea.vmem %s0, %s50
    %v52 = vld [vmem:[%s51] sm:%s4]
    %s53 = scalar_lea.vmem [#allocation0], 48
    %54 = vst [vmem:[%s53] sm:%s4] %v52
    %s55 = smul.addr 2, 5
    %s56 = scalar_lea.vmem %s0, %s55
    %v57 = vld [vmem:[%s56] sm:%s4]
    %s58 = scalar_lea.vmem [#allocation0], 40
    %59 = vst [vmem:[%s58] sm:%s4] %v57
    %s60 = smul.addr 2, 4
    %s61 = scalar_lea.vmem %s0, %s60
    %v62 = vld [vmem:[%s61] sm:%s4]
    %s63 = scalar_lea.vmem [#allocation0], 32
    %64 = vst [vmem:[%s63] sm:%s4] %v62
    %s65 = smul.addr 2, 3
    %s66 = scalar_lea.vmem %s0, %s65
    %v67 = vld [vmem:[%s66] sm:%s4]
    %s68 = scalar_lea.vmem [#allocation0], 24
    %69 = vst [vmem:[%s68] sm:%s4] %v67
    %s70 = smul.addr 2, 2
    %s71 = scalar_lea.vmem %s0, %s70
    %v72 = vld [vmem:[%s71] sm:%s4]
    %s73 = scalar_lea.vmem [#allocation0], 16
    %74 = vst [vmem:[%s73] sm:%s4] %v72
    %s75 = scalar_lea.vmem %s0, 2
    %v76 = vld [vmem:[%s75] sm:%s4]
    %s77 = scalar_lea.vmem [#allocation0], 8
    %78 = vst [vmem:[%s77] sm:%s4] %v76
    %v79 = vld [vmem:[%s0] sm:%s4]
    %80 = vst [vmem:[#allocation0] sm:%s4] %v79
    %v81 = vld [vmem:[#allocation0] sm:$0x3]
    %vm82 = vcmask 64512
    %83 = vst.msk [vmem:[%s1] sm:$0x1] %vm82, %v81
    %s84 = scalar_lea.vmem %s1, 255
    %85 = vst.msk [vmem:[%s84] sm:$0x2] %vm82, %v81
    %s86 = scalar_lea.vmem [#allocation0], 8
    %v87 = vld [vmem:[%s86] sm:$0x3]
    %vm88 = vcmask 64512
    %s89 = scalar_lea.vmem %s1, 16
    %90 = vst.msk [vmem:[%s89] sm:$0x1] %vm88, %v87
    %s91 = scalar_lea.vmem %s1, 271
    %92 = vst.msk [vmem:[%s91] sm:$0x2] %vm88, %v87
    %s93 = scalar_lea.vmem [#allocation0], 16
    %v94 = vld [vmem:[%s93] sm:$0x3]
    %vm95 = vcmask 64512
    %s96 = scalar_lea.vmem %s1, 32
    %97 = vst.msk [vmem:[%s96] sm:$0x1] %vm95, %v94
    %s98 = scalar_lea.vmem %s1, 287
    %99 = vst.msk [vmem:[%s98] sm:$0x2] %vm95, %v94
    %s100 = scalar_lea.vmem [#allocation0], 24
    %v101 = vld [vmem:[%s100] sm:$0x3]
    %vm102 = vcmask 64512
    %s103 = scalar_lea.vmem %s1, 48
    %104 = vst.msk [vmem:[%s103] sm:$0x1] %vm102, %v101
    %s105 = scalar_lea.vmem %s1, 303
    %106 = vst.msk [vmem:[%s105] sm:$0x2] %vm102, %v101
    %s107 = scalar_lea.vmem [#allocation0], 32
    %v108 = vld [vmem:[%s107] sm:$0x3]
    %vm109 = vcmask 64512
    %s110 = scalar_lea.vmem %s1, 64
    %111 = vst.msk [vmem:[%s110] sm:$0x1] %vm109, %v108
    %s112 = scalar_lea.vmem %s1, 319
    %113 = vst.msk [vmem:[%s112] sm:$0x2] %vm109, %v108
    %s114 = scalar_lea.vmem [#allocation0], 40
    %v115 = vld [vmem:[%s114] sm:$0x3]
    %vm116 = vcmask 64512
    %s117 = scalar_lea.vmem %s1, 80
    %118 = vst.msk [vmem:[%s117] sm:$0x1] %vm116, %v115
    %s119 = scalar_lea.vmem %s1, 335
    %120 = vst.msk [vmem:[%s119] sm:$0x2] %vm116, %v115
    %s121 = scalar_lea.vmem [#allocation0], 48
    %v122 = vld [vmem:[%s121] sm:$0x3]
    %vm123 = vcmask 64512
    %s124 = scalar_lea.vmem %s1, 96
    %125 = vst.msk [vmem:[%s124] sm:$0x1] %vm123, %v122
    %s126 = scalar_lea.vmem %s1, 351
    %127 = vst.msk [vmem:[%s126] sm:$0x2] %vm123, %v122
    %s128 = scalar_lea.vmem [#allocation0], 56
    %v129 = vld [vmem:[%s128] sm:$0x3]
    %vm130 = vcmask 64512
    %s131 = scalar_lea.vmem %s1, 112
    %132 = vst.msk [vmem:[%s131] sm:$0x1] %vm130, %v129
    %s133 = scalar_lea.vmem %s1, 367
    %134 = vst.msk [vmem:[%s133] sm:$0x2] %vm130, %v129
    %s135 = scalar_lea.vmem [#allocation0], 64
    %v136 = vld [vmem:[%s135] sm:$0x3]
    %vm137 = vcmask 64512
    %s138 = scalar_lea.vmem %s1, 128
    %139 = vst.msk [vmem:[%s138] sm:$0x1] %vm137, %v136
    %s140 = scalar_lea.vmem %s1, 383
    %141 = vst.msk [vmem:[%s140] sm:$0x2] %vm137, %v136
    %s142 = scalar_lea.vmem [#allocation0], 72
    %v143 = vld [vmem:[%s142] sm:$0x3]
    %vm144 = vcmask 64512
    %s145 = scalar_lea.vmem %s1, 144
    %146 = vst.msk [vmem:[%s145] sm:$0x1] %vm144, %v143
    %s147 = scalar_lea.vmem %s1, 399
    %148 = vst.msk [vmem:[%s147] sm:$0x2] %vm144, %v143
    %s149 = scalar_lea.vmem [#allocation0], 80
    %v150 = vld [vmem:[%s149] sm:$0x3]
    %vm151 = vcmask 64512
    %s152 = scalar_lea.vmem %s1, 160
    %153 = vst.msk [vmem:[%s152] sm:$0x1] %vm151, %v150
    %s154 = scalar_lea.vmem %s1, 415
    %155 = vst.msk [vmem:[%s154] sm:$0x2] %vm151, %v150
    %s156 = scalar_lea.vmem [#allocation0], 88
    %v157 = vld [vmem:[%s156] sm:$0x3]
    %vm158 = vcmask 64512
    %s159 = scalar_lea.vmem %s1, 176
    %160 = vst.msk [vmem:[%s159] sm:$0x1] %vm158, %v157
    %s161 = scalar_lea.vmem %s1, 431
    %162 = vst.msk [vmem:[%s161] sm:$0x2] %vm158, %v157
    %s163 = scalar_lea.vmem [#allocation0], 96
    %v164 = vld [vmem:[%s163] sm:$0x3]
    %vm165 = vcmask 64512
    %s166 = scalar_lea.vmem %s1, 192
    %167 = vst.msk [vmem:[%s166] sm:$0x1] %vm165, %v164
    %s168 = scalar_lea.vmem %s1, 447
    %169 = vst.msk [vmem:[%s168] sm:$0x2] %vm165, %v164
    %s170 = scalar_lea.vmem [#allocation0], 104
    %v171 = vld [vmem:[%s170] sm:$0x3]
    %vm172 = vcmask 64512
    %s173 = scalar_lea.vmem %s1, 208
    %174 = vst.msk [vmem:[%s173] sm:$0x1] %vm172, %v171
    %s175 = scalar_lea.vmem %s1, 463
    %176 = vst.msk [vmem:[%s175] sm:$0x2] %vm172, %v171
    %s177 = scalar_lea.vmem [#allocation0], 112
    %v178 = vld [vmem:[%s177] sm:$0x3]
    %vm179 = vcmask 64512
    %s180 = scalar_lea.vmem %s1, 224
    %181 = vst.msk [vmem:[%s180] sm:$0x1] %vm179, %v178
    %s182 = scalar_lea.vmem %s1, 479
    %183 = vst.msk [vmem:[%s182] sm:$0x2] %vm179, %v178
    %s184 = scalar_lea.vmem [#allocation0], 120
    %v185 = vld [vmem:[%s184] sm:$0x3]
    %vm186 = vcmask 64512
    %s187 = scalar_lea.vmem %s1, 240
    %188 = vst.msk [vmem:[%s187] sm:$0x1] %vm186, %v185
    %s189 = scalar_lea.vmem %s1, 495
    %190 = vst.msk [vmem:[%s189] sm:$0x2] %vm186, %v185
    %v191 = vld.sshfl [vmem:[#allocation0] sm:$0xff pattern:$0x99999180]
    %s192 = scalar_lea.vmem [#allocation0], 16
    %v193 = vld.sshfl [vmem:[%s192] sm:$0xff pattern:$0x91800000]
    %vm194 = vcmask 1047556
    %v195 = vsel %vm194, %v193, %v191
    %196 = vrot.lane.b32.xlu0 %v195, 120
    %v197 = vpop.permute.xlu0 %196
    %vm198 = vcmask 64512
    %s199 = scalar_lea.vmem %s1, 1
    %200 = vst.msk [vmem:[%s199] ss:$16 sm:$0x3] %vm198, %v197
    %s201 = scalar_lea.vmem %s1, 225
    %202 = vst.msk [vmem:[%s201] ss:$16 sm:$0xc] %vm198, %v197
    %s203 = scalar_lea.vmem %s1, 4294967265
    %204 = vst.msk [vmem:[%s203] ss:$16 sm:$0x30] %vm198, %v197
    %s205 = scalar_lea.vmem %s1, 193
    %206 = vst.msk [vmem:[%s205] ss:$16 sm:$0xc0] %vm198, %v197
    %s207 = scalar_lea.vmem [#allocation0], 32
    %v208 = vld.sshfl [vmem:[%s207] sm:$0xff pattern:$0x99999180]
    %s209 = scalar_lea.vmem [#allocation0], 48
    %v210 = vld.sshfl [vmem:[%s209] sm:$0xff pattern:$0x91800000]
    %vm211 = vcmask 1047556
    %v212 = vsel %vm211, %v210, %v208
    %213 = vrot.lane.b32.xlu0 %v212, 120
    %v214 = vpop.permute.xlu0 %213
    %vm215 = vcmask 64512
    %s216 = scalar_lea.vmem %s1, 65
    %217 = vst.msk [vmem:[%s216] ss:$16 sm:$0x3] %vm215, %v214
    %s218 = scalar_lea.vmem %s1, 289
    %219 = vst.msk [vmem:[%s218] ss:$16 sm:$0xc] %vm215, %v214
    %s220 = scalar_lea.vmem %s1, 33
    %221 = vst.msk [vmem:[%s220] ss:$16 sm:$0x30] %vm215, %v214
    %s222 = scalar_lea.vmem %s1, 257
    %223 = vst.msk [vmem:[%s222] ss:$16 sm:$0xc0] %vm215, %v214
    %s224 = scalar_lea.vmem [#allocation0], 64
    %v225 = vld.sshfl [vmem:[%s224] sm:$0xff pattern:$0x99999180]
    %s226 = scalar_lea.vmem [#allocation0], 80
    %v227 = vld.sshfl [vmem:[%s226] sm:$0xff pattern:$0x91800000]
    %vm228 = vcmask 1047556
    %v229 = vsel %vm228, %v227, %v225
    %230 = vrot.lane.b32.xlu0 %v229, 120
    %v231 = vpop.permute.xlu0 %230
    %vm232 = vcmask 64512
    %s233 = scalar_lea.vmem %s1, 129
    %234 = vst.msk [vmem:[%s233] ss:$16 sm:$0x3] %vm232, %v231
    %s235 = scalar_lea.vmem %s1, 353
    %236 = vst.msk [vmem:[%s235] ss:$16 sm:$0xc] %vm232, %v231
    %s237 = scalar_lea.vmem %s1, 97
    %238 = vst.msk [vmem:[%s237] ss:$16 sm:$0x30] %vm232, %v231
    %s239 = scalar_lea.vmem %s1, 321
    %240 = vst.msk [vmem:[%s239] ss:$16 sm:$0xc0] %vm232, %v231
    %s241 = scalar_lea.vmem [#allocation0], 96
    %v242 = vld.sshfl [vmem:[%s241] sm:$0xff pattern:$0x99999180]
    %s243 = scalar_lea.vmem [#allocation0], 112
    %v244 = vld.sshfl [vmem:[%s243] sm:$0xff pattern:$0x91800000]
    %vm245 = vcmask 1047556
    %v246 = vsel %vm245, %v244, %v242
    %247 = vrot.lane.b32.xlu0 %v246, 120
    %v248 = vpop.permute.xlu0 %247
    %vm249 = vcmask 64512
    %s250 = scalar_lea.vmem %s1, 193
    %251 = vst.msk [vmem:[%s250] ss:$16 sm:$0x3] %vm249, %v248
    %s252 = scalar_lea.vmem %s1, 417
    %253 = vst.msk [vmem:[%s252] ss:$16 sm:$0xc] %vm249, %v248
    %s254 = scalar_lea.vmem %s1, 161
    %255 = vst.msk [vmem:[%s254] ss:$16 sm:$0x30] %vm249, %v248
    %s256 = scalar_lea.vmem %s1, 385
    %257 = vst.msk [vmem:[%s256] ss:$16 sm:$0xc0] %vm249, %v248
    %v258 = vld.sshfl [vmem:[#allocation0] sm:$0xff pattern:$0x99999180]
    %s259 = scalar_lea.vmem [#allocation0], 16
    %v260 = vld.sshfl [vmem:[%s259] sm:$0xff pattern:$0x91800000]
    %vm261 = vcmask 1047556
    %v262 = vsel %vm261, %v260, %v258
    %263 = vrot.lane.b32.xlu0 %v262, 112
    %v264 = vpop.permute.xlu0 %263
    %vm265 = vcmask 64512
    %s266 = scalar_lea.vmem %s1, 2
    %267 = vst.msk [vmem:[%s266] ss:$16 sm:$0x3] %vm265, %v264
    %s268 = scalar_lea.vmem %s1, 226
    %269 = vst.msk [vmem:[%s268] ss:$16 sm:$0xc] %vm265, %v264
    %s270 = scalar_lea.vmem %s1, 4294967266
    %271 = vst.msk [vmem:[%s270] ss:$16 sm:$0x30] %vm265, %v264
    %s272 = scalar_lea.vmem %s1, 194
    %273 = vst.msk [vmem:[%s272] ss:$16 sm:$0xc0] %vm265, %v264
    %s274 = scalar_lea.vmem [#allocation0], 32
    %v275 = vld.sshfl [vmem:[%s274] sm:$0xff pattern:$0x99999180]
    %s276 = scalar_lea.vmem [#allocation0], 48
    %v277 = vld.sshfl [vmem:[%s276] sm:$0xff pattern:$0x91800000]
    %vm278 = vcmask 1047556
    %v279 = vsel %vm278, %v277, %v275
    %280 = vrot.lane.b32.xlu0 %v279, 112
    %v281 = vpop.permute.xlu0 %280
    %vm282 = vcmask 64512
    %s283 = scalar_lea.vmem %s1, 66
    %284 = vst.msk [vmem:[%s283] ss:$16 sm:$0x3] %vm282, %v281
    %s285 = scalar_lea.vmem %s1, 290
    %286 = vst.msk [vmem:[%s285] ss:$16 sm:$0xc] %vm282, %v281
    %s287 = scalar_lea.vmem %s1, 34
    %288 = vst.msk [vmem:[%s287] ss:$16 sm:$0x30] %vm282, %v281
    %s289 = scalar_lea.vmem %s1, 258
    %290 = vst.msk [vmem:[%s289] ss:$16 sm:$0xc0] %vm282, %v281
    %s291 = scalar_lea.vmem [#allocation0], 64
    %v292 = vld.sshfl [vmem:[%s291] sm:$0xff pattern:$0x99999180]
    %s293 = scalar_lea.vmem [#allocation0], 80
    %v294 = vld.sshfl [vmem:[%s293] sm:$0xff pattern:$0x91800000]
    %vm295 = vcmask 1047556
    %v296 = vsel %vm295, %v294, %v292
    %297 = vrot.lane.b32.xlu0 %v296, 112
    %v298 = vpop.permute.xlu0 %297
    %vm299 = vcmask 64512
    %s300 = scalar_lea.vmem %s1, 130
    %301 = vst.msk [vmem:[%s300] ss:$16 sm:$0x3] %vm299, %v298
    %s302 = scalar_lea.vmem %s1, 354
    %303 = vst.msk [vmem:[%s302] ss:$16 sm:$0xc] %vm299, %v298
    %s304 = scalar_lea.vmem %s1, 98
    %305 = vst.msk [vmem:[%s304] ss:$16 sm:$0x30] %vm299, %v298
    %s306 = scalar_lea.vmem %s1, 322
    %307 = vst.msk [vmem:[%s306] ss:$16 sm:$0xc0] %vm299, %v298
    %s308 = scalar_lea.vmem [#allocation0], 96
    %v309 = vld.sshfl [vmem:[%s308] sm:$0xff pattern:$0x99999180]
    %s310 = scalar_lea.vmem [#allocation0], 112
    %v311 = vld.sshfl [vmem:[%s310] sm:$0xff pattern:$0x91800000]
    %vm312 = vcmask 1047556
    %v313 = vsel %vm312, %v311, %v309
    %314 = vrot.lane.b32.xlu0 %v313, 112
    %v315 = vpop.permute.xlu0 %314
    %vm316 = vcmask 64512
    %s317 = scalar_lea.vmem %s1, 194
    %318 = vst.msk [vmem:[%s317] ss:$16 sm:$0x3] %vm316, %v315
    %s319 = scalar_lea.vmem %s1, 418
    %320 = vst.msk [vmem:[%s319] ss:$16 sm:$0xc] %vm316, %v315
    %s321 = scalar_lea.vmem %s1, 162
    %322 = vst.msk [vmem:[%s321] ss:$16 sm:$0x30] %vm316, %v315
    %s323 = scalar_lea.vmem %s1, 386
    %324 = vst.msk [vmem:[%s323] ss:$16 sm:$0xc0] %vm316, %v315
    %v325 = vld.sshfl [vmem:[#allocation0] sm:$0xff pattern:$0x99999180]
    %s326 = scalar_lea.vmem [#allocation0], 16
    %v327 = vld.sshfl [vmem:[%s326] sm:$0xff pattern:$0x91800000]
    %vm328 = vcmask 1047556
    %v329 = vsel %vm328, %v327, %v325
    %330 = vrot.lane.b32.xlu0 %v329, 104
    %v331 = vpop.permute.xlu0 %330
    %vm332 = vcmask 64512
    %s333 = scalar_lea.vmem %s1, 3
    %334 = vst.msk [vmem:[%s333] ss:$16 sm:$0x3] %vm332, %v331
    %s335 = scalar_lea.vmem %s1, 227
    %336 = vst.msk [vmem:[%s335] ss:$16 sm:$0xc] %vm332, %v331
    %s337 = scalar_lea.vmem %s1, 4294967267
    %338 = vst.msk [vmem:[%s337] ss:$16 sm:$0x30] %vm332, %v331
    %s339 = scalar_lea.vmem %s1, 195
    %340 = vst.msk [vmem:[%s339] ss:$16 sm:$0xc0] %vm332, %v331
    %s341 = scalar_lea.vmem [#allocation0], 32
    %v342 = vld.sshfl [vmem:[%s341] sm:$0xff pattern:$0x99999180]
    %s343 = scalar_lea.vmem [#allocation0], 48
    %v344 = vld.sshfl [vmem:[%s343] sm:$0xff pattern:$0x91800000]
    %vm345 = vcmask 1047556
    %v346 = vsel %vm345, %v344, %v342
    %347 = vrot.lane.b32.xlu0 %v346, 104
    %v348 = vpop.permute.xlu0 %347
    %vm349 = vcmask 64512
    %s350 = scalar_lea.vmem %s1, 67
    %351 = vst.msk [vmem:[%s350] ss:$16 sm:$0x3] %vm349, %v348
    %s352 = scalar_lea.vmem %s1, 291
    %353 = vst.msk [vmem:[%s352] ss:$16 sm:$0xc] %vm349, %v348
    %s354 = scalar_lea.vmem %s1, 35
    %355 = vst.msk [vmem:[%s354] ss:$16 sm:$0x30] %vm349, %v348
    %s356 = scalar_lea.vmem %s1, 259
    %357 = vst.msk [vmem:[%s356] ss:$16 sm:$0xc0] %vm349, %v348
    %s358 = scalar_lea.vmem [#allocation0], 64
    %v359 = vld.sshfl [vmem:[%s358] sm:$0xff pattern:$0x99999180]
    %s360 = scalar_lea.vmem [#allocation0], 80
    %v361 = vld.sshfl [vmem:[%s360] sm:$0xff pattern:$0x91800000]
    %vm362 = vcmask 1047556
    %v363 = vsel %vm362, %v361, %v359
    %364 = vrot.lane.b32.xlu0 %v363, 104
    %v365 = vpop.permute.xlu0 %364
    %vm366 = vcmask 64512
    %s367 = scalar_lea.vmem %s1, 131
    %368 = vst.msk [vmem:[%s367] ss:$16 sm:$0x3] %vm366, %v365
    %s369 = scalar_lea.vmem %s1, 355
    %370 = vst.msk [vmem:[%s369] ss:$16 sm:$0xc] %vm366, %v365
    %s371 = scalar_lea.vmem %s1, 99
    %372 = vst.msk [vmem:[%s371] ss:$16 sm:$0x30] %vm366, %v365
    %s373 = scalar_lea.vmem %s1, 323
    %374 = vst.msk [vmem:[%s373] ss:$16 sm:$0xc0] %vm366, %v365
    %s375 = scalar_lea.vmem [#allocation0], 96
    %v376 = vld.sshfl [vmem:[%s375] sm:$0xff pattern:$0x99999180]
    %s377 = scalar_lea.vmem [#allocation0], 112
    %v378 = vld.sshfl [vmem:[%s377] sm:$0xff pattern:$0x91800000]
    %vm379 = vcmask 1047556
    %v380 = vsel %vm379, %v378, %v376
    %381 = vrot.lane.b32.xlu0 %v380, 104
    %v382 = vpop.permute.xlu0 %381
    %vm383 = vcmask 64512
    %s384 = scalar_lea.vmem %s1, 195
    %385 = vst.msk [vmem:[%s384] ss:$16 sm:$0x3] %vm383, %v382
    %s386 = scalar_lea.vmem %s1, 419
    %387 = vst.msk [vmem:[%s386] ss:$16 sm:$0xc] %vm383, %v382
    %s388 = scalar_lea.vmem %s1, 163
    %389 = vst.msk [vmem:[%s388] ss:$16 sm:$0x30] %vm383, %v382
    %s390 = scalar_lea.vmem %s1, 387
    %391 = vst.msk [vmem:[%s390] ss:$16 sm:$0xc0] %vm383, %v382
    %v392 = vld.sshfl [vmem:[#allocation0] sm:$0xff pattern:$0x99999180]
    %s393 = scalar_lea.vmem [#allocation0], 16
    %v394 = vld.sshfl [vmem:[%s393] sm:$0xff pattern:$0x91800000]
    %vm395 = vcmask 1047556
    %v396 = vsel %vm395, %v394, %v392
    %397 = vrot.lane.b32.xlu0 %v396, 96
    %v398 = vpop.permute.xlu0 %397
    %vm399 = vcmask 64512
    %s400 = scalar_lea.vmem %s1, 4
    %401 = vst.msk [vmem:[%s400] ss:$16 sm:$0x3] %vm399, %v398
    %s402 = scalar_lea.vmem %s1, 228
    %403 = vst.msk [vmem:[%s402] ss:$16 sm:$0xc] %vm399, %v398
    %s404 = scalar_lea.vmem %s1, 4294967268
    %405 = vst.msk [vmem:[%s404] ss:$16 sm:$0x30] %vm399, %v398
    %s406 = scalar_lea.vmem %s1, 196
    %407 = vst.msk [vmem:[%s406] ss:$16 sm:$0xc0] %vm399, %v398
    %s408 = scalar_lea.vmem [#allocation0], 32
    %v409 = vld.sshfl [vmem:[%s408] sm:$0xff pattern:$0x99999180]
    %s410 = scalar_lea.vmem [#allocation0], 48
    %v411 = vld.sshfl [vmem:[%s410] sm:$0xff pattern:$0x91800000]
    %vm412 = vcmask 1047556
    %v413 = vsel %vm412, %v411, %v409
    %414 = vrot.lane.b32.xlu0 %v413, 96
    %v415 = vpop.permute.xlu0 %414
    %vm416 = vcmask 64512
    %s417 = scalar_lea.vmem %s1, 68
    %418 = vst.msk [vmem:[%s417] ss:$16 sm:$0x3] %vm416, %v415
    %s419 = scalar_lea.vmem %s1, 292
    %420 = vst.msk [vmem:[%s419] ss:$16 sm:$0xc] %vm416, %v415
    %s421 = scalar_lea.vmem %s1, 36
    %422 = vst.msk [vmem:[%s421] ss:$16 sm:$0x30] %vm416, %v415
    %s423 = scalar_lea.vmem %s1, 260
    %424 = vst.msk [vmem:[%s423] ss:$16 sm:$0xc0] %vm416, %v415
    %s425 = scalar_lea.vmem [#allocation0], 64
    %v426 = vld.sshfl [vmem:[%s425] sm:$0xff pattern:$0x99999180]
    %s427 = scalar_lea.vmem [#allocation0], 80
    %v428 = vld.sshfl [vmem:[%s427] sm:$0xff pattern:$0x91800000]
    %vm429 = vcmask 1047556
    %v430 = vsel %vm429, %v428, %v426
    %431 = vrot.lane.b32.xlu0 %v430, 96
    %v432 = vpop.permute.xlu0 %431
    %vm433 = vcmask 64512
    %s434 = scalar_lea.vmem %s1, 132
    %435 = vst.msk [vmem:[%s434] ss:$16 sm:$0x3] %vm433, %v432
    %s436 = scalar_lea.vmem %s1, 356
    %437 = vst.msk [vmem:[%s436] ss:$16 sm:$0xc] %vm433, %v432
    %s438 = scalar_lea.vmem %s1, 100
    %439 = vst.msk [vmem:[%s438] ss:$16 sm:$0x30] %vm433, %v432
    %s440 = scalar_lea.vmem %s1, 324
    %441 = vst.msk [vmem:[%s440] ss:$16 sm:$0xc0] %vm433, %v432
    %s442 = scalar_lea.vmem [#allocation0], 96
    %v443 = vld.sshfl [vmem:[%s442] sm:$0xff pattern:$0x99999180]
    %s444 = scalar_lea.vmem [#allocation0], 112
    %v445 = vld.sshfl [vmem:[%s444] sm:$0xff pattern:$0x91800000]
    %vm446 = vcmask 1047556
    %v447 = vsel %vm446, %v445, %v443
    %448 = vrot.lane.b32.xlu0 %v447, 96
    %v449 = vpop.permute.xlu0 %448
    %vm450 = vcmask 64512
    %s451 = scalar_lea.vmem %s1, 196
    %452 = vst.msk [vmem:[%s451] ss:$16 sm:$0x3] %vm450, %v449
    %s453 = scalar_lea.vmem %s1, 420
    %454 = vst.msk [vmem:[%s453] ss:$16 sm:$0xc] %vm450, %v449
    %s455 = scalar_lea.vmem %s1, 164
    %456 = vst.msk [vmem:[%s455] ss:$16 sm:$0x30] %vm450, %v449
    %s457 = scalar_lea.vmem %s1, 388
    %458 = vst.msk [vmem:[%s457] ss:$16 sm:$0xc0] %vm450, %v449
    %v459 = vld.sshfl [vmem:[#allocation0] sm:$0xff pattern:$0x99999180]
    %s460 = scalar_lea.vmem [#allocation0], 16
    %v461 = vld.sshfl [vmem:[%s460] sm:$0xff pattern:$0x91800000]
    %vm462 = vcmask 1047556
    %v463 = vsel %vm462, %v461, %v459
    %464 = vrot.lane.b32.xlu0 %v463, 88
    %v465 = vpop.permute.xlu0 %464
    %vm466 = vcmask 64512
    %s467 = scalar_lea.vmem %s1, 5
    %468 = vst.msk [vmem:[%s467] ss:$16 sm:$0x3] %vm466, %v465
    %s469 = scalar_lea.vmem %s1, 229
    %470 = vst.msk [vmem:[%s469] ss:$16 sm:$0xc] %vm466, %v465
    %s471 = scalar_lea.vmem %s1, 4294967269
    %472 = vst.msk [vmem:[%s471] ss:$16 sm:$0x30] %vm466, %v465
    %s473 = scalar_lea.vmem %s1, 197
    %474 = vst.msk [vmem:[%s473] ss:$16 sm:$0xc0] %vm466, %v465
    %s475 = scalar_lea.vmem [#allocation0], 32
    %v476 = vld.sshfl [vmem:[%s475] sm:$0xff pattern:$0x99999180]
    %s477 = scalar_lea.vmem [#allocation0], 48
    %v478 = vld.sshfl [vmem:[%s477] sm:$0xff pattern:$0x91800000]
    %vm479 = vcmask 1047556
    %v480 = vsel %vm479, %v478, %v476
    %481 = vrot.lane.b32.xlu0 %v480, 88
    %v482 = vpop.permute.xlu0 %481
    %vm483 = vcmask 64512
    %s484 = scalar_lea.vmem %s1, 69
    %485 = vst.msk [vmem:[%s484] ss:$16 sm:$0x3] %vm483, %v482
    %s486 = scalar_lea.vmem %s1, 293
    %487 = vst.msk [vmem:[%s486] ss:$16 sm:$0xc] %vm483, %v482
    %s488 = scalar_lea.vmem %s1, 37
    %489 = vst.msk [vmem:[%s488] ss:$16 sm:$0x30] %vm483, %v482
    %s490 = scalar_lea.vmem %s1, 261
    %491 = vst.msk [vmem:[%s490] ss:$16 sm:$0xc0] %vm483, %v482
    %s492 = scalar_lea.vmem [#allocation0], 64
    %v493 = vld.sshfl [vmem:[%s492] sm:$0xff pattern:$0x99999180]
    %s494 = scalar_lea.vmem [#allocation0], 80
    %v495 = vld.sshfl [vmem:[%s494] sm:$0xff pattern:$0x91800000]
    %vm496 = vcmask 1047556
    %v497 = vsel %vm496, %v495, %v493
    %498 = vrot.lane.b32.xlu0 %v497, 88
    %v499 = vpop.permute.xlu0 %498
    %vm500 = vcmask 64512
    %s501 = scalar_lea.vmem %s1, 133
    %502 = vst.msk [vmem:[%s501] ss:$16 sm:$0x3] %vm500, %v499
    %s503 = scalar_lea.vmem %s1, 357
    %504 = vst.msk [vmem:[%s503] ss:$16 sm:$0xc] %vm500, %v499
    %s505 = scalar_lea.vmem %s1, 101
    %506 = vst.msk [vmem:[%s505] ss:$16 sm:$0x30] %vm500, %v499
    %s507 = scalar_lea.vmem %s1, 325
    %508 = vst.msk [vmem:[%s507] ss:$16 sm:$0xc0] %vm500, %v499
    %s509 = scalar_lea.vmem [#allocation0], 96
    %v510 = vld.sshfl [vmem:[%s509] sm:$0xff pattern:$0x99999180]
    %s511 = scalar_lea.vmem [#allocation0], 112
    %v512 = vld.sshfl [vmem:[%s511] sm:$0xff pattern:$0x91800000]
    %vm513 = vcmask 1047556
    %v514 = vsel %vm513, %v512, %v510
    %515 = vrot.lane.b32.xlu0 %v514, 88
    %v516 = vpop.permute.xlu0 %515
    %vm517 = vcmask 64512
    %s518 = scalar_lea.vmem %s1, 197
    %519 = vst.msk [vmem:[%s518] ss:$16 sm:$0x3] %vm517, %v516
    %s520 = scalar_lea.vmem %s1, 421
    %521 = vst.msk [vmem:[%s520] ss:$16 sm:$0xc] %vm517, %v516
    %s522 = scalar_lea.vmem %s1, 165
    %523 = vst.msk [vmem:[%s522] ss:$16 sm:$0x30] %vm517, %v516
    %s524 = scalar_lea.vmem %s1, 389
    %525 = vst.msk [vmem:[%s524] ss:$16 sm:$0xc0] %vm517, %v516
    %v526 = vld.sshfl [vmem:[#allocation0] sm:$0xff pattern:$0x99999180]
    %s527 = scalar_lea.vmem [#allocation0], 16
    %v528 = vld.sshfl [vmem:[%s527] sm:$0xff pattern:$0x91800000]
    %vm529 = vcmask 1047556
    %v530 = vsel %vm529, %v528, %v526
    %531 = vrot.lane.b32.xlu0 %v530, 80
    %v532 = vpop.permute.xlu0 %531
    %vm533 = vcmask 64512
    %s534 = scalar_lea.vmem %s1, 6
    %535 = vst.msk [vmem:[%s534] ss:$16 sm:$0x3] %vm533, %v532
    %s536 = scalar_lea.vmem %s1, 230
    %537 = vst.msk [vmem:[%s536] ss:$16 sm:$0xc] %vm533, %v532
    %s538 = scalar_lea.vmem %s1, 4294967270
    %539 = vst.msk [vmem:[%s538] ss:$16 sm:$0x30] %vm533, %v532
    %s540 = scalar_lea.vmem %s1, 198
    %541 = vst.msk [vmem:[%s540] ss:$16 sm:$0xc0] %vm533, %v532
    %s542 = scalar_lea.vmem [#allocation0], 32
    %v543 = vld.sshfl [vmem:[%s542] sm:$0xff pattern:$0x99999180]
    %s544 = scalar_lea.vmem [#allocation0], 48
    %v545 = vld.sshfl [vmem:[%s544] sm:$0xff pattern:$0x91800000]
    %vm546 = vcmask 1047556
    %v547 = vsel %vm546, %v545, %v543
    %548 = vrot.lane.b32.xlu0 %v547, 80
    %v549 = vpop.permute.xlu0 %548
    %vm550 = vcmask 64512
    %s551 = scalar_lea.vmem %s1, 70
    %552 = vst.msk [vmem:[%s551] ss:$16 sm:$0x3] %vm550, %v549
    %s553 = scalar_lea.vmem %s1, 294
    %554 = vst.msk [vmem:[%s553] ss:$16 sm:$0xc] %vm550, %v549
    %s555 = scalar_lea.vmem %s1, 38
    %556 = vst.msk [vmem:[%s555] ss:$16 sm:$0x30] %vm550, %v549
    %s557 = scalar_lea.vmem %s1, 262
    %558 = vst.msk [vmem:[%s557] ss:$16 sm:$0xc0] %vm550, %v549
    %s559 = scalar_lea.vmem [#allocation0], 64
    %v560 = vld.sshfl [vmem:[%s559] sm:$0xff pattern:$0x99999180]
    %s561 = scalar_lea.vmem [#allocation0], 80
    %v562 = vld.sshfl [vmem:[%s561] sm:$0xff pattern:$0x91800000]
    %vm563 = vcmask 1047556
    %v564 = vsel %vm563, %v562, %v560
    %565 = vrot.lane.b32.xlu0 %v564, 80
    %v566 = vpop.permute.xlu0 %565
    %vm567 = vcmask 64512
    %s568 = scalar_lea.vmem %s1, 134
    %569 = vst.msk [vmem:[%s568] ss:$16 sm:$0x3] %vm567, %v566
    %s570 = scalar_lea.vmem %s1, 358
    %571 = vst.msk [vmem:[%s570] ss:$16 sm:$0xc] %vm567, %v566
    %s572 = scalar_lea.vmem %s1, 102
    %573 = vst.msk [vmem:[%s572] ss:$16 sm:$0x30] %vm567, %v566
    %s574 = scalar_lea.vmem %s1, 326
    %575 = vst.msk [vmem:[%s574] ss:$16 sm:$0xc0] %vm567, %v566
    %s576 = scalar_lea.vmem [#allocation0], 96
    %v577 = vld.sshfl [vmem:[%s576] sm:$0xff pattern:$0x99999180]
    %s578 = scalar_lea.vmem [#allocation0], 112
    %v579 = vld.sshfl [vmem:[%s578] sm:$0xff pattern:$0x91800000]
    %vm580 = vcmask 1047556
    %v581 = vsel %vm580, %v579, %v577
    %582 = vrot.lane.b32.xlu0 %v581, 80
    %v583 = vpop.permute.xlu0 %582
    %vm584 = vcmask 64512
    %s585 = scalar_lea.vmem %s1, 198
    %586 = vst.msk [vmem:[%s585] ss:$16 sm:$0x3] %vm584, %v583
    %s587 = scalar_lea.vmem %s1, 422
    %588 = vst.msk [vmem:[%s587] ss:$16 sm:$0xc] %vm584, %v583
    %s589 = scalar_lea.vmem %s1, 166
    %590 = vst.msk [vmem:[%s589] ss:$16 sm:$0x30] %vm584, %v583
    %s591 = scalar_lea.vmem %s1, 390
    %592 = vst.msk [vmem:[%s591] ss:$16 sm:$0xc0] %vm584, %v583
    %v593 = vld.sshfl [vmem:[#allocation0] sm:$0xff pattern:$0x99999180]
    %s594 = scalar_lea.vmem [#allocation0], 16
    %v595 = vld.sshfl [vmem:[%s594] sm:$0xff pattern:$0x91800000]
    %vm596 = vcmask 1047556
    %v597 = vsel %vm596, %v595, %v593
    %598 = vrot.lane.b32.xlu0 %v597, 72
    %v599 = vpop.permute.xlu0 %598
    %vm600 = vcmask 64512
    %s601 = scalar_lea.vmem %s1, 7
    %602 = vst.msk [vmem:[%s601] ss:$16 sm:$0x3] %vm600, %v599
    %s603 = scalar_lea.vmem %s1, 231
    %604 = vst.msk [vmem:[%s603] ss:$16 sm:$0xc] %vm600, %v599
    %s605 = scalar_lea.vmem %s1, 4294967271
    %606 = vst.msk [vmem:[%s605] ss:$16 sm:$0x30] %vm600, %v599
    %s607 = scalar_lea.vmem %s1, 199
    %608 = vst.msk [vmem:[%s607] ss:$16 sm:$0xc0] %vm600, %v599
    %s609 = scalar_lea.vmem [#allocation0], 32
    %v610 = vld.sshfl [vmem:[%s609] sm:$0xff pattern:$0x99999180]
    %s611 = scalar_lea.vmem [#allocation0], 48
    %v612 = vld.sshfl [vmem:[%s611] sm:$0xff pattern:$0x91800000]
    %vm613 = vcmask 1047556
    %v614 = vsel %vm613, %v612, %v610
    %615 = vrot.lane.b32.xlu0 %v614, 72
    %v616 = vpop.permute.xlu0 %615
    %vm617 = vcmask 64512
    %s618 = scalar_lea.vmem %s1, 71
    %619 = vst.msk [vmem:[%s618] ss:$16 sm:$0x3] %vm617, %v616
    %s620 = scalar_lea.vmem %s1, 295
    %621 = vst.msk [vmem:[%s620] ss:$16 sm:$0xc] %vm617, %v616
    %s622 = scalar_lea.vmem %s1, 39
    %623 = vst.msk [vmem:[%s622] ss:$16 sm:$0x30] %vm617, %v616
    %s624 = scalar_lea.vmem %s1, 263
    %625 = vst.msk [vmem:[%s624] ss:$16 sm:$0xc0] %vm617, %v616
    %s626 = scalar_lea.vmem [#allocation0], 64
    %v627 = vld.sshfl [vmem:[%s626] sm:$0xff pattern:$0x99999180]
    %s628 = scalar_lea.vmem [#allocation0], 80
    %v629 = vld.sshfl [vmem:[%s628] sm:$0xff pattern:$0x91800000]
    %vm630 = vcmask 1047556
    %v631 = vsel %vm630, %v629, %v627
    %632 = vrot.lane.b32.xlu0 %v631, 72
    %v633 = vpop.permute.xlu0 %632
    %vm634 = vcmask 64512
    %s635 = scalar_lea.vmem %s1, 135
    %636 = vst.msk [vmem:[%s635] ss:$16 sm:$0x3] %vm634, %v633
    %s637 = scalar_lea.vmem %s1, 359
    %638 = vst.msk [vmem:[%s637] ss:$16 sm:$0xc] %vm634, %v633
    %s639 = scalar_lea.vmem %s1, 103
    %640 = vst.msk [vmem:[%s639] ss:$16 sm:$0x30] %vm634, %v633
    %s641 = scalar_lea.vmem %s1, 327
    %642 = vst.msk [vmem:[%s641] ss:$16 sm:$0xc0] %vm634, %v633
    %s643 = scalar_lea.vmem [#allocation0], 96
    %v644 = vld.sshfl [vmem:[%s643] sm:$0xff pattern:$0x99999180]
    %s645 = scalar_lea.vmem [#allocation0], 112
    %v646 = vld.sshfl [vmem:[%s645] sm:$0xff pattern:$0x91800000]
    %vm647 = vcmask 1047556
    %v648 = vsel %vm647, %v646, %v644
    %649 = vrot.lane.b32.xlu0 %v648, 72
    %v650 = vpop.permute.xlu0 %649
    %vm651 = vcmask 64512
    %s652 = scalar_lea.vmem %s1, 199
    %653 = vst.msk [vmem:[%s652] ss:$16 sm:$0x3] %vm651, %v650
    %s654 = scalar_lea.vmem %s1, 423
    %655 = vst.msk [vmem:[%s654] ss:$16 sm:$0xc] %vm651, %v650
    %s656 = scalar_lea.vmem %s1, 167
    %657 = vst.msk [vmem:[%s656] ss:$16 sm:$0x30] %vm651, %v650
    %s658 = scalar_lea.vmem %s1, 391
    %659 = vst.msk [vmem:[%s658] ss:$16 sm:$0xc0] %vm651, %v650
    %v660 = vld.sshfl [vmem:[#allocation0] sm:$0xff pattern:$0x99999180]
    %s661 = scalar_lea.vmem [#allocation0], 16
    %v662 = vld.sshfl [vmem:[%s661] sm:$0xff pattern:$0x91800000]
    %vm663 = vcmask 1047556
    %v664 = vsel %vm663, %v662, %v660
    %665 = vrot.lane.b32.xlu0 %v664, 64
    %v666 = vpop.permute.xlu0 %665
    %vm667 = vcmask 64512
    %s668 = scalar_lea.vmem %s1, 8
    %669 = vst.msk [vmem:[%s668] ss:$16 sm:$0x3] %vm667, %v666
    %s670 = scalar_lea.vmem %s1, 232
    %671 = vst.msk [vmem:[%s670] ss:$16 sm:$0xc] %vm667, %v666
    %s672 = scalar_lea.vmem %s1, 4294967272
    %673 = vst.msk [vmem:[%s672] ss:$16 sm:$0x30] %vm667, %v666
    %s674 = scalar_lea.vmem %s1, 200
    %675 = vst.msk [vmem:[%s674] ss:$16 sm:$0xc0] %vm667, %v666
    %s676 = scalar_lea.vmem [#allocation0], 32
    %v677 = vld.sshfl [vmem:[%s676] sm:$0xff pattern:$0x99999180]
    %s678 = scalar_lea.vmem [#allocation0], 48
    %v679 = vld.sshfl [vmem:[%s678] sm:$0xff pattern:$0x91800000]
    %vm680 = vcmask 1047556
    %v681 = vsel %vm680, %v679, %v677
    %682 = vrot.lane.b32.xlu0 %v681, 64
    %v683 = vpop.permute.xlu0 %682
    %vm684 = vcmask 64512
    %s685 = scalar_lea.vmem %s1, 72
    %686 = vst.msk [vmem:[%s685] ss:$16 sm:$0x3] %vm684, %v683
    %s687 = scalar_lea.vmem %s1, 296
    %688 = vst.msk [vmem:[%s687] ss:$16 sm:$0xc] %vm684, %v683
    %s689 = scalar_lea.vmem %s1, 40
    %690 = vst.msk [vmem:[%s689] ss:$16 sm:$0x30] %vm684, %v683
    %s691 = scalar_lea.vmem %s1, 264
    %692 = vst.msk [vmem:[%s691] ss:$16 sm:$0xc0] %vm684, %v683
    %s693 = scalar_lea.vmem [#allocation0], 64
    %v694 = vld.sshfl [vmem:[%s693] sm:$0xff pattern:$0x99999180]
    %s695 = scalar_lea.vmem [#allocation0], 80
    %v696 = vld.sshfl [vmem:[%s695] sm:$0xff pattern:$0x91800000]
    %vm697 = vcmask 1047556
    %v698 = vsel %vm697, %v696, %v694
    %699 = vrot.lane.b32.xlu0 %v698, 64
    %v700 = vpop.permute.xlu0 %699
    %vm701 = vcmask 64512
    %s702 = scalar_lea.vmem %s1, 136
    %703 = vst.msk [vmem:[%s702] ss:$16 sm:$0x3] %vm701, %v700
    %s704 = scalar_lea.vmem %s1, 360
    %705 = vst.msk [vmem:[%s704] ss:$16 sm:$0xc] %vm701, %v700
    %s706 = scalar_lea.vmem %s1, 104
    %707 = vst.msk [vmem:[%s706] ss:$16 sm:$0x30] %vm701, %v700
    %s708 = scalar_lea.vmem %s1, 328
    %709 = vst.msk [vmem:[%s708] ss:$16 sm:$0xc0] %vm701, %v700
    %s710 = scalar_lea.vmem [#allocation0], 96
    %v711 = vld.sshfl [vmem:[%s710] sm:$0xff pattern:$0x99999180]
    %s712 = scalar_lea.vmem [#allocation0], 112
    %v713 = vld.sshfl [vmem:[%s712] sm:$0xff pattern:$0x91800000]
    %vm714 = vcmask 1047556
    %v715 = vsel %vm714, %v713, %v711
    %716 = vrot.lane.b32.xlu0 %v715, 64
    %v717 = vpop.permute.xlu0 %716
    %vm718 = vcmask 64512
    %s719 = scalar_lea.vmem %s1, 200
    %720 = vst.msk [vmem:[%s719] ss:$16 sm:$0x3] %vm718, %v717
    %s721 = scalar_lea.vmem %s1, 424
    %722 = vst.msk [vmem:[%s721] ss:$16 sm:$0xc] %vm718, %v717
    %s723 = scalar_lea.vmem %s1, 168
    %724 = vst.msk [vmem:[%s723] ss:$16 sm:$0x30] %vm718, %v717
    %s725 = scalar_lea.vmem %s1, 392
    %726 = vst.msk [vmem:[%s725] ss:$16 sm:$0xc0] %vm718, %v717
    %v727 = vld.sshfl [vmem:[#allocation0] sm:$0xff pattern:$0x99999180]
    %s728 = scalar_lea.vmem [#allocation0], 16
    %v729 = vld.sshfl [vmem:[%s728] sm:$0xff pattern:$0x91800000]
    %vm730 = vcmask 1047556
    %v731 = vsel %vm730, %v729, %v727
    %732 = vrot.lane.b32.xlu0 %v731, 56
    %v733 = vpop.permute.xlu0 %732
    %vm734 = vcmask 64512
    %s735 = scalar_lea.vmem %s1, 9
    %736 = vst.msk [vmem:[%s735] ss:$16 sm:$0x3] %vm734, %v733
    %s737 = scalar_lea.vmem %s1, 233
    %738 = vst.msk [vmem:[%s737] ss:$16 sm:$0xc] %vm734, %v733
    %s739 = scalar_lea.vmem %s1, 4294967273
    %740 = vst.msk [vmem:[%s739] ss:$16 sm:$0x30] %vm734, %v733
    %s741 = scalar_lea.vmem %s1, 201
    %742 = vst.msk [vmem:[%s741] ss:$16 sm:$0xc0] %vm734, %v733
    %s743 = scalar_lea.vmem [#allocation0], 32
    %v744 = vld.sshfl [vmem:[%s743] sm:$0xff pattern:$0x99999180]
    %s745 = scalar_lea.vmem [#allocation0], 48
    %v746 = vld.sshfl [vmem:[%s745] sm:$0xff pattern:$0x91800000]
    %vm747 = vcmask 1047556
    %v748 = vsel %vm747, %v746, %v744
    %749 = vrot.lane.b32.xlu0 %v748, 56
    %v750 = vpop.permute.xlu0 %749
    %vm751 = vcmask 64512
    %s752 = scalar_lea.vmem %s1, 73
    %753 = vst.msk [vmem:[%s752] ss:$16 sm:$0x3] %vm751, %v750
    %s754 = scalar_lea.vmem %s1, 297
    %755 = vst.msk [vmem:[%s754] ss:$16 sm:$0xc] %vm751, %v750
    %s756 = scalar_lea.vmem %s1, 41
    %757 = vst.msk [vmem:[%s756] ss:$16 sm:$0x30] %vm751, %v750
    %s758 = scalar_lea.vmem %s1, 265
    %759 = vst.msk [vmem:[%s758] ss:$16 sm:$0xc0] %vm751, %v750
    %s760 = scalar_lea.vmem [#allocation0], 64
    %v761 = vld.sshfl [vmem:[%s760] sm:$0xff pattern:$0x99999180]
    %s762 = scalar_lea.vmem [#allocation0], 80
    %v763 = vld.sshfl [vmem:[%s762] sm:$0xff pattern:$0x91800000]
    %vm764 = vcmask 1047556
    %v765 = vsel %vm764, %v763, %v761
    %766 = vrot.lane.b32.xlu0 %v765, 56
    %v767 = vpop.permute.xlu0 %766
    %vm768 = vcmask 64512
    %s769 = scalar_lea.vmem %s1, 137
    %770 = vst.msk [vmem:[%s769] ss:$16 sm:$0x3] %vm768, %v767
    %s771 = scalar_lea.vmem %s1, 361
    %772 = vst.msk [vmem:[%s771] ss:$16 sm:$0xc] %vm768, %v767
    %s773 = scalar_lea.vmem %s1, 105
    %774 = vst.msk [vmem:[%s773] ss:$16 sm:$0x30] %vm768, %v767
    %s775 = scalar_lea.vmem %s1, 329
    %776 = vst.msk [vmem:[%s775] ss:$16 sm:$0xc0] %vm768, %v767
    %s777 = scalar_lea.vmem [#allocation0], 96
    %v778 = vld.sshfl [vmem:[%s777] sm:$0xff pattern:$0x99999180]
    %s779 = scalar_lea.vmem [#allocation0], 112
    %v780 = vld.sshfl [vmem:[%s779] sm:$0xff pattern:$0x91800000]
    %vm781 = vcmask 1047556
    %v782 = vsel %vm781, %v780, %v778
    %783 = vrot.lane.b32.xlu0 %v782, 56
    %v784 = vpop.permute.xlu0 %783
    %vm785 = vcmask 64512
    %s786 = scalar_lea.vmem %s1, 201
    %787 = vst.msk [vmem:[%s786] ss:$16 sm:$0x3] %vm785, %v784
    %s788 = scalar_lea.vmem %s1, 425
    %789 = vst.msk [vmem:[%s788] ss:$16 sm:$0xc] %vm785, %v784
    %s790 = scalar_lea.vmem %s1, 169
    %791 = vst.msk [vmem:[%s790] ss:$16 sm:$0x30] %vm785, %v784
    %s792 = scalar_lea.vmem %s1, 393
    %793 = vst.msk [vmem:[%s792] ss:$16 sm:$0xc0] %vm785, %v784
    %v794 = vld.sshfl [vmem:[#allocation0] sm:$0xff pattern:$0x99999180]
    %s795 = scalar_lea.vmem [#allocation0], 16
    %v796 = vld.sshfl [vmem:[%s795] sm:$0xff pattern:$0x91800000]
    %vm797 = vcmask 1047556
    %v798 = vsel %vm797, %v796, %v794
    %799 = vrot.lane.b32.xlu0 %v798, 48
    %v800 = vpop.permute.xlu0 %799
    %vm801 = vcmask 64512
    %s802 = scalar_lea.vmem %s1, 10
    %803 = vst.msk [vmem:[%s802] ss:$16 sm:$0x3] %vm801, %v800
    %s804 = scalar_lea.vmem %s1, 234
    %805 = vst.msk [vmem:[%s804] ss:$16 sm:$0xc] %vm801, %v800
    %s806 = scalar_lea.vmem %s1, 4294967274
    %807 = vst.msk [vmem:[%s806] ss:$16 sm:$0x30] %vm801, %v800
    %s808 = scalar_lea.vmem %s1, 202
    %809 = vst.msk [vmem:[%s808] ss:$16 sm:$0xc0] %vm801, %v800
    %s810 = scalar_lea.vmem [#allocation0], 32
    %v811 = vld.sshfl [vmem:[%s810] sm:$0xff pattern:$0x99999180]
    %s812 = scalar_lea.vmem [#allocation0], 48
    %v813 = vld.sshfl [vmem:[%s812] sm:$0xff pattern:$0x91800000]
    %vm814 = vcmask 1047556
    %v815 = vsel %vm814, %v813, %v811
    %816 = vrot.lane.b32.xlu0 %v815, 48
    %v817 = vpop.permute.xlu0 %816
    %vm818 = vcmask 64512
    %s819 = scalar_lea.vmem %s1, 74
    %820 = vst.msk [vmem:[%s819] ss:$16 sm:$0x3] %vm818, %v817
    %s821 = scalar_lea.vmem %s1, 298
    %822 = vst.msk [vmem:[%s821] ss:$16 sm:$0xc] %vm818, %v817
    %s823 = scalar_lea.vmem %s1, 42
    %824 = vst.msk [vmem:[%s823] ss:$16 sm:$0x30] %vm818, %v817
    %s825 = scalar_lea.vmem %s1, 266
    %826 = vst.msk [vmem:[%s825] ss:$16 sm:$0xc0] %vm818, %v817
    %s827 = scalar_lea.vmem [#allocation0], 64
    %v828 = vld.sshfl [vmem:[%s827] sm:$0xff pattern:$0x99999180]
    %s829 = scalar_lea.vmem [#allocation0], 80
    %v830 = vld.sshfl [vmem:[%s829] sm:$0xff pattern:$0x91800000]
    %vm831 = vcmask 1047556
    %v832 = vsel %vm831, %v830, %v828
    %833 = vrot.lane.b32.xlu0 %v832, 48
    %v834 = vpop.permute.xlu0 %833
    %vm835 = vcmask 64512
    %s836 = scalar_lea.vmem %s1, 138
    %837 = vst.msk [vmem:[%s836] ss:$16 sm:$0x3] %vm835, %v834
    %s838 = scalar_lea.vmem %s1, 362
    %839 = vst.msk [vmem:[%s838] ss:$16 sm:$0xc] %vm835, %v834
    %s840 = scalar_lea.vmem %s1, 106
    %841 = vst.msk [vmem:[%s840] ss:$16 sm:$0x30] %vm835, %v834
    %s842 = scalar_lea.vmem %s1, 330
    %843 = vst.msk [vmem:[%s842] ss:$16 sm:$0xc0] %vm835, %v834
    %s844 = scalar_lea.vmem [#allocation0], 96
    %v845 = vld.sshfl [vmem:[%s844] sm:$0xff pattern:$0x99999180]
    %s846 = scalar_lea.vmem [#allocation0], 112
    %v847 = vld.sshfl [vmem:[%s846] sm:$0xff pattern:$0x91800000]
    %vm848 = vcmask 1047556
    %v849 = vsel %vm848, %v847, %v845
    %850 = vrot.lane.b32.xlu0 %v849, 48
    %v851 = vpop.permute.xlu0 %850
    %vm852 = vcmask 64512
    %s853 = scalar_lea.vmem %s1, 202
    %854 = vst.msk [vmem:[%s853] ss:$16 sm:$0x3] %vm852, %v851
    %s855 = scalar_lea.vmem %s1, 426
    %856 = vst.msk [vmem:[%s855] ss:$16 sm:$0xc] %vm852, %v851
    %s857 = scalar_lea.vmem %s1, 170
    %858 = vst.msk [vmem:[%s857] ss:$16 sm:$0x30] %vm852, %v851
    %s859 = scalar_lea.vmem %s1, 394
    %860 = vst.msk [vmem:[%s859] ss:$16 sm:$0xc0] %vm852, %v851
    %v861 = vld.sshfl [vmem:[#allocation0] sm:$0xff pattern:$0x99999180]
    %s862 = scalar_lea.vmem [#allocation0], 16
    %v863 = vld.sshfl [vmem:[%s862] sm:$0xff pattern:$0x91800000]
    %vm864 = vcmask 1047556
    %v865 = vsel %vm864, %v863, %v861
    %866 = vrot.lane.b32.xlu0 %v865, 40
    %v867 = vpop.permute.xlu0 %866
    %vm868 = vcmask 64512
    %s869 = scalar_lea.vmem %s1, 11
    %870 = vst.msk [vmem:[%s869] ss:$16 sm:$0x3] %vm868, %v867
    %s871 = scalar_lea.vmem %s1, 235
    %872 = vst.msk [vmem:[%s871] ss:$16 sm:$0xc] %vm868, %v867
    %s873 = scalar_lea.vmem %s1, 4294967275
    %874 = vst.msk [vmem:[%s873] ss:$16 sm:$0x30] %vm868, %v867
    %s875 = scalar_lea.vmem %s1, 203
    %876 = vst.msk [vmem:[%s875] ss:$16 sm:$0xc0] %vm868, %v867
    %s877 = scalar_lea.vmem [#allocation0], 32
    %v878 = vld.sshfl [vmem:[%s877] sm:$0xff pattern:$0x99999180]
    %s879 = scalar_lea.vmem [#allocation0], 48
    %v880 = vld.sshfl [vmem:[%s879] sm:$0xff pattern:$0x91800000]
    %vm881 = vcmask 1047556
    %v882 = vsel %vm881, %v880, %v878
    %883 = vrot.lane.b32.xlu0 %v882, 40
    %v884 = vpop.permute.xlu0 %883
    %vm885 = vcmask 64512
    %s886 = scalar_lea.vmem %s1, 75
    %887 = vst.msk [vmem:[%s886] ss:$16 sm:$0x3] %vm885, %v884
    %s888 = scalar_lea.vmem %s1, 299
    %889 = vst.msk [vmem:[%s888] ss:$16 sm:$0xc] %vm885, %v884
    %s890 = scalar_lea.vmem %s1, 43
    %891 = vst.msk [vmem:[%s890] ss:$16 sm:$0x30] %vm885, %v884
    %s892 = scalar_lea.vmem %s1, 267
    %893 = vst.msk [vmem:[%s892] ss:$16 sm:$0xc0] %vm885, %v884
    %s894 = scalar_lea.vmem [#allocation0], 64
    %v895 = vld.sshfl [vmem:[%s894] sm:$0xff pattern:$0x99999180]
    %s896 = scalar_lea.vmem [#allocation0], 80
    %v897 = vld.sshfl [vmem:[%s896] sm:$0xff pattern:$0x91800000]
    %vm898 = vcmask 1047556
    %v899 = vsel %vm898, %v897, %v895
    %900 = vrot.lane.b32.xlu0 %v899, 40
    %v901 = vpop.permute.xlu0 %900
    %vm902 = vcmask 64512
    %s903 = scalar_lea.vmem %s1, 139
    %904 = vst.msk [vmem:[%s903] ss:$16 sm:$0x3] %vm902, %v901
    %s905 = scalar_lea.vmem %s1, 363
    %906 = vst.msk [vmem:[%s905] ss:$16 sm:$0xc] %vm902, %v901
    %s907 = scalar_lea.vmem %s1, 107
    %908 = vst.msk [vmem:[%s907] ss:$16 sm:$0x30] %vm902, %v901
    %s909 = scalar_lea.vmem %s1, 331
    %910 = vst.msk [vmem:[%s909] ss:$16 sm:$0xc0] %vm902, %v901
    %s911 = scalar_lea.vmem [#allocation0], 96
    %v912 = vld.sshfl [vmem:[%s911] sm:$0xff pattern:$0x99999180]
    %s913 = scalar_lea.vmem [#allocation0], 112
    %v914 = vld.sshfl [vmem:[%s913] sm:$0xff pattern:$0x91800000]
    %vm915 = vcmask 1047556
    %v916 = vsel %vm915, %v914, %v912
    %917 = vrot.lane.b32.xlu0 %v916, 40
    %v918 = vpop.permute.xlu0 %917
    %vm919 = vcmask 64512
    %s920 = scalar_lea.vmem %s1, 203
    %921 = vst.msk [vmem:[%s920] ss:$16 sm:$0x3] %vm919, %v918
    %s922 = scalar_lea.vmem %s1, 427
    %923 = vst.msk [vmem:[%s922] ss:$16 sm:$0xc] %vm919, %v918
    %s924 = scalar_lea.vmem %s1, 171
    %925 = vst.msk [vmem:[%s924] ss:$16 sm:$0x30] %vm919, %v918
    %s926 = scalar_lea.vmem %s1, 395
    %927 = vst.msk [vmem:[%s926] ss:$16 sm:$0xc0] %vm919, %v918
    %v928 = vld.sshfl [vmem:[#allocation0] sm:$0xff pattern:$0x99999180]
    %s929 = scalar_lea.vmem [#allocation0], 16
    %v930 = vld.sshfl [vmem:[%s929] sm:$0xff pattern:$0x91800000]
    %vm931 = vcmask 1047556
    %v932 = vsel %vm931, %v930, %v928
    %933 = vrot.lane.b32.xlu0 %v932, 32
    %v934 = vpop.permute.xlu0 %933
    %vm935 = vcmask 64512
    %s936 = scalar_lea.vmem %s1, 12
    %937 = vst.msk [vmem:[%s936] ss:$16 sm:$0x3] %vm935, %v934
    %s938 = scalar_lea.vmem %s1, 236
    %939 = vst.msk [vmem:[%s938] ss:$16 sm:$0xc] %vm935, %v934
    %s940 = scalar_lea.vmem %s1, 4294967276
    %941 = vst.msk [vmem:[%s940] ss:$16 sm:$0x30] %vm935, %v934
    %s942 = scalar_lea.vmem %s1, 204
    %943 = vst.msk [vmem:[%s942] ss:$16 sm:$0xc0] %vm935, %v934
    %s944 = scalar_lea.vmem [#allocation0], 32
    %v945 = vld.sshfl [vmem:[%s944] sm:$0xff pattern:$0x99999180]
    %s946 = scalar_lea.vmem [#allocation0], 48
    %v947 = vld.sshfl [vmem:[%s946] sm:$0xff pattern:$0x91800000]
    %vm948 = vcmask 1047556
    %v949 = vsel %vm948, %v947, %v945
    %950 = vrot.lane.b32.xlu0 %v949, 32
    %v951 = vpop.permute.xlu0 %950
    %vm952 = vcmask 64512
    %s953 = scalar_lea.vmem %s1, 76
    %954 = vst.msk [vmem:[%s953] ss:$16 sm:$0x3] %vm952, %v951
    %s955 = scalar_lea.vmem %s1, 300
    %956 = vst.msk [vmem:[%s955] ss:$16 sm:$0xc] %vm952, %v951
    %s957 = scalar_lea.vmem %s1, 44
    %958 = vst.msk [vmem:[%s957] ss:$16 sm:$0x30] %vm952, %v951
    %s959 = scalar_lea.vmem %s1, 268
    %960 = vst.msk [vmem:[%s959] ss:$16 sm:$0xc0] %vm952, %v951
    %s961 = scalar_lea.vmem [#allocation0], 64
    %v962 = vld.sshfl [vmem:[%s961] sm:$0xff pattern:$0x99999180]
    %s963 = scalar_lea.vmem [#allocation0], 80
    %v964 = vld.sshfl [vmem:[%s963] sm:$0xff pattern:$0x91800000]
    %vm965 = vcmask 1047556
    %v966 = vsel %vm965, %v964, %v962
    %967 = vrot.lane.b32.xlu0 %v966, 32
    %v968 = vpop.permute.xlu0 %967
    %vm969 = vcmask 64512
    %s970 = scalar_lea.vmem %s1, 140
    %971 = vst.msk [vmem:[%s970] ss:$16 sm:$0x3] %vm969, %v968
    %s972 = scalar_lea.vmem %s1, 364
    %973 = vst.msk [vmem:[%s972] ss:$16 sm:$0xc] %vm969, %v968
    %s974 = scalar_lea.vmem %s1, 108
    %975 = vst.msk [vmem:[%s974] ss:$16 sm:$0x30] %vm969, %v968
    %s976 = scalar_lea.vmem %s1, 332
    %977 = vst.msk [vmem:[%s976] ss:$16 sm:$0xc0] %vm969, %v968
    %s978 = scalar_lea.vmem [#allocation0], 96
    %v979 = vld.sshfl [vmem:[%s978] sm:$0xff pattern:$0x99999180]
    %s980 = scalar_lea.vmem [#allocation0], 112
    %v981 = vld.sshfl [vmem:[%s980] sm:$0xff pattern:$0x91800000]
    %vm982 = vcmask 1047556
    %v983 = vsel %vm982, %v981, %v979
    %984 = vrot.lane.b32.xlu0 %v983, 32
    %v985 = vpop.permute.xlu0 %984
    %vm986 = vcmask 64512
    %s987 = scalar_lea.vmem %s1, 204
    %988 = vst.msk [vmem:[%s987] ss:$16 sm:$0x3] %vm986, %v985
    %s989 = scalar_lea.vmem %s1, 428
    %990 = vst.msk [vmem:[%s989] ss:$16 sm:$0xc] %vm986, %v985
    %s991 = scalar_lea.vmem %s1, 172
    %992 = vst.msk [vmem:[%s991] ss:$16 sm:$0x30] %vm986, %v985
    %s993 = scalar_lea.vmem %s1, 396
    %994 = vst.msk [vmem:[%s993] ss:$16 sm:$0xc0] %vm986, %v985
    %v995 = vld.sshfl [vmem:[#allocation0] sm:$0xff pattern:$0x99999180]
    %s996 = scalar_lea.vmem [#allocation0], 16
    %v997 = vld.sshfl [vmem:[%s996] sm:$0xff pattern:$0x91800000]
    %vm998 = vcmask 1047556
    %v999 = vsel %vm998, %v997, %v995
    %1000 = vrot.lane.b32.xlu0 %v999, 24
    %v1001 = vpop.permute.xlu0 %1000
    %vm1002 = vcmask 64512
    %s1003 = scalar_lea.vmem %s1, 13
    %1004 = vst.msk [vmem:[%s1003] ss:$16 sm:$0x3] %vm1002, %v1001
    %s1005 = scalar_lea.vmem %s1, 237
    %1006 = vst.msk [vmem:[%s1005] ss:$16 sm:$0xc] %vm1002, %v1001
    %s1007 = scalar_lea.vmem %s1, 4294967277
    %1008 = vst.msk [vmem:[%s1007] ss:$16 sm:$0x30] %vm1002, %v1001
    %s1009 = scalar_lea.vmem %s1, 205
    %1010 = vst.msk [vmem:[%s1009] ss:$16 sm:$0xc0] %vm1002, %v1001
    %s1011 = scalar_lea.vmem [#allocation0], 32
    %v1012 = vld.sshfl [vmem:[%s1011] sm:$0xff pattern:$0x99999180]
    %s1013 = scalar_lea.vmem [#allocation0], 48
    %v1014 = vld.sshfl [vmem:[%s1013] sm:$0xff pattern:$0x91800000]
    %vm1015 = vcmask 1047556
    %v1016 = vsel %vm1015, %v1014, %v1012
    %1017 = vrot.lane.b32.xlu0 %v1016, 24
    %v1018 = vpop.permute.xlu0 %1017
    %vm1019 = vcmask 64512
    %s1020 = scalar_lea.vmem %s1, 77
    %1021 = vst.msk [vmem:[%s1020] ss:$16 sm:$0x3] %vm1019, %v1018
    %s1022 = scalar_lea.vmem %s1, 301
    %1023 = vst.msk [vmem:[%s1022] ss:$16 sm:$0xc] %vm1019, %v1018
    %s1024 = scalar_lea.vmem %s1, 45
    %1025 = vst.msk [vmem:[%s1024] ss:$16 sm:$0x30] %vm1019, %v1018
    %s1026 = scalar_lea.vmem %s1, 269
    %1027 = vst.msk [vmem:[%s1026] ss:$16 sm:$0xc0] %vm1019, %v1018
    %s1028 = scalar_lea.vmem [#allocation0], 64
    %v1029 = vld.sshfl [vmem:[%s1028] sm:$0xff pattern:$0x99999180]
    %s1030 = scalar_lea.vmem [#allocation0], 80
    %v1031 = vld.sshfl [vmem:[%s1030] sm:$0xff pattern:$0x91800000]
    %vm1032 = vcmask 1047556
    %v1033 = vsel %vm1032, %v1031, %v1029
    %1034 = vrot.lane.b32.xlu0 %v1033, 24
    %v1035 = vpop.permute.xlu0 %1034
    %vm1036 = vcmask 64512
    %s1037 = scalar_lea.vmem %s1, 141
    %1038 = vst.msk [vmem:[%s1037] ss:$16 sm:$0x3] %vm1036, %v1035
    %s1039 = scalar_lea.vmem %s1, 365
    %1040 = vst.msk [vmem:[%s1039] ss:$16 sm:$0xc] %vm1036, %v1035
    %s1041 = scalar_lea.vmem %s1, 109
    %1042 = vst.msk [vmem:[%s1041] ss:$16 sm:$0x30] %vm1036, %v1035
    %s1043 = scalar_lea.vmem %s1, 333
    %1044 = vst.msk [vmem:[%s1043] ss:$16 sm:$0xc0] %vm1036, %v1035
    %s1045 = scalar_lea.vmem [#allocation0], 96
    %v1046 = vld.sshfl [vmem:[%s1045] sm:$0xff pattern:$0x99999180]
    %s1047 = scalar_lea.vmem [#allocation0], 112
    %v1048 = vld.sshfl [vmem:[%s1047] sm:$0xff pattern:$0x91800000]
    %vm1049 = vcmask 1047556
    %v1050 = vsel %vm1049, %v1048, %v1046
    %1051 = vrot.lane.b32.xlu0 %v1050, 24
    %v1052 = vpop.permute.xlu0 %1051
    %vm1053 = vcmask 64512
    %s1054 = scalar_lea.vmem %s1, 205
    %1055 = vst.msk [vmem:[%s1054] ss:$16 sm:$0x3] %vm1053, %v1052
    %s1056 = scalar_lea.vmem %s1, 429
    %1057 = vst.msk [vmem:[%s1056] ss:$16 sm:$0xc] %vm1053, %v1052
    %s1058 = scalar_lea.vmem %s1, 173
    %1059 = vst.msk [vmem:[%s1058] ss:$16 sm:$0x30] %vm1053, %v1052
    %s1060 = scalar_lea.vmem %s1, 397
    %1061 = vst.msk [vmem:[%s1060] ss:$16 sm:$0xc0] %vm1053, %v1052
    %v1062 = vld.sshfl [vmem:[#allocation0] sm:$0xff pattern:$0x99999180]
    %s1063 = scalar_lea.vmem [#allocation0], 16
    %v1064 = vld.sshfl [vmem:[%s1063] sm:$0xff pattern:$0x91800000]
    %vm1065 = vcmask 1047556
    %v1066 = vsel %vm1065, %v1064, %v1062
    %1067 = vrot.lane.b32.xlu0 %v1066, 16
    %v1068 = vpop.permute.xlu0 %1067
    %vm1069 = vcmask 64512
    %s1070 = scalar_lea.vmem %s1, 14
    %1071 = vst.msk [vmem:[%s1070] ss:$16 sm:$0x3] %vm1069, %v1068
    %s1072 = scalar_lea.vmem %s1, 238
    %1073 = vst.msk [vmem:[%s1072] ss:$16 sm:$0xc] %vm1069, %v1068
    %s1074 = scalar_lea.vmem %s1, 4294967278
    %1075 = vst.msk [vmem:[%s1074] ss:$16 sm:$0x30] %vm1069, %v1068
    %s1076 = scalar_lea.vmem %s1, 206
    %1077 = vst.msk [vmem:[%s1076] ss:$16 sm:$0xc0] %vm1069, %v1068
    %s1078 = scalar_lea.vmem [#allocation0], 32
    %v1079 = vld.sshfl [vmem:[%s1078] sm:$0xff pattern:$0x99999180]
    %s1080 = scalar_lea.vmem [#allocation0], 48
    %v1081 = vld.sshfl [vmem:[%s1080] sm:$0xff pattern:$0x91800000]
    %vm1082 = vcmask 1047556
    %v1083 = vsel %vm1082, %v1081, %v1079
    %1084 = vrot.lane.b32.xlu0 %v1083, 16
    %v1085 = vpop.permute.xlu0 %1084
    %vm1086 = vcmask 64512
    %s1087 = scalar_lea.vmem %s1, 78
    %1088 = vst.msk [vmem:[%s1087] ss:$16 sm:$0x3] %vm1086, %v1085
    %s1089 = scalar_lea.vmem %s1, 302
    %1090 = vst.msk [vmem:[%s1089] ss:$16 sm:$0xc] %vm1086, %v1085
    %s1091 = scalar_lea.vmem %s1, 46
    %1092 = vst.msk [vmem:[%s1091] ss:$16 sm:$0x30] %vm1086, %v1085
    %s1093 = scalar_lea.vmem %s1, 270
    %1094 = vst.msk [vmem:[%s1093] ss:$16 sm:$0xc0] %vm1086, %v1085
    %s1095 = scalar_lea.vmem [#allocation0], 64
    %v1096 = vld.sshfl [vmem:[%s1095] sm:$0xff pattern:$0x99999180]
    %s1097 = scalar_lea.vmem [#allocation0], 80
    %v1098 = vld.sshfl [vmem:[%s1097] sm:$0xff pattern:$0x91800000]
    %vm1099 = vcmask 1047556
    %v1100 = vsel %vm1099, %v1098, %v1096
    %1101 = vrot.lane.b32.xlu0 %v1100, 16
    %v1102 = vpop.permute.xlu0 %1101
    %vm1103 = vcmask 64512
    %s1104 = scalar_lea.vmem %s1, 142
    %1105 = vst.msk [vmem:[%s1104] ss:$16 sm:$0x3] %vm1103, %v1102
    %s1106 = scalar_lea.vmem %s1, 366
    %1107 = vst.msk [vmem:[%s1106] ss:$16 sm:$0xc] %vm1103, %v1102
    %s1108 = scalar_lea.vmem %s1, 110
    %1109 = vst.msk [vmem:[%s1108] ss:$16 sm:$0x30] %vm1103, %v1102
    %s1110 = scalar_lea.vmem %s1, 334
    %1111 = vst.msk [vmem:[%s1110] ss:$16 sm:$0xc0] %vm1103, %v1102
    %s1112 = scalar_lea.vmem [#allocation0], 96
    %v1113 = vld.sshfl [vmem:[%s1112] sm:$0xff pattern:$0x99999180]
    %s1114 = scalar_lea.vmem [#allocation0], 112
    %v1115 = vld.sshfl [vmem:[%s1114] sm:$0xff pattern:$0x91800000]
    %vm1116 = vcmask 1047556
    %v1117 = vsel %vm1116, %v1115, %v1113
    %1118 = vrot.lane.b32.xlu0 %v1117, 16
    %v1119 = vpop.permute.xlu0 %1118
    %vm1120 = vcmask 64512
    %s1121 = scalar_lea.vmem %s1, 206
    %1122 = vst.msk [vmem:[%s1121] ss:$16 sm:$0x3] %vm1120, %v1119
    %s1123 = scalar_lea.vmem %s1, 430
    %1124 = vst.msk [vmem:[%s1123] ss:$16 sm:$0xc] %vm1120, %v1119
    %s1125 = scalar_lea.vmem %s1, 174
    %1126 = vst.msk [vmem:[%s1125] ss:$16 sm:$0x30] %vm1120, %v1119
    %s1127 = scalar_lea.vmem %s1, 398
    %1128 = vst.msk [vmem:[%s1127] ss:$16 sm:$0xc0] %vm1120, %v1119
    %v1129 = vld.sshfl [vmem:[#allocation0] sm:$0xff pattern:$0x99999180]
    %s1130 = scalar_lea.vmem [#allocation0], 16
    %v1131 = vld.sshfl [vmem:[%s1130] sm:$0xff pattern:$0x91800000]
    %vm1132 = vcmask 1047556
    %v1133 = vsel %vm1132, %v1131, %v1129
    %1134 = vrot.lane.b32.xlu0 %v1133, 8
    %v1135 = vpop.permute.xlu0 %1134
    %vm1136 = vcmask 64512
    %s1137 = scalar_lea.vmem %s1, 15
    %1138 = vst.msk [vmem:[%s1137] ss:$16 sm:$0x3] %vm1136, %v1135
    %s1139 = scalar_lea.vmem %s1, 239
    %1140 = vst.msk [vmem:[%s1139] ss:$16 sm:$0xc] %vm1136, %v1135
    %s1141 = scalar_lea.vmem %s1, 4294967279
    %1142 = vst.msk [vmem:[%s1141] ss:$16 sm:$0x30] %vm1136, %v1135
    %s1143 = scalar_lea.vmem %s1, 207
    %1144 = vst.msk [vmem:[%s1143] ss:$16 sm:$0xc0] %vm1136, %v1135
    %s1145 = scalar_lea.vmem [#allocation0], 32
    %v1146 = vld.sshfl [vmem:[%s1145] sm:$0xff pattern:$0x99999180]
    %s1147 = scalar_lea.vmem [#allocation0], 48
    %v1148 = vld.sshfl [vmem:[%s1147] sm:$0xff pattern:$0x91800000]
    %vm1149 = vcmask 1047556
    %v1150 = vsel %vm1149, %v1148, %v1146
    %1151 = vrot.lane.b32.xlu0 %v1150, 8
    %v1152 = vpop.permute.xlu0 %1151
    %vm1153 = vcmask 64512
    %s1154 = scalar_lea.vmem %s1, 79
    %1155 = vst.msk [vmem:[%s1154] ss:$16 sm:$0x3] %vm1153, %v1152
    %s1156 = scalar_lea.vmem %s1, 303
    %1157 = vst.msk [vmem:[%s1156] ss:$16 sm:$0xc] %vm1153, %v1152
    %s1158 = scalar_lea.vmem %s1, 47
    %1159 = vst.msk [vmem:[%s1158] ss:$16 sm:$0x30] %vm1153, %v1152
    %s1160 = scalar_lea.vmem %s1, 271
    %1161 = vst.msk [vmem:[%s1160] ss:$16 sm:$0xc0] %vm1153, %v1152
    %s1162 = scalar_lea.vmem [#allocation0], 64
    %v1163 = vld.sshfl [vmem:[%s1162] sm:$0xff pattern:$0x99999180]
    %s1164 = scalar_lea.vmem [#allocation0], 80
    %v1165 = vld.sshfl [vmem:[%s1164] sm:$0xff pattern:$0x91800000]
    %vm1166 = vcmask 1047556
    %v1167 = vsel %vm1166, %v1165, %v1163
    %1168 = vrot.lane.b32.xlu0 %v1167, 8
    %v1169 = vpop.permute.xlu0 %1168
    %vm1170 = vcmask 64512
    %s1171 = scalar_lea.vmem %s1, 143
    %1172 = vst.msk [vmem:[%s1171] ss:$16 sm:$0x3] %vm1170, %v1169
    %s1173 = scalar_lea.vmem %s1, 367
    %1174 = vst.msk [vmem:[%s1173] ss:$16 sm:$0xc] %vm1170, %v1169
    %s1175 = scalar_lea.vmem %s1, 111
    %1176 = vst.msk [vmem:[%s1175] ss:$16 sm:$0x30] %vm1170, %v1169
    %s1177 = scalar_lea.vmem %s1, 335
    %1178 = vst.msk [vmem:[%s1177] ss:$16 sm:$0xc0] %vm1170, %v1169
    %s1179 = scalar_lea.vmem [#allocation0], 96
    %v1180 = vld.sshfl [vmem:[%s1179] sm:$0xff pattern:$0x99999180]
    %s1181 = scalar_lea.vmem [#allocation0], 112
    %v1182 = vld.sshfl [vmem:[%s1181] sm:$0xff pattern:$0x91800000]
    %vm1183 = vcmask 1047556
    %v1184 = vsel %vm1183, %v1182, %v1180
    %1185 = vrot.lane.b32.xlu0 %v1184, 8
    %v1186 = vpop.permute.xlu0 %1185
    %vm1187 = vcmask 64512
    %s1188 = scalar_lea.vmem %s1, 207
    %1189 = vst.msk [vmem:[%s1188] ss:$16 sm:$0x3] %vm1187, %v1186
    %s1190 = scalar_lea.vmem %s1, 431
    %1191 = vst.msk [vmem:[%s1190] ss:$16 sm:$0xc] %vm1187, %v1186
    %s1192 = scalar_lea.vmem %s1, 175
    %1193 = vst.msk [vmem:[%s1192] ss:$16 sm:$0x30] %vm1187, %v1186
    %s1194 = scalar_lea.vmem %s1, 399
    %1195 = vst.msk [vmem:[%s1194] ss:$16 sm:$0xc0] %vm1187, %v1186

// kernel: pointpillar_forward.2
$region0: #{pointpillar_forward.2}
  #allocation0 [shape = 'u32[]', space=smem, size = 0x4, offset = 0x4, fixed_abs, tag = 'smem constant byte address 0x4 - core index']
  #allocation1 [shape = 'u32[144,128]{1,0:T(1,128)}', space=vmem, size = 0x12000, scoped, tag = 'internal scratch']
  %s0 = inlined_call_operand.vmem [shape: bf16[512,128], index: 0, kind: input, shape index: {}]
  %s1 = inlined_call_operand.vmem [shape: bf16[512,256], index: 1, kind: input, shape index: {}]
  %s2 = inlined_call_operand.vmem [shape: bf16[128,256], index: 2, kind: input, shape index: {}]
  %s3 = inlined_call_operand.vmem [shape: f32[1,256], index: 3, kind: input, shape index: {}]
  %s4 = inlined_call_operand.vmem [shape: bf16[512,32], index: 4, kind: output, shape index: {}]
  %s5 = sld [smem:[#allocation0]]
  $region49: #{pointpillar_forward.2} parent=0
    _
  %s7 = ssub.s32 1, %s5
  %s8 = scalar_select 0, %s7, %s5
  loop: start=0, step=1, limit=4
  $region2: #{pointpillar_forward.2} parent=0 // loop_pre_header
    _
  $region3: #{pointpillar_forward.2} parent=0 // loop_header
    %s10 = sphi 0, %s14
    %p11 = scmp.ge.s32.totalorder %s10, 4
    %s20 = sphi 0, %s22
    %s23 = sphi 0, %s20
    %s24 = sphi 0, %s23
    %s40 = sphi 0, %s24
    %s46 = sphi 0, %s48
    %s49 = sphi 0, %s46
    %s50 = sphi 0, %s49
    %s66 = sphi 0, %s50
    %s70 = sphi 0, %s70
    %s72 = sphi 0, %s70
    %s73 = sphi 0, %s72
    %s87 = sphi 0, %s73
    %s91 = sphi 0, %s91
    %s93 = sphi 0, %s91
    %s94 = sphi 0, %s93
    %s108 = sphi 0, %s94
    %s114 = sphi 0, %s116
    %s117 = sphi 0, %s114
    %s118 = sphi 0, %s117
    %s134 = sphi 0, %s118
  $region4: #{pointpillar_forward.2} parent=0 // loop_header_branch
    %13 = sbr.rel (%p11) target = $region8
  $region5: #{pointpillar_forward.2} parent=0 // loop_body
    %s15 = ssub.s32 %s10, 1
    %s16 = ssub.s32 %s10, 2
    %s17 = sadd.s32 %s10, 1
    %s18 = ssub.s32 %s10, %s17
    %p19 = scmp.eq.s32.totalorder %s18, 0
    %s21 = sadd.s32 %s20, 1
    %s22 = scalar_select %p19, %s20, %s21
    %p25 = pneg %p19
    %p26 = scmp.eq.s32.totalorder %s10, 1
    %p27 = por %p25, %p26
    %p28 = scmp.ne.s32.totalorder %s20, %s23
    %p29 = scmp.eq.s32.totalorder %s10, 0
    %p30 = por %p28, %p29
    %p31 = scmp.ne.s32.totalorder %s20, %s23
    %p32 = scmp.eq.s32.totalorder %s15, 1
    %p33 = por %p31, %p32
    %p34 = scmp.ne.s32.totalorder %s23, %s24
    %p35 = scmp.eq.s32.totalorder %s15, 0
    %p36 = por %p34, %p35
    %p37 = scmp.ne.s32.totalorder %s23, %s24
    %p38 = scmp.eq.s32.totalorder %s16, 1
    %p39 = por %p37, %p38
    %p41 = scmp.ne.s32.totalorder %s24, %s40
    %p42 = scmp.eq.s32.totalorder %s16, 0
    %p43 = por %p41, %p42
    %s44 = ssub.s32 %s10, %s17
    %p45 = scmp.eq.s32.totalorder %s44, 0
    %s47 = sadd.s32 %s46, 1
    %s48 = scalar_select %p45, %s46, %s47
    %p51 = pneg %p45
    %p52 = scmp.eq.s32.totalorder %s10, 1
    %p53 = por %p51, %p52
    %p54 = scmp.ne.s32.totalorder %s46, %s49
    %p55 = scmp.eq.s32.totalorder %s10, 0
    %p56 = por %p54, %p55
    %p57 = scmp.ne.s32.totalorder %s46, %s49
    %p58 = scmp.eq.s32.totalorder %s15, 1
    %p59 = por %p57, %p58
    %p60 = scmp.ne.s32.totalorder %s49, %s50
    %p61 = scmp.eq.s32.totalorder %s15, 0
    %p62 = por %p60, %p61
    %p63 = scmp.ne.s32.totalorder %s49, %s50
    %p64 = scmp.eq.s32.totalorder %s16, 1
    %p65 = por %p63, %p64
    %p67 = scmp.ne.s32.totalorder %s50, %s66
    %p68 = scmp.eq.s32.totalorder %s16, 0
    %p69 = por %p67, %p68
    %s71 = sadd.s32 %s70, 1
    %p74 = scmp.eq.s32.totalorder %s10, 1
    %p75 = scmp.ne.s32.totalorder %s70, %s72
    %p76 = scmp.eq.s32.totalorder %s10, 0
    %p77 = por %p75, %p76
    %p78 = scmp.ne.s32.totalorder %s70, %s72
    %p79 = scmp.eq.s32.totalorder %s15, 1
    %p80 = por %p78, %p79
    %p81 = scmp.ne.s32.totalorder %s72, %s73
    %p82 = scmp.eq.s32.totalorder %s15, 0
    %p83 = por %p81, %p82
    %p84 = scmp.ne.s32.totalorder %s72, %s73
    %p85 = scmp.eq.s32.totalorder %s16, 1
    %p86 = por %p84, %p85
    %p88 = scmp.ne.s32.totalorder %s73, %s87
    %p89 = scmp.eq.s32.totalorder %s16, 0
    %p90 = por %p88, %p89
    %s92 = sadd.s32 %s91, 1
    %p95 = scmp.eq.s32.totalorder %s10, 1
    %p96 = scmp.ne.s32.totalorder %s91, %s93
    %p97 = scmp.eq.s32.totalorder %s10, 0
    %p98 = por %p96, %p97
    %p99 = scmp.ne.s32.totalorder %s91, %s93
    %p100 = scmp.eq.s32.totalorder %s15, 1
    %p101 = por %p99, %p100
    %p102 = scmp.ne.s32.totalorder %s93, %s94
    %p103 = scmp.eq.s32.totalorder %s15, 0
    %p104 = por %p102, %p103
    %p105 = scmp.ne.s32.totalorder %s93, %s94
    %p106 = scmp.eq.s32.totalorder %s16, 1
    %p107 = por %p105, %p106
    %p109 = scmp.ne.s32.totalorder %s94, %s108
    %p110 = scmp.eq.s32.totalorder %s16, 0
    %p111 = por %p109, %p110
    %s112 = ssub.s32 %s10, %s17
    %p113 = scmp.eq.s32.totalorder %s112, 0
    %s115 = sadd.s32 %s114, 1
    %s116 = scalar_select %p113, %s114, %s115
    %p119 = pneg %p113
    %p120 = scmp.eq.s32.totalorder %s10, 1
    %p121 = por %p119, %p120
    %p122 = scmp.ne.s32.totalorder %s114, %s117
    %p123 = scmp.eq.s32.totalorder %s10, 0
    %p124 = por %p122, %p123
    %p125 = scmp.ne.s32.totalorder %s114, %s117
    %p126 = scmp.eq.s32.totalorder %s15, 1
    %p127 = por %p125, %p126
    %p128 = scmp.ne.s32.totalorder %s117, %s118
    %p129 = scmp.eq.s32.totalorder %s15, 0
    %p130 = por %p128, %p129
    %p131 = scmp.ne.s32.totalorder %s117, %s118
    %p132 = scmp.eq.s32.totalorder %s16, 1
    %p133 = por %p131, %p132
    %p135 = scmp.ne.s32.totalorder %s118, %s134
    %p136 = scmp.eq.s32.totalorder %s16, 0
    %p137 = por %p135, %p136
    %p138 = scmp.le.s32.totalorder 1, %s10
    %p139 = scmp.lt.s32.totalorder %s10, 3
    %p140 = pnand %p138, %p139
    %p141 = pneg %p140
    // Predicated region
    $region9: #{pointpillar_forward.2} parent=5 // pred_check
      _
    $region10: #{pointpillar_forward.2} parent=5 // pred_check_branch
      %143 = sbr.rel (%p140) target = $region12
    $region11: #{pointpillar_forward.2} parent=5 // pred_region
      %s144 = ssub.s32 %s10, 1
      // Predicated region
      $region13: #{pointpillar_forward.2} parent=11 // pred_check
        %p145 = pneg %p83
      $region14: #{pointpillar_forward.2} parent=11 // pred_check_branch
        %147 = sbr.rel (%p145) target = $region16
      $region15: #{pointpillar_forward.2} parent=11 // pred_region
        _
      $region16: #{pointpillar_forward.2} parent=11 // pred_fallthru
        _
      // Predicated region
      $region17: #{pointpillar_forward.2} parent=11 // pred_check
        %p148 = pneg %p104
      $region18: #{pointpillar_forward.2} parent=11 // pred_check_branch
        %150 = sbr.rel (%p148) target = $region20
      $region19: #{pointpillar_forward.2} parent=11 // pred_region
        _
      $region20: #{pointpillar_forward.2} parent=11 // pred_fallthru
        _
    $region12: #{pointpillar_forward.2} parent=5 // pred_fallthru
      _
    %p151 = scmp.lt.s32.totalorder %s10, 2
    // Predicated region
    $region21: #{pointpillar_forward.2} parent=5 // pred_check
      %p152 = pneg %p151
    $region22: #{pointpillar_forward.2} parent=5 // pred_check_branch
      %154 = sbr.rel (%p152) target = $region24
    $region23: #{pointpillar_forward.2} parent=5 // pred_region
      // Predicated region
      $region25: #{pointpillar_forward.2} parent=23 // pred_check
        %p155 = pneg %p30
      $region26: #{pointpillar_forward.2} parent=23 // pred_check_branch
        %157 = sbr.rel (%p155) target = $region28
      $region27: #{pointpillar_forward.2} parent=23 // pred_region
        %s158 = smul.u32 32, %s10
        %p159 = scmp.lt.s32.totalorder %s158, 63
        %s160 = scalar_select %p159, %s158, 63
        %s161 = smul.addr %s160, 4
        %s162 = scalar_lea.vmem %s0, %s161
        %s163 = smul.u32 32, %s10
      $region28: #{pointpillar_forward.2} parent=23 // pred_fallthru
        _
      // Predicated region
      $region29: #{pointpillar_forward.2} parent=23 // pred_check
        %p164 = pneg %p56
      $region30: #{pointpillar_forward.2} parent=23 // pred_check_branch
        %166 = sbr.rel (%p164) target = $region32
      $region31: #{pointpillar_forward.2} parent=23 // pred_region
        %s167 = smul.u32 32, %s10
        %p168 = scmp.lt.s32.totalorder %s167, 63
        %s169 = scalar_select %p168, %s167, 63
        %s170 = smul.addr %s169, 2
        %s171 = smul.addr %s170, 4
        %s172 = scalar_lea.vmem %s1, %s171
        %s173 = smul.u32 32, %s10
      $region32: #{pointpillar_forward.2} parent=23 // pred_fallthru
        _
    $region24: #{pointpillar_forward.2} parent=5 // pred_fallthru
      _
    %p174 = scmp.le.s32.totalorder 1, %s10
    %p175 = scmp.lt.s32.totalorder %s10, 3
    %p176 = pnand %p174, %p175
    %p177 = pneg %p176
    // Predicated region
    $region33: #{pointpillar_forward.2} parent=5 // pred_check
      _
    $region34: #{pointpillar_forward.2} parent=5 // pred_check_branch
      %179 = sbr.rel (%p176) target = $region36
    $region35: #{pointpillar_forward.2} parent=5 // pred_region
      %s180 = ssub.s32 %s10, 1
      %s181 = smul.u32 32, %s15
      %p182 = scmp.lt.s32.totalorder %s181, 63
      %s183 = scalar_select %p182, %s181, 63
      %s184 = smul.addr %s183, 4
      %s185 = scalar_lea.vmem %s0, %s184
      %p186 = pneg %p36
      %p187 = pneg %p33
      %s188 = smul.u32 32, %s15
      %p189 = scmp.lt.s32.totalorder %s188, 63
      %s190 = scalar_select %p189, %s188, 63
      %s191 = smul.addr %s190, 2
      %s192 = smul.addr %s191, 4
      %s193 = scalar_lea.vmem %s1, %s192
      %p194 = pneg %p62
      %p195 = pneg %p59
      %p196 = pneg %p83
      %p197 = pneg %p80
      %p198 = pneg %p104
      %p199 = pneg %p101
      %p200 = pneg %p130
      %p201 = pneg %p127
      %s202 = smul.u32 32, %s15
      %p203 = scmp.lt.s32.totalorder %s202, 63
      %s204 = scalar_select %p203, %s202, 63
      %s205 = smul.addr %s204, 4
      %s206 = scalar_lea.vmem %s4, %s205
      %s207 = smul.u32 32, %s15
      %p208 = scmp.lt.s32.totalorder %s207, 63
      %s209 = scalar_select %p208, %s207, 63
      %s210 = smul.addr %s209, 4
      %s211 = scalar_lea.vmem %s0, %s210
      %s212 = smul.u32 32, %s15
      %s213 = smul.u32 32, %s15
      %p214 = scmp.lt.s32.totalorder %s213, 63
      %s215 = scalar_select %p214, %s213, 63
      %s216 = smul.addr %s215, 2
      %s217 = smul.addr %s216, 4
      %s218 = scalar_lea.vmem %s1, %s217
      %s219 = smul.u32 32, %s15
      %s220 = smul.u32 32, %s15
      %p221 = scmp.lt.s32.totalorder %s220, 63
      %s222 = scalar_select %p221, %s220, 63
      %s223 = smul.addr %s222, 4
      %s224 = scalar_lea.vmem %s4, %s223
      %s225 = smul.u32 32, %s15
      %v227 = vld [vmem:[%s211] sm:$0xf]
      %v228 = vld [vmem:[%s211 + $0x4] sm:$0xf]
      %v229 = vld [vmem:[%s211 + $0x8] sm:$0xf]
      %v230 = vld [vmem:[%s211 + $0xc] sm:$0xf]
      %v231 = vld [vmem:[%s211 + $0x10] sm:$0xf]
      %v232 = vld [vmem:[%s211 + $0x14] sm:$0xf]
      %v233 = vld [vmem:[%s211 + $0x18] sm:$0xf]
      %v234 = vld [vmem:[%s211 + $0x1c] sm:$0xf]
      %v235 = vld [vmem:[%s211 + $0x20] sm:$0xf]
      %v236 = vld [vmem:[%s211 + $0x24] sm:$0xf]
      %v237 = vld [vmem:[%s211 + $0x28] sm:$0xf]
      %v238 = vld [vmem:[%s211 + $0x2c] sm:$0xf]
      %v239 = vld [vmem:[%s211 + $0x30] sm:$0xf]
      %v240 = vld [vmem:[%s211 + $0x34] sm:$0xf]
      %v241 = vld [vmem:[%s211 + $0x38] sm:$0xf]
      %v242 = vld [vmem:[%s211 + $0x3c] sm:$0xf]
      %v243 = vld [vmem:[%s211 + $0x40] sm:$0xf]
      %v244 = vld [vmem:[%s211 + $0x44] sm:$0xf]
      %v245 = vld [vmem:[%s211 + $0x48] sm:$0xf]
      %v246 = vld [vmem:[%s211 + $0x4c] sm:$0xf]
      %v247 = vld [vmem:[%s211 + $0x50] sm:$0xf]
      %v248 = vld [vmem:[%s211 + $0x54] sm:$0xf]
      %v249 = vld [vmem:[%s211 + $0x58] sm:$0xf]
      %v250 = vld [vmem:[%s211 + $0x5c] sm:$0xf]
      %v251 = vld [vmem:[%s211 + $0x60] sm:$0xf]
      %v252 = vld [vmem:[%s211 + $0x64] sm:$0xf]
      %v253 = vld [vmem:[%s211 + $0x68] sm:$0xf]
      %v254 = vld [vmem:[%s211 + $0x6c] sm:$0xf]
      %v255 = vld [vmem:[%s211 + $0x70] sm:$0xf]
      %v256 = vld [vmem:[%s211 + $0x74] sm:$0xf]
      %v257 = vld [vmem:[%s211 + $0x78] sm:$0xf]
      %v258 = vld [vmem:[%s211 + $0x7c] sm:$0xf]
      %v259 = vld [vmem:[%s2] sm:$0xff]
      %v260 = vld [vmem:[%s2 + $0x8] sm:$0xff]
      %v261 = vld [vmem:[%s2 + $0x10] sm:$0xff]
      %v262 = vld [vmem:[%s2 + $0x18] sm:$0xff]
      %v263 = vld [vmem:[%s2 + $0x20] sm:$0xff]
      %v264 = vld [vmem:[%s2 + $0x28] sm:$0xff]
      %v265 = vld [vmem:[%s2 + $0x30] sm:$0xff]
      %v266 = vld [vmem:[%s2 + $0x38] sm:$0xff]
      %v267 = vld [vmem:[%s2 + $0x40] sm:$0xff]
      %v268 = vld [vmem:[%s2 + $0x48] sm:$0xff]
      %v269 = vld [vmem:[%s2 + $0x50] sm:$0xff]
      %v270 = vld [vmem:[%s2 + $0x58] sm:$0xff]
      %v271 = vld [vmem:[%s2 + $0x60] sm:$0xff]
      %v272 = vld [vmem:[%s2 + $0x68] sm:$0xff]
      %v273 = vld [vmem:[%s2 + $0x70] sm:$0xff]
      %v274 = vld [vmem:[%s2 + $0x78] sm:$0xff]
      %v275 = vld [vmem:[%s3] sm:$0x3]
      %v277 = vlaneseq
      %v278 = vshrl.u32 %v277, 7
      %v279 = vsub.s32 0, %v278
      %v280 = vrot.slane %v275, %v279
      %v281 = vlaneseq
      %v282 = vshrl.u32 %v281, 7
      %v283 = vsub.s32 1, %v282
      %v284 = vrot.slane %v275, %v283
      %v319 = vunpack.c.l.b16 %v227
      %v320 = vunpack.c.l.b16 %v228
      %v321 = vunpack.c.l.b16 %v229
      %v322 = vunpack.c.l.b16 %v230
      %v323 = vunpack.c.l.b16 %v231
      %v324 = vunpack.c.l.b16 %v232
      %v325 = vunpack.c.l.b16 %v233
      %v326 = vunpack.c.l.b16 %v234
      %v327 = vunpack.c.l.b16 %v235
      %v328 = vunpack.c.l.b16 %v236
      %v329 = vunpack.c.l.b16 %v237
      %v330 = vunpack.c.l.b16 %v238
      %v331 = vunpack.c.l.b16 %v239
      %v332 = vunpack.c.l.b16 %v240
      %v333 = vunpack.c.l.b16 %v241
      %v334 = vunpack.c.l.b16 %v242
      %v335 = vunpack.c.l.b16 %v243
      %v336 = vunpack.c.l.b16 %v244
      %v337 = vunpack.c.l.b16 %v245
      %v338 = vunpack.c.l.b16 %v246
      %v339 = vunpack.c.l.b16 %v247
      %v340 = vunpack.c.l.b16 %v248
      %v341 = vunpack.c.l.b16 %v249
      %v342 = vunpack.c.l.b16 %v250
      %v343 = vunpack.c.l.b16 %v251
      %v344 = vunpack.c.l.b16 %v252
      %v345 = vunpack.c.l.b16 %v253
      %v346 = vunpack.c.l.b16 %v254
      %v347 = vunpack.c.l.b16 %v255
      %v348 = vunpack.c.l.b16 %v256
      %v349 = vunpack.c.l.b16 %v257
      %v350 = vunpack.c.l.b16 %v258
      %v351 = vpack.c.b16 %v320, %v319
      %v352 = vpack.c.b16 %v322, %v321
      %v353 = vpack.c.b16 %v324, %v323
      %v354 = vpack.c.b16 %v326, %v325
      %v355 = vpack.c.b16 %v328, %v327
      %v356 = vpack.c.b16 %v330, %v329
      %v357 = vpack.c.b16 %v332, %v331
      %v358 = vpack.c.b16 %v334, %v333
      %v359 = vpack.c.b16 %v336, %v335
      %v360 = vpack.c.b16 %v338, %v337
      %v361 = vpack.c.b16 %v340, %v339
      %v362 = vpack.c.b16 %v342, %v341
      %v363 = vpack.c.b16 %v344, %v343
      %v364 = vpack.c.b16 %v346, %v345
      %v365 = vpack.c.b16 %v348, %v347
      %v366 = vpack.c.b16 %v350, %v349
      %v399 = vunpack.c.l.b16 %v259
      %v400 = vunpack.c.h.b16 %v259
      %v401 = vunpack.c.l.b16 %v260
      %v402 = vunpack.c.h.b16 %v260
      %v403 = vunpack.c.l.b16 %v261
      %v404 = vunpack.c.h.b16 %v261
      %v405 = vunpack.c.l.b16 %v262
      %v406 = vunpack.c.h.b16 %v262
      %v407 = vunpack.c.l.b16 %v263
      %v408 = vunpack.c.h.b16 %v263
      %v409 = vunpack.c.l.b16 %v264
      %v410 = vunpack.c.h.b16 %v264
      %v411 = vunpack.c.l.b16 %v265
      %v412 = vunpack.c.h.b16 %v265
      %v413 = vunpack.c.l.b16 %v266
      %v414 = vunpack.c.h.b16 %v266
      %v415 = vunpack.c.l.b16 %v267
      %v416 = vunpack.c.h.b16 %v267
      %v417 = vunpack.c.l.b16 %v268
      %v418 = vunpack.c.h.b16 %v268
      %v419 = vunpack.c.l.b16 %v269
      %v420 = vunpack.c.h.b16 %v269
      %v421 = vunpack.c.l.b16 %v270
      %v422 = vunpack.c.h.b16 %v270
      %v423 = vunpack.c.l.b16 %v271
      %v424 = vunpack.c.h.b16 %v271
      %v425 = vunpack.c.l.b16 %v272
      %v426 = vunpack.c.h.b16 %v272
      %v427 = vunpack.c.l.b16 %v273
      %v428 = vunpack.c.h.b16 %v273
      %v429 = vunpack.c.l.b16 %v274
      %v430 = vunpack.c.h.b16 %v274
      %v431 = vpack.c.b16 %v401, %v399
      %v432 = vpack.c.b16 %v402, %v400
      %v433 = vpack.c.b16 %v405, %v403
      %v434 = vpack.c.b16 %v406, %v404
      %v435 = vpack.c.b16 %v409, %v407
      %v436 = vpack.c.b16 %v410, %v408
      %v437 = vpack.c.b16 %v413, %v411
      %v438 = vpack.c.b16 %v414, %v412
      %v439 = vpack.c.b16 %v417, %v415
      %v440 = vpack.c.b16 %v418, %v416
      %v441 = vpack.c.b16 %v421, %v419
      %v442 = vpack.c.b16 %v422, %v420
      %v443 = vpack.c.b16 %v425, %v423
      %v444 = vpack.c.b16 %v426, %v424
      %v445 = vpack.c.b16 %v429, %v427
      %v446 = vpack.c.b16 %v430, %v428
      %463 = vmatprep.subr.bf16.mxu0 %v446
      %464 = vmatpush1.bf16.msra.mxu0 %v445
      %465 = vmatprep.subr.bf16.mxu0 %v444
      %466 = vmatpush1.bf16.msra.mxu0 %v443
      %467 = vmatprep.subr.bf16.mxu0 %v442
      %468 = vmatpush1.bf16.msra.mxu0 %v441
      %469 = vmatprep.subr.bf16.mxu0 %v440
      %470 = vmatpush1.bf16.msra.mxu0 %v439
      %471 = vmatprep.subr.bf16.mxu0 %v438
      %472 = vmatpush1.bf16.msra.mxu0 %v437
      %473 = vmatprep.subr.bf16.mxu0 %v436
      %474 = vmatpush1.bf16.msra.mxu0 %v435
      %475 = vmatprep.subr.bf16.mxu0 %v434
      %476 = vmatpush1.bf16.msra.mxu0 %v433
      %477 = vmatprep.subr.bf16.mxu0 %v432
      %478 = vmatpush1.bf16.msra.mxu0 %v431
      %479 = vmatprep.subr.bf16.mxu0 0
      %480 = vmatpush2.bf16.msra.mxu0 0
      %481 = vmatprep.subr.bf16.mxu0 0
      %482 = vmatpush2.bf16.msra.mxu0 0
      %483 = vmatprep.subr.bf16.mxu0 0
      %484 = vmatpush2.bf16.msra.mxu0 0
      %485 = vmatprep.subr.bf16.mxu0 0
      %486 = vmatpush2.bf16.msra.mxu0 0
      %487 = vmatprep.subr.bf16.mxu0 0
      %488 = vmatpush2.bf16.msra.mxu0 0
      %489 = vmatprep.subr.bf16.mxu0 0
      %490 = vmatpush2.bf16.msra.mxu0 0
      %491 = vmatprep.subr.bf16.mxu0 0
      %492 = vmatpush2.bf16.msra.mxu0 0
      %493 = vmatprep.subr.bf16.mxu0 0
      %494 = vmatpush2.bf16.msra.mxu0 0
      %495 = vmatprep.mubr.bf16.mxu0 0
      %496 = vmatmul.mubr.bf16.gmra.mxu0 %v351
      %v497 = vpop.f32.mrf.mxu0
      %v498 = vadd.f32 %v280, %v497
      %v499 = vpop.f32.mrf.mxu0
      %v500 = vadd.f32 %v284, %v499
      %v501 = vpop.f32.mrf.mxu0
      %v502 = vadd.f32 %v280, %v501
      %v503 = vpop.f32.mrf.mxu0
      %v504 = vadd.f32 %v284, %v503
      %505 = vmatprep.mubr.bf16.mxu0 0
      %506 = vmatmul.mubr.bf16.gmra.mxu0 %v352
      %v507 = vpop.f32.mrf.mxu0
      %v508 = vadd.f32 %v280, %v507
      %v509 = vpop.f32.mrf.mxu0
      %v510 = vadd.f32 %v284, %v509
      %v511 = vpop.f32.mrf.mxu0
      %v512 = vadd.f32 %v280, %v511
      %v513 = vpop.f32.mrf.mxu0
      %v514 = vadd.f32 %v284, %v513
      %515 = vmatprep.mubr.bf16.mxu0 0
      %516 = vmatmul.mubr.bf16.gmra.mxu0 %v353
      %v517 = vpop.f32.mrf.mxu0
      %v518 = vadd.f32 %v280, %v517
      %v519 = vpop.f32.mrf.mxu0
      %v520 = vadd.f32 %v284, %v519
      %v521 = vpop.f32.mrf.mxu0
      %v522 = vadd.f32 %v280, %v521
      %v523 = vpop.f32.mrf.mxu0
      %v524 = vadd.f32 %v284, %v523
      %525 = vmatprep.mubr.bf16.mxu0 0
      %526 = vmatmul.mubr.bf16.gmra.mxu0 %v354
      %v527 = vpop.f32.mrf.mxu0
      %v528 = vadd.f32 %v280, %v527
      %v529 = vpop.f32.mrf.mxu0
      %v530 = vadd.f32 %v284, %v529
      %v531 = vpop.f32.mrf.mxu0
      %v532 = vadd.f32 %v280, %v531
      %v533 = vpop.f32.mrf.mxu0
      %v534 = vadd.f32 %v284, %v533
      %535 = vmatprep.mubr.bf16.mxu0 0
      %536 = vmatmul.mubr.bf16.gmra.mxu0 %v355
      %v537 = vpop.f32.mrf.mxu0
      %v538 = vadd.f32 %v280, %v537
      %v539 = vpop.f32.mrf.mxu0
      %v540 = vadd.f32 %v284, %v539
      %v541 = vpop.f32.mrf.mxu0
      %v542 = vadd.f32 %v280, %v541
      %v543 = vpop.f32.mrf.mxu0
      %v544 = vadd.f32 %v284, %v543
      %545 = vmatprep.mubr.bf16.mxu0 0
      %546 = vmatmul.mubr.bf16.gmra.mxu0 %v356
      %v547 = vpop.f32.mrf.mxu0
      %v548 = vadd.f32 %v280, %v547
      %v549 = vpop.f32.mrf.mxu0
      %v550 = vadd.f32 %v284, %v549
      %v551 = vpop.f32.mrf.mxu0
      %v552 = vadd.f32 %v280, %v551
      %v553 = vpop.f32.mrf.mxu0
      %v554 = vadd.f32 %v284, %v553
      %555 = vmatprep.mubr.bf16.mxu0 0
      %556 = vmatmul.mubr.bf16.gmra.mxu0 %v357
      %v557 = vpop.f32.mrf.mxu0
      %v558 = vadd.f32 %v280, %v557
      %v559 = vpop.f32.mrf.mxu0
      %v560 = vadd.f32 %v284, %v559
      %v561 = vpop.f32.mrf.mxu0
      %v562 = vadd.f32 %v280, %v561
      %v563 = vpop.f32.mrf.mxu0
      %v564 = vadd.f32 %v284, %v563
      %565 = vmatprep.mubr.bf16.mxu0 0
      %566 = vmatmul.mubr.bf16.gmra.mxu0 %v358
      %v567 = vpop.f32.mrf.mxu0
      %v568 = vadd.f32 %v280, %v567
      %v569 = vpop.f32.mrf.mxu0
      %v570 = vadd.f32 %v284, %v569
      %v571 = vpop.f32.mrf.mxu0
      %v572 = vadd.f32 %v280, %v571
      %v573 = vpop.f32.mrf.mxu0
      %v574 = vadd.f32 %v284, %v573
      %575 = vmatprep.mubr.bf16.mxu0 0
      %576 = vmatmul.mubr.bf16.gmra.mxu0 %v359
      %v577 = vpop.f32.mrf.mxu0
      %v578 = vadd.f32 %v280, %v577
      %v579 = vpop.f32.mrf.mxu0
      %v580 = vadd.f32 %v284, %v579
      %v581 = vpop.f32.mrf.mxu0
      %v582 = vadd.f32 %v280, %v581
      %v583 = vpop.f32.mrf.mxu0
      %v584 = vadd.f32 %v284, %v583
      %585 = vmatprep.mubr.bf16.mxu0 0
      %586 = vmatmul.mubr.bf16.gmra.mxu0 %v360
      %v587 = vpop.f32.mrf.mxu0
      %v588 = vadd.f32 %v280, %v587
      %v589 = vpop.f32.mrf.mxu0
      %v590 = vadd.f32 %v284, %v589
      %v591 = vpop.f32.mrf.mxu0
      %v592 = vadd.f32 %v280, %v591
      %v593 = vpop.f32.mrf.mxu0
      %v594 = vadd.f32 %v284, %v593
      %595 = vmatprep.mubr.bf16.mxu0 0
      %596 = vmatmul.mubr.bf16.gmra.mxu0 %v361
      %v597 = vpop.f32.mrf.mxu0
      %v598 = vadd.f32 %v280, %v597
      %v599 = vpop.f32.mrf.mxu0
      %v600 = vadd.f32 %v284, %v599
      %v601 = vpop.f32.mrf.mxu0
      %v602 = vadd.f32 %v280, %v601
      %v603 = vpop.f32.mrf.mxu0
      %v604 = vadd.f32 %v284, %v603
      %605 = vmatprep.mubr.bf16.mxu0 0
      %606 = vmatmul.mubr.bf16.gmra.mxu0 %v362
      %v607 = vpop.f32.mrf.mxu0
      %v608 = vadd.f32 %v280, %v607
      %v609 = vpop.f32.mrf.mxu0
      %v610 = vadd.f32 %v284, %v609
      %v611 = vpop.f32.mrf.mxu0
      %v612 = vadd.f32 %v280, %v611
      %v613 = vpop.f32.mrf.mxu0
      %v614 = vadd.f32 %v284, %v613
      %615 = vmatprep.mubr.bf16.mxu0 0
      %616 = vmatmul.mubr.bf16.gmra.mxu0 %v363
      %v617 = vpop.f32.mrf.mxu0
      %v618 = vadd.f32 %v280, %v617
      %v619 = vpop.f32.mrf.mxu0
      %v620 = vadd.f32 %v284, %v619
      %v621 = vpop.f32.mrf.mxu0
      %v622 = vadd.f32 %v280, %v621
      %v623 = vpop.f32.mrf.mxu0
      %v624 = vadd.f32 %v284, %v623
      %625 = vmatprep.mubr.bf16.mxu0 0
      %626 = vmatmul.mubr.bf16.gmra.mxu0 %v364
      %v627 = vpop.f32.mrf.mxu0
      %v628 = vadd.f32 %v280, %v627
      %v629 = vpop.f32.mrf.mxu0
      %v630 = vadd.f32 %v284, %v629
      %v631 = vpop.f32.mrf.mxu0
      %v632 = vadd.f32 %v280, %v631
      %v633 = vpop.f32.mrf.mxu0
      %v634 = vadd.f32 %v284, %v633
      %635 = vmatprep.mubr.bf16.mxu0 0
      %636 = vmatmul.mubr.bf16.gmra.mxu0 %v365
      %v637 = vpop.f32.mrf.mxu0
      %v638 = vadd.f32 %v280, %v637
      %v639 = vpop.f32.mrf.mxu0
      %v640 = vadd.f32 %v284, %v639
      %v641 = vpop.f32.mrf.mxu0
      %v642 = vadd.f32 %v280, %v641
      %v643 = vpop.f32.mrf.mxu0
      %v644 = vadd.f32 %v284, %v643
      %645 = vmatprep.mubr.bf16.mxu0 0
      %646 = vmatmul.mubr.bf16.gmra.mxu0 %v366
      %v647 = vpop.f32.mrf.mxu0
      %v648 = vadd.f32 %v280, %v647
      %v649 = vpop.f32.mrf.mxu0
      %v650 = vadd.f32 %v284, %v649
      %v651 = vpop.f32.mrf.mxu0
      %v652 = vadd.f32 %v280, %v651
      %v653 = vpop.f32.mrf.mxu0
      %v654 = vadd.f32 %v284, %v653
      %655 = vdwg.mxu0
      %v656 = vmax.f32 %v498, 0.0
      %v657 = vmax.f32 %v500, 0.0
      %v658 = vmax.f32 %v502, 0.0
      %v659 = vmax.f32 %v504, 0.0
      %v660 = vmax.f32 %v508, 0.0
      %v661 = vmax.f32 %v510, 0.0
      %v662 = vmax.f32 %v512, 0.0
      %v663 = vmax.f32 %v514, 0.0
      %v664 = vmax.f32 %v518, 0.0
      %v665 = vmax.f32 %v520, 0.0
      %v666 = vmax.f32 %v522, 0.0
      %v667 = vmax.f32 %v524, 0.0
      %v668 = vmax.f32 %v528, 0.0
      %v669 = vmax.f32 %v530, 0.0
      %v670 = vmax.f32 %v532, 0.0
      %v671 = vmax.f32 %v534, 0.0
      %v672 = vmax.f32 %v538, 0.0
      %v673 = vmax.f32 %v540, 0.0
      %v674 = vmax.f32 %v542, 0.0
      %v675 = vmax.f32 %v544, 0.0
      %v676 = vmax.f32 %v548, 0.0
      %v677 = vmax.f32 %v550, 0.0
      %v678 = vmax.f32 %v552, 0.0
      %v679 = vmax.f32 %v554, 0.0
      %v680 = vmax.f32 %v558, 0.0
      %v681 = vmax.f32 %v560, 0.0
      %v682 = vmax.f32 %v562, 0.0
      %v683 = vmax.f32 %v564, 0.0
      %v684 = vmax.f32 %v568, 0.0
      %v685 = vmax.f32 %v570, 0.0
      %v686 = vmax.f32 %v572, 0.0
      %v687 = vmax.f32 %v574, 0.0
      %v688 = vmax.f32 %v578, 0.0
      %v689 = vmax.f32 %v580, 0.0
      %v690 = vmax.f32 %v582, 0.0
      %v691 = vmax.f32 %v584, 0.0
      %v692 = vmax.f32 %v588, 0.0
      %v693 = vmax.f32 %v590, 0.0
      %v694 = vmax.f32 %v592, 0.0
      %v695 = vmax.f32 %v594, 0.0
      %v696 = vmax.f32 %v598, 0.0
      %v697 = vmax.f32 %v600, 0.0
      %v698 = vmax.f32 %v602, 0.0
      %v699 = vmax.f32 %v604, 0.0
      %v700 = vmax.f32 %v608, 0.0
      %v701 = vmax.f32 %v610, 0.0
      %v702 = vmax.f32 %v612, 0.0
      %v703 = vmax.f32 %v614, 0.0
      %v704 = vmax.f32 %v618, 0.0
      %v705 = vmax.f32 %v620, 0.0
      %v706 = vmax.f32 %v622, 0.0
      %v707 = vmax.f32 %v624, 0.0
      %v708 = vmax.f32 %v628, 0.0
      %v709 = vmax.f32 %v630, 0.0
      %v710 = vmax.f32 %v632, 0.0
      %v711 = vmax.f32 %v634, 0.0
      %v712 = vmax.f32 %v638, 0.0
      %v713 = vmax.f32 %v640, 0.0
      %v714 = vmax.f32 %v642, 0.0
      %v715 = vmax.f32 %v644, 0.0
      %v716 = vmax.f32 %v648, 0.0
      %v717 = vmax.f32 %v650, 0.0
      %v718 = vmax.f32 %v652, 0.0
      %v719 = vmax.f32 %v654, 0.0
      %v720 = vld [vmem:[%s218] sm:$0xff]
      %v721 = vld [vmem:[%s218 + $0x8] sm:$0xff]
      %v722 = vld [vmem:[%s218 + $0x10] sm:$0xff]
      %v723 = vld [vmem:[%s218 + $0x18] sm:$0xff]
      %v724 = vld [vmem:[%s218 + $0x20] sm:$0xff]
      %v725 = vld [vmem:[%s218 + $0x28] sm:$0xff]
      %v726 = vld [vmem:[%s218 + $0x30] sm:$0xff]
      %v727 = vld [vmem:[%s218 + $0x38] sm:$0xff]
      %v728 = vld [vmem:[%s218 + $0x40] sm:$0xff]
      %v729 = vld [vmem:[%s218 + $0x48] sm:$0xff]
      %v730 = vld [vmem:[%s218 + $0x50] sm:$0xff]
      %v731 = vld [vmem:[%s218 + $0x58] sm:$0xff]
      %v732 = vld [vmem:[%s218 + $0x60] sm:$0xff]
      %v733 = vld [vmem:[%s218 + $0x68] sm:$0xff]
      %v734 = vld [vmem:[%s218 + $0x70] sm:$0xff]
      %v735 = vld [vmem:[%s218 + $0x78] sm:$0xff]
      %v736 = vld [vmem:[%s218 + $0x80] sm:$0xff]
      %v737 = vld [vmem:[%s218 + $0x88] sm:$0xff]
      %v738 = vld [vmem:[%s218 + $0x90] sm:$0xff]
      %v739 = vld [vmem:[%s218 + $0x98] sm:$0xff]
      %v740 = vld [vmem:[%s218 + $0xa0] sm:$0xff]
      %v741 = vld [vmem:[%s218 + $0xa8] sm:$0xff]
      %v742 = vld [vmem:[%s218 + $0xb0] sm:$0xff]
      %v743 = vld [vmem:[%s218 + $0xb8] sm:$0xff]
      %v744 = vld [vmem:[%s218 + $0xc0] sm:$0xff]
      %v745 = vld [vmem:[%s218 + $0xc8] sm:$0xff]
      %v746 = vld [vmem:[%s218 + $0xd0] sm:$0xff]
      %v747 = vld [vmem:[%s218 + $0xd8] sm:$0xff]
      %v748 = vld [vmem:[%s218 + $0xe0] sm:$0xff]
      %v749 = vld [vmem:[%s218 + $0xe8] sm:$0xff]
      %v750 = vld [vmem:[%s218 + $0xf0] sm:$0xff]
      %v751 = vld [vmem:[%s218 + $0xf8] sm:$0xff]
      %v752 = vunpack.c.l.bf16 %v720
      %v753 = vunpack.c.h.bf16 %v720
      %v754 = vunpack.c.l.bf16 %v721
      %v755 = vunpack.c.h.bf16 %v721
      %v756 = vunpack.c.l.bf16 %v722
      %v757 = vunpack.c.h.bf16 %v722
      %v758 = vunpack.c.l.bf16 %v723
      %v759 = vunpack.c.h.bf16 %v723
      %v760 = vunpack.c.l.bf16 %v724
      %v761 = vunpack.c.h.bf16 %v724
      %v762 = vunpack.c.l.bf16 %v725
      %v763 = vunpack.c.h.bf16 %v725
      %v764 = vunpack.c.l.bf16 %v726
      %v765 = vunpack.c.h.bf16 %v726
      %v766 = vunpack.c.l.bf16 %v727
      %v767 = vunpack.c.h.bf16 %v727
      %v768 = vunpack.c.l.bf16 %v728
      %v769 = vunpack.c.h.bf16 %v728
      %v770 = vunpack.c.l.bf16 %v729
      %v771 = vunpack.c.h.bf16 %v729
      %v772 = vunpack.c.l.bf16 %v730
      %v773 = vunpack.c.h.bf16 %v730
      %v774 = vunpack.c.l.bf16 %v731
      %v775 = vunpack.c.h.bf16 %v731
      %v776 = vunpack.c.l.bf16 %v732
      %v777 = vunpack.c.h.bf16 %v732
      %v778 = vunpack.c.l.bf16 %v733
      %v779 = vunpack.c.h.bf16 %v733
      %v780 = vunpack.c.l.bf16 %v734
      %v781 = vunpack.c.h.bf16 %v734
      %v782 = vunpack.c.l.bf16 %v735
      %v783 = vunpack.c.h.bf16 %v735
      %v784 = vunpack.c.l.bf16 %v736
      %v785 = vunpack.c.h.bf16 %v736
      %v786 = vunpack.c.l.bf16 %v737
      %v787 = vunpack.c.h.bf16 %v737
      %v788 = vunpack.c.l.bf16 %v738
      %v789 = vunpack.c.h.bf16 %v738
      %v790 = vunpack.c.l.bf16 %v739
      %v791 = vunpack.c.h.bf16 %v739
      %v792 = vunpack.c.l.bf16 %v740
      %v793 = vunpack.c.h.bf16 %v740
      %v794 = vunpack.c.l.bf16 %v741
      %v795 = vunpack.c.h.bf16 %v741
      %v796 = vunpack.c.l.bf16 %v742
      %v797 = vunpack.c.h.bf16 %v742
      %v798 = vunpack.c.l.bf16 %v743
      %v799 = vunpack.c.h.bf16 %v743
      %v800 = vunpack.c.l.bf16 %v744
      %v801 = vunpack.c.h.bf16 %v744
      %v802 = vunpack.c.l.bf16 %v745
      %v803 = vunpack.c.h.bf16 %v745
      %v804 = vunpack.c.l.bf16 %v746
      %v805 = vunpack.c.h.bf16 %v746
      %v806 = vunpack.c.l.bf16 %v747
      %v807 = vunpack.c.h.bf16 %v747
      %v808 = vunpack.c.l.bf16 %v748
      %v809 = vunpack.c.h.bf16 %v748
      %v810 = vunpack.c.l.bf16 %v749
      %v811 = vunpack.c.h.bf16 %v749
      %v812 = vunpack.c.l.bf16 %v750
      %v813 = vunpack.c.h.bf16 %v750
      %v814 = vunpack.c.l.bf16 %v751
      %v815 = vunpack.c.h.bf16 %v751
      %v816 = vmul.f32 %v656, %v752
      %v817 = vmul.f32 %v657, %v753
      %v818 = vmul.f32 %v658, %v754
      %v819 = vmul.f32 %v659, %v755
      %v820 = vmul.f32 %v660, %v756
      %v821 = vmul.f32 %v661, %v757
      %v822 = vmul.f32 %v662, %v758
      %v823 = vmul.f32 %v663, %v759
      %v824 = vmul.f32 %v664, %v760
      %v825 = vmul.f32 %v665, %v761
      %v826 = vmul.f32 %v666, %v762
      %v827 = vmul.f32 %v667, %v763
      %v828 = vmul.f32 %v668, %v764
      %v829 = vmul.f32 %v669, %v765
      %v830 = vmul.f32 %v670, %v766
      %v831 = vmul.f32 %v671, %v767
      %v832 = vmul.f32 %v672, %v768
      %v833 = vmul.f32 %v673, %v769
      %v834 = vmul.f32 %v674, %v770
      %v835 = vmul.f32 %v675, %v771
      %v836 = vmul.f32 %v676, %v772
      %v837 = vmul.f32 %v677, %v773
      %v838 = vmul.f32 %v678, %v774
      %v839 = vmul.f32 %v679, %v775
      %v840 = vmul.f32 %v680, %v776
      %v841 = vmul.f32 %v681, %v777
      %v842 = vmul.f32 %v682, %v778
      %v843 = vmul.f32 %v683, %v779
      %v844 = vmul.f32 %v684, %v780
      %v845 = vmul.f32 %v685, %v781
      %v846 = vmul.f32 %v686, %v782
      %v847 = vmul.f32 %v687, %v783
      %v848 = vmul.f32 %v688, %v784
      %v849 = vmul.f32 %v689, %v785
      %v850 = vmul.f32 %v690, %v786
      %v851 = vmul.f32 %v691, %v787
      %v852 = vmul.f32 %v692, %v788
      %v853 = vmul.f32 %v693, %v789
      %v854 = vmul.f32 %v694, %v790
      %v855 = vmul.f32 %v695, %v791
      %v856 = vmul.f32 %v696, %v792
      %v857 = vmul.f32 %v697, %v793
      %v858 = vmul.f32 %v698, %v794
      %v859 = vmul.f32 %v699, %v795
      %v860 = vmul.f32 %v700, %v796
      %v861 = vmul.f32 %v701, %v797
      %v862 = vmul.f32 %v702, %v798
      %v863 = vmul.f32 %v703, %v799
      %v864 = vmul.f32 %v704, %v800
      %v865 = vmul.f32 %v705, %v801
      %v866 = vmul.f32 %v706, %v802
      %v867 = vmul.f32 %v707, %v803
      %v868 = vmul.f32 %v708, %v804
      %v869 = vmul.f32 %v709, %v805
      %v870 = vmul.f32 %v710, %v806
      %v871 = vmul.f32 %v711, %v807
      %v872 = vmul.f32 %v712, %v808
      %v873 = vmul.f32 %v713, %v809
      %v874 = vmul.f32 %v714, %v810
      %v875 = vmul.f32 %v715, %v811
      %v876 = vmul.f32 %v716, %v812
      %v877 = vmul.f32 %v717, %v813
      %v878 = vmul.f32 %v718, %v814
      %v879 = vmul.f32 %v719, %v815
      %v880 = vmax.f32 %v816, %v817
      %v881 = vmax.f32 %v818, %v819
      %v882 = vmax.f32 %v820, %v821
      %v883 = vmax.f32 %v822, %v823
      %v884 = vmax.f32 %v824, %v825
      %v885 = vmax.f32 %v826, %v827
      %v886 = vmax.f32 %v828, %v829
      %v887 = vmax.f32 %v830, %v831
      %v888 = vmax.f32 %v832, %v833
      %v889 = vmax.f32 %v834, %v835
      %v890 = vmax.f32 %v836, %v837
      %v891 = vmax.f32 %v838, %v839
      %v892 = vmax.f32 %v840, %v841
      %v893 = vmax.f32 %v842, %v843
      %v894 = vmax.f32 %v844, %v845
      %v895 = vmax.f32 %v846, %v847
      %v896 = vmax.f32 %v848, %v849
      %v897 = vmax.f32 %v850, %v851
      %v898 = vmax.f32 %v852, %v853
      %v899 = vmax.f32 %v854, %v855
      %v900 = vmax.f32 %v856, %v857
      %v901 = vmax.f32 %v858, %v859
      %v902 = vmax.f32 %v860, %v861
      %v903 = vmax.f32 %v862, %v863
      %v904 = vmax.f32 %v864, %v865
      %v905 = vmax.f32 %v866, %v867
      %v906 = vmax.f32 %v868, %v869
      %v907 = vmax.f32 %v870, %v871
      %v908 = vmax.f32 %v872, %v873
      %v909 = vmax.f32 %v874, %v875
      %v910 = vmax.f32 %v876, %v877
      %v911 = vmax.f32 %v878, %v879
      %944 = vrot.lane.b32.xlu0 %v880, 64
      %v945 = vpop.permute.xlu0 %944
      %946 = vrot.lane.b32.xlu0 %v881, 64
      %v947 = vpop.permute.xlu0 %946
      %948 = vrot.lane.b32.xlu0 %v882, 64
      %v949 = vpop.permute.xlu0 %948
      %950 = vrot.lane.b32.xlu0 %v883, 64
      %v951 = vpop.permute.xlu0 %950
      %952 = vrot.lane.b32.xlu0 %v884, 64
      %v953 = vpop.permute.xlu0 %952
      %954 = vrot.lane.b32.xlu0 %v885, 64
      %v955 = vpop.permute.xlu0 %954
      %956 = vrot.lane.b32.xlu0 %v886, 64
      %v957 = vpop.permute.xlu0 %956
      %958 = vrot.lane.b32.xlu0 %v887, 64
      %v959 = vpop.permute.xlu0 %958
      %960 = vrot.lane.b32.xlu0 %v888, 64
      %v961 = vpop.permute.xlu0 %960
      %962 = vrot.lane.b32.xlu0 %v889, 64
      %v963 = vpop.permute.xlu0 %962
      %964 = vrot.lane.b32.xlu0 %v890, 64
      %v965 = vpop.permute.xlu0 %964
      %966 = vrot.lane.b32.xlu0 %v891, 64
      %v967 = vpop.permute.xlu0 %966
      %968 = vrot.lane.b32.xlu0 %v892, 64
      %v969 = vpop.permute.xlu0 %968
      %970 = vrot.lane.b32.xlu0 %v893, 64
      %v971 = vpop.permute.xlu0 %970
      %972 = vrot.lane.b32.xlu0 %v894, 64
      %v973 = vpop.permute.xlu0 %972
      %974 = vrot.lane.b32.xlu0 %v895, 64
      %v975 = vpop.permute.xlu0 %974
      %976 = vrot.lane.b32.xlu0 %v896, 64
      %v977 = vpop.permute.xlu0 %976
      %978 = vrot.lane.b32.xlu0 %v897, 64
      %v979 = vpop.permute.xlu0 %978
      %980 = vrot.lane.b32.xlu0 %v898, 64
      %v981 = vpop.permute.xlu0 %980
      %982 = vrot.lane.b32.xlu0 %v899, 64
      %v983 = vpop.permute.xlu0 %982
      %984 = vrot.lane.b32.xlu0 %v900, 64
      %v985 = vpop.permute.xlu0 %984
      %986 = vrot.lane.b32.xlu0 %v901, 64
      %v987 = vpop.permute.xlu0 %986
      %988 = vrot.lane.b32.xlu0 %v902, 64
      %v989 = vpop.permute.xlu0 %988
      %990 = vrot.lane.b32.xlu0 %v903, 64
      %v991 = vpop.permute.xlu0 %990
      %992 = vrot.lane.b32.xlu0 %v904, 64
      %v993 = vpop.permute.xlu0 %992
      %994 = vrot.lane.b32.xlu0 %v905, 64
      %v995 = vpop.permute.xlu0 %994
      %996 = vrot.lane.b32.xlu0 %v906, 64
      %v997 = vpop.permute.xlu0 %996
      %998 = vrot.lane.b32.xlu0 %v907, 64
      %v999 = vpop.permute.xlu0 %998
      %1000 = vrot.lane.b32.xlu0 %v908, 64
      %v1001 = vpop.permute.xlu0 %1000
      %1002 = vrot.lane.b32.xlu0 %v909, 64
      %v1003 = vpop.permute.xlu0 %1002
      %1004 = vrot.lane.b32.xlu0 %v910, 64
      %v1005 = vpop.permute.xlu0 %1004
      %1006 = vrot.lane.b32.xlu0 %v911, 64
      %v1007 = vpop.permute.xlu0 %1006
      %v1040 = vmax.f32 %v880, %v945
      %v1041 = vmax.f32 %v881, %v947
      %v1042 = vmax.f32 %v882, %v949
      %v1043 = vmax.f32 %v883, %v951
      %v1044 = vmax.f32 %v884, %v953
      %v1045 = vmax.f32 %v885, %v955
      %v1046 = vmax.f32 %v886, %v957
      %v1047 = vmax.f32 %v887, %v959
      %v1048 = vmax.f32 %v888, %v961
      %v1049 = vmax.f32 %v889, %v963
      %v1050 = vmax.f32 %v890, %v965
      %v1051 = vmax.f32 %v891, %v967
      %v1052 = vmax.f32 %v892, %v969
      %v1053 = vmax.f32 %v893, %v971
      %v1054 = vmax.f32 %v894, %v973
      %v1055 = vmax.f32 %v895, %v975
      %v1056 = vmax.f32 %v896, %v977
      %v1057 = vmax.f32 %v897, %v979
      %v1058 = vmax.f32 %v898, %v981
      %v1059 = vmax.f32 %v899, %v983
      %v1060 = vmax.f32 %v900, %v985
      %v1061 = vmax.f32 %v901, %v987
      %v1062 = vmax.f32 %v902, %v989
      %v1063 = vmax.f32 %v903, %v991
      %v1064 = vmax.f32 %v904, %v993
      %v1065 = vmax.f32 %v905, %v995
      %v1066 = vmax.f32 %v906, %v997
      %v1067 = vmax.f32 %v907, %v999
      %v1068 = vmax.f32 %v908, %v1001
      %v1069 = vmax.f32 %v909, %v1003
      %v1070 = vmax.f32 %v910, %v1005
      %v1071 = vmax.f32 %v911, %v1007
      %1104 = vrot.lane.b32.xlu0 %v1040, 96
      %v1105 = vpop.permute.xlu0 %1104
      %1106 = vrot.lane.b32.xlu0 %v1041, 96
      %v1107 = vpop.permute.xlu0 %1106
      %1108 = vrot.lane.b32.xlu0 %v1042, 96
      %v1109 = vpop.permute.xlu0 %1108
      %1110 = vrot.lane.b32.xlu0 %v1043, 96
      %v1111 = vpop.permute.xlu0 %1110
      %1112 = vrot.lane.b32.xlu0 %v1044, 96
      %v1113 = vpop.permute.xlu0 %1112
      %1114 = vrot.lane.b32.xlu0 %v1045, 96
      %v1115 = vpop.permute.xlu0 %1114
      %1116 = vrot.lane.b32.xlu0 %v1046, 96
      %v1117 = vpop.permute.xlu0 %1116
      %1118 = vrot.lane.b32.xlu0 %v1047, 96
      %v1119 = vpop.permute.xlu0 %1118
      %1120 = vrot.lane.b32.xlu0 %v1048, 96
      %v1121 = vpop.permute.xlu0 %1120
      %1122 = vrot.lane.b32.xlu0 %v1049, 96
      %v1123 = vpop.permute.xlu0 %1122
      %1124 = vrot.lane.b32.xlu0 %v1050, 96
      %v1125 = vpop.permute.xlu0 %1124
      %1126 = vrot.lane.b32.xlu0 %v1051, 96
      %v1127 = vpop.permute.xlu0 %1126
      %1128 = vrot.lane.b32.xlu0 %v1052, 96
      %v1129 = vpop.permute.xlu0 %1128
      %1130 = vrot.lane.b32.xlu0 %v1053, 96
      %v1131 = vpop.permute.xlu0 %1130
      %1132 = vrot.lane.b32.xlu0 %v1054, 96
      %v1133 = vpop.permute.xlu0 %1132
      %1134 = vrot.lane.b32.xlu0 %v1055, 96
      %v1135 = vpop.permute.xlu0 %1134
      %1136 = vrot.lane.b32.xlu0 %v1056, 96
      %v1137 = vpop.permute.xlu0 %1136
      %1138 = vrot.lane.b32.xlu0 %v1057, 96
      %v1139 = vpop.permute.xlu0 %1138
      %1140 = vrot.lane.b32.xlu0 %v1058, 96
      %v1141 = vpop.permute.xlu0 %1140
      %1142 = vrot.lane.b32.xlu0 %v1059, 96
      %v1143 = vpop.permute.xlu0 %1142
      %1144 = vrot.lane.b32.xlu0 %v1060, 96
      %v1145 = vpop.permute.xlu0 %1144
      %1146 = vrot.lane.b32.xlu0 %v1061, 96
      %v1147 = vpop.permute.xlu0 %1146
      %1148 = vrot.lane.b32.xlu0 %v1062, 96
      %v1149 = vpop.permute.xlu0 %1148
      %1150 = vrot.lane.b32.xlu0 %v1063, 96
      %v1151 = vpop.permute.xlu0 %1150
      %1152 = vrot.lane.b32.xlu0 %v1064, 96
      %v1153 = vpop.permute.xlu0 %1152
      %1154 = vrot.lane.b32.xlu0 %v1065, 96
      %v1155 = vpop.permute.xlu0 %1154
      %1156 = vrot.lane.b32.xlu0 %v1066, 96
      %v1157 = vpop.permute.xlu0 %1156
      %1158 = vrot.lane.b32.xlu0 %v1067, 96
      %v1159 = vpop.permute.xlu0 %1158
      %1160 = vrot.lane.b32.xlu0 %v1068, 96
      %v1161 = vpop.permute.xlu0 %1160
      %1162 = vrot.lane.b32.xlu0 %v1069, 96
      %v1163 = vpop.permute.xlu0 %1162
      %1164 = vrot.lane.b32.xlu0 %v1070, 96
      %v1165 = vpop.permute.xlu0 %1164
      %1166 = vrot.lane.b32.xlu0 %v1071, 96
      %v1167 = vpop.permute.xlu0 %1166
      %v1200 = vmax.f32 %v1040, %v1105
      %v1201 = vmax.f32 %v1041, %v1107
      %v1202 = vmax.f32 %v1042, %v1109
      %v1203 = vmax.f32 %v1043, %v1111
      %v1204 = vmax.f32 %v1044, %v1113
      %v1205 = vmax.f32 %v1045, %v1115
      %v1206 = vmax.f32 %v1046, %v1117
      %v1207 = vmax.f32 %v1047, %v1119
      %v1208 = vmax.f32 %v1048, %v1121
      %v1209 = vmax.f32 %v1049, %v1123
      %v1210 = vmax.f32 %v1050, %v1125
      %v1211 = vmax.f32 %v1051, %v1127
      %v1212 = vmax.f32 %v1052, %v1129
      %v1213 = vmax.f32 %v1053, %v1131
      %v1214 = vmax.f32 %v1054, %v1133
      %v1215 = vmax.f32 %v1055, %v1135
      %v1216 = vmax.f32 %v1056, %v1137
      %v1217 = vmax.f32 %v1057, %v1139
      %v1218 = vmax.f32 %v1058, %v1141
      %v1219 = vmax.f32 %v1059, %v1143
      %v1220 = vmax.f32 %v1060, %v1145
      %v1221 = vmax.f32 %v1061, %v1147
      %v1222 = vmax.f32 %v1062, %v1149
      %v1223 = vmax.f32 %v1063, %v1151
      %v1224 = vmax.f32 %v1064, %v1153
      %v1225 = vmax.f32 %v1065, %v1155
      %v1226 = vmax.f32 %v1066, %v1157
      %v1227 = vmax.f32 %v1067, %v1159
      %v1228 = vmax.f32 %v1068, %v1161
      %v1229 = vmax.f32 %v1069, %v1163
      %v1230 = vmax.f32 %v1070, %v1165
      %v1231 = vmax.f32 %v1071, %v1167
      %v1232 = vpack.c.bf16 %v1201, %v1200
      %v1233 = vpack.c.bf16 %v1203, %v1202
      %v1234 = vpack.c.bf16 %v1205, %v1204
      %v1235 = vpack.c.bf16 %v1207, %v1206
      %v1236 = vpack.c.bf16 %v1209, %v1208
      %v1237 = vpack.c.bf16 %v1211, %v1210
      %v1238 = vpack.c.bf16 %v1213, %v1212
      %v1239 = vpack.c.bf16 %v1215, %v1214
      %v1240 = vpack.c.bf16 %v1217, %v1216
      %v1241 = vpack.c.bf16 %v1219, %v1218
      %v1242 = vpack.c.bf16 %v1221, %v1220
      %v1243 = vpack.c.bf16 %v1223, %v1222
      %v1244 = vpack.c.bf16 %v1225, %v1224
      %v1245 = vpack.c.bf16 %v1227, %v1226
      %v1246 = vpack.c.bf16 %v1229, %v1228
      %v1247 = vpack.c.bf16 %v1231, %v1230
      %v1264 = vunpack.c.l.b16 %v1232
      %v1265 = vunpack.c.h.b16 %v1232
      %v1266 = vunpack.c.l.b16 %v1233
      %v1267 = vunpack.c.h.b16 %v1233
      %v1268 = vunpack.c.l.b16 %v1234
      %v1269 = vunpack.c.h.b16 %v1234
      %v1270 = vunpack.c.l.b16 %v1235
      %v1271 = vunpack.c.h.b16 %v1235
      %v1272 = vunpack.c.l.b16 %v1236
      %v1273 = vunpack.c.h.b16 %v1236
      %v1274 = vunpack.c.l.b16 %v1237
      %v1275 = vunpack.c.h.b16 %v1237
      %v1276 = vunpack.c.l.b16 %v1238
      %v1277 = vunpack.c.h.b16 %v1238
      %v1278 = vunpack.c.l.b16 %v1239
      %v1279 = vunpack.c.h.b16 %v1239
      %v1280 = vunpack.c.l.b16 %v1240
      %v1281 = vunpack.c.h.b16 %v1240
      %v1282 = vunpack.c.l.b16 %v1241
      %v1283 = vunpack.c.h.b16 %v1241
      %v1284 = vunpack.c.l.b16 %v1242
      %v1285 = vunpack.c.h.b16 %v1242
      %v1286 = vunpack.c.l.b16 %v1243
      %v1287 = vunpack.c.h.b16 %v1243
      %v1288 = vunpack.c.l.b16 %v1244
      %v1289 = vunpack.c.h.b16 %v1244
      %v1290 = vunpack.c.l.b16 %v1245
      %v1291 = vunpack.c.h.b16 %v1245
      %v1292 = vunpack.c.l.b16 %v1246
      %v1293 = vunpack.c.h.b16 %v1246
      %v1294 = vunpack.c.l.b16 %v1247
      %v1295 = vunpack.c.h.b16 %v1247
      %v1296 = vpack.c.b16 %v1264, %v1264
      %v1297 = vpack.c.b16 %v1265, %v1265
      %v1298 = vpack.c.b16 %v1266, %v1266
      %v1299 = vpack.c.b16 %v1267, %v1267
      %v1300 = vpack.c.b16 %v1268, %v1268
      %v1301 = vpack.c.b16 %v1269, %v1269
      %v1302 = vpack.c.b16 %v1270, %v1270
      %v1303 = vpack.c.b16 %v1271, %v1271
      %v1304 = vpack.c.b16 %v1272, %v1272
      %v1305 = vpack.c.b16 %v1273, %v1273
      %v1306 = vpack.c.b16 %v1274, %v1274
      %v1307 = vpack.c.b16 %v1275, %v1275
      %v1308 = vpack.c.b16 %v1276, %v1276
      %v1309 = vpack.c.b16 %v1277, %v1277
      %v1310 = vpack.c.b16 %v1278, %v1278
      %v1311 = vpack.c.b16 %v1279, %v1279
      %v1312 = vpack.c.b16 %v1280, %v1280
      %v1313 = vpack.c.b16 %v1281, %v1281
      %v1314 = vpack.c.b16 %v1282, %v1282
      %v1315 = vpack.c.b16 %v1283, %v1283
      %v1316 = vpack.c.b16 %v1284, %v1284
      %v1317 = vpack.c.b16 %v1285, %v1285
      %v1318 = vpack.c.b16 %v1286, %v1286
      %v1319 = vpack.c.b16 %v1287, %v1287
      %v1320 = vpack.c.b16 %v1288, %v1288
      %v1321 = vpack.c.b16 %v1289, %v1289
      %v1322 = vpack.c.b16 %v1290, %v1290
      %v1323 = vpack.c.b16 %v1291, %v1291
      %v1324 = vpack.c.b16 %v1292, %v1292
      %v1325 = vpack.c.b16 %v1293, %v1293
      %v1326 = vpack.c.b16 %v1294, %v1294
      %v1327 = vpack.c.b16 %v1295, %v1295
      %vm1360 = vcmask 257024
      %1361 = vst.msk [vmem:[%s224] sm:$0xf] %vm1360, %v1296
      %1362 = vst.msk [vmem:[%s224 + $0x4] sm:$0xf] %vm1360, %v1297
      %1363 = vst.msk [vmem:[%s224 + $0x8] sm:$0xf] %vm1360, %v1298
      %1364 = vst.msk [vmem:[%s224 + $0xc] sm:$0xf] %vm1360, %v1299
      %1365 = vst.msk [vmem:[%s224 + $0x10] sm:$0xf] %vm1360, %v1300
      %1366 = vst.msk [vmem:[%s224 + $0x14] sm:$0xf] %vm1360, %v1301
      %1367 = vst.msk [vmem:[%s224 + $0x18] sm:$0xf] %vm1360, %v1302
      %1368 = vst.msk [vmem:[%s224 + $0x1c] sm:$0xf] %vm1360, %v1303
      %1369 = vst.msk [vmem:[%s224 + $0x20] sm:$0xf] %vm1360, %v1304
      %1370 = vst.msk [vmem:[%s224 + $0x24] sm:$0xf] %vm1360, %v1305
      %1371 = vst.msk [vmem:[%s224 + $0x28] sm:$0xf] %vm1360, %v1306
      %1372 = vst.msk [vmem:[%s224 + $0x2c] sm:$0xf] %vm1360, %v1307
      %1373 = vst.msk [vmem:[%s224 + $0x30] sm:$0xf] %vm1360, %v1308
      %1374 = vst.msk [vmem:[%s224 + $0x34] sm:$0xf] %vm1360, %v1309
      %1375 = vst.msk [vmem:[%s224 + $0x38] sm:$0xf] %vm1360, %v1310
      %1376 = vst.msk [vmem:[%s224 + $0x3c] sm:$0xf] %vm1360, %v1311
      %1377 = vst.msk [vmem:[%s224 + $0x40] sm:$0xf] %vm1360, %v1312
      %1378 = vst.msk [vmem:[%s224 + $0x44] sm:$0xf] %vm1360, %v1313
      %1379 = vst.msk [vmem:[%s224 + $0x48] sm:$0xf] %vm1360, %v1314
      %1380 = vst.msk [vmem:[%s224 + $0x4c] sm:$0xf] %vm1360, %v1315
      %1381 = vst.msk [vmem:[%s224 + $0x50] sm:$0xf] %vm1360, %v1316
      %1382 = vst.msk [vmem:[%s224 + $0x54] sm:$0xf] %vm1360, %v1317
      %1383 = vst.msk [vmem:[%s224 + $0x58] sm:$0xf] %vm1360, %v1318
      %1384 = vst.msk [vmem:[%s224 + $0x5c] sm:$0xf] %vm1360, %v1319
      %1385 = vst.msk [vmem:[%s224 + $0x60] sm:$0xf] %vm1360, %v1320
      %1386 = vst.msk [vmem:[%s224 + $0x64] sm:$0xf] %vm1360, %v1321
      %1387 = vst.msk [vmem:[%s224 + $0x68] sm:$0xf] %vm1360, %v1322
      %1388 = vst.msk [vmem:[%s224 + $0x6c] sm:$0xf] %vm1360, %v1323
      %1389 = vst.msk [vmem:[%s224 + $0x70] sm:$0xf] %vm1360, %v1324
      %1390 = vst.msk [vmem:[%s224 + $0x74] sm:$0xf] %vm1360, %v1325
      %1391 = vst.msk [vmem:[%s224 + $0x78] sm:$0xf] %vm1360, %v1326
      %1392 = vst.msk [vmem:[%s224 + $0x7c] sm:$0xf] %vm1360, %v1327
      %s1393 = smul.u32 32, %s15
      %p1394 = scmp.lt.s32.totalorder %s1393, 63
      %s1395 = scalar_select %p1394, %s1393, 63
      %s1396 = smul.addr %s1395, 4
      %s1397 = scalar_lea.vmem %s4, %s1396
      // Predicated region
      $region37: #{pointpillar_forward.2} parent=35 // pred_check
        %p1398 = pneg %p127
      $region38: #{pointpillar_forward.2} parent=35 // pred_check_branch
        %1400 = sbr.rel (%p1398) target = $region40
      $region39: #{pointpillar_forward.2} parent=35 // pred_region
        %s1401 = smul.u32 32, %s15
      $region40: #{pointpillar_forward.2} parent=35 // pred_fallthru
        _
    $region36: #{pointpillar_forward.2} parent=5 // pred_fallthru
      _
    %p1402 = scmp.le.s32.totalorder 2, %s10
    // Predicated region
    $region41: #{pointpillar_forward.2} parent=5 // pred_check
      %p1403 = pneg %p1402
    $region42: #{pointpillar_forward.2} parent=5 // pred_check_branch
      %1405 = sbr.rel (%p1403) target = $region44
    $region43: #{pointpillar_forward.2} parent=5 // pred_region
      %s1406 = ssub.s32 %s10, 2
      // Predicated region
      $region45: #{pointpillar_forward.2} parent=43 // pred_check
        %p1407 = pneg %p133
      $region46: #{pointpillar_forward.2} parent=43 // pred_check_branch
        %1409 = sbr.rel (%p1407) target = $region48
      $region47: #{pointpillar_forward.2} parent=43 // pred_region
        %s1410 = smul.u32 32, %s16
        %p1411 = scmp.lt.s32.totalorder %s1410, 63
        %s1412 = scalar_select %p1411, %s1410, 63
        %s1413 = smul.addr %s1412, 4
        %s1414 = scalar_lea.vmem %s4, %s1413
      $region48: #{pointpillar_forward.2} parent=43 // pred_fallthru
        _
    $region44: #{pointpillar_forward.2} parent=5 // pred_fallthru
      _
  $region6: #{pointpillar_forward.2} parent=0 // loop_footer
    %s14 = sadd.s32 1, %s10
  $region7: #{pointpillar_forward.2} parent=0 // loop_footer_branch
    %9 = sbr.rel target = $region3
  $region8: #{pointpillar_forward.2} parent=0 // loop_exit
    _

// kernel: pointpillar_forward.3
$region0: #{pointpillar_forward.3}
  #allocation0 [shape = 'u32[]', space=smem, size = 0x4, offset = 0x4, fixed_abs, tag = 'smem constant byte address 0x4 - core index']
  #allocation1 [shape = 'u32[144,128]{1,0:T(1,128)}', space=vmem, size = 0x12000, scoped, tag = 'internal scratch']
  %s0 = inlined_call_operand.vmem [shape: bf16[2,64,288], index: 0, kind: input, shape index: {}]
  %s1 = inlined_call_operand.vmem [shape: bf16[288,64], index: 1, kind: input, shape index: {}]
  %s2 = inlined_call_operand.vmem [shape: f32[1,64], index: 2, kind: input, shape index: {}]
  %s3 = inlined_call_operand.vmem [shape: bf16[9,64,64], index: 3, kind: input, shape index: {}]
  %s4 = inlined_call_operand.vmem [shape: f32[1,64], index: 4, kind: input, shape index: {}]
  %s5 = inlined_call_operand.vmem [shape: bf16[64,256], index: 5, kind: input, shape index: {}]
  %s6 = inlined_call_operand.vmem [shape: f32[1,256], index: 6, kind: input, shape index: {}]
  %s7 = inlined_call_operand.vmem [shape: bf16[256,512], index: 7, kind: input, shape index: {}]
  %s8 = inlined_call_operand.vmem [shape: f32[1,512], index: 8, kind: input, shape index: {}]
  %s9 = inlined_call_operand.vmem [shape: bf16[2,64,256], index: 9, kind: output, shape index: {0}]
  %s10 = inlined_call_operand.vmem [shape: f32[2,64,512], index: 10, kind: output, shape index: {1}]
  %11 = xla_tuple %s9, %s10
  %s12 = sld [smem:[#allocation0]]
  $region77: #{pointpillar_forward.3} parent=0
    _
  %s14 = ssub.s32 1, %s12
  %s15 = scalar_select 0, %s14, %s12
  loop: start=0, step=1, limit=4
  $region2: #{pointpillar_forward.3} parent=0 // loop_pre_header
    _
  $region3: #{pointpillar_forward.3} parent=0 // loop_header
    %s17 = sphi 0, %s21
    %p18 = scmp.ge.s32.totalorder %s17, 4
    %s27 = sphi 0, %s29
    %s30 = sphi 0, %s27
    %s31 = sphi 0, %s30
    %s47 = sphi 0, %s31
    %s51 = sphi 0, %s51
    %s53 = sphi 0, %s51
    %s54 = sphi 0, %s53
    %s68 = sphi 0, %s54
    %s72 = sphi 0, %s72
    %s74 = sphi 0, %s72
    %s75 = sphi 0, %s74
    %s89 = sphi 0, %s75
    %s93 = sphi 0, %s93
    %s95 = sphi 0, %s93
    %s96 = sphi 0, %s95
    %s110 = sphi 0, %s96
    %s114 = sphi 0, %s114
    %s116 = sphi 0, %s114
    %s117 = sphi 0, %s116
    %s131 = sphi 0, %s117
    %s135 = sphi 0, %s135
    %s137 = sphi 0, %s135
    %s138 = sphi 0, %s137
    %s152 = sphi 0, %s138
    %s156 = sphi 0, %s156
    %s158 = sphi 0, %s156
    %s159 = sphi 0, %s158
    %s173 = sphi 0, %s159
    %s177 = sphi 0, %s177
    %s179 = sphi 0, %s177
    %s180 = sphi 0, %s179
    %s194 = sphi 0, %s180
    %s198 = sphi 0, %s198
    %s200 = sphi 0, %s198
    %s201 = sphi 0, %s200
    %s215 = sphi 0, %s201
    %s221 = sphi 0, %s223
    %s224 = sphi 0, %s221
    %s225 = sphi 0, %s224
    %s241 = sphi 0, %s225
    %s247 = sphi 0, %s249
    %s250 = sphi 0, %s247
    %s251 = sphi 0, %s250
    %s267 = sphi 0, %s251
  $region4: #{pointpillar_forward.3} parent=0 // loop_header_branch
    %20 = sbr.rel (%p18) target = $region8
  $region5: #{pointpillar_forward.3} parent=0 // loop_body
    %s22 = ssub.s32 %s17, 1
    %s23 = ssub.s32 %s17, 2
    %s24 = sadd.s32 %s17, 1
    %s25 = ssub.s32 %s17, %s24
    %p26 = scmp.eq.s32.totalorder %s25, 0
    %s28 = sadd.s32 %s27, 1
    %s29 = scalar_select %p26, %s27, %s28
    %p32 = pneg %p26
    %p33 = scmp.eq.s32.totalorder %s17, 1
    %p34 = por %p32, %p33
    %p35 = scmp.ne.s32.totalorder %s27, %s30
    %p36 = scmp.eq.s32.totalorder %s17, 0
    %p37 = por %p35, %p36
    %p38 = scmp.ne.s32.totalorder %s27, %s30
    %p39 = scmp.eq.s32.totalorder %s22, 1
    %p40 = por %p38, %p39
    %p41 = scmp.ne.s32.totalorder %s30, %s31
    %p42 = scmp.eq.s32.totalorder %s22, 0
    %p43 = por %p41, %p42
    %p44 = scmp.ne.s32.totalorder %s30, %s31
    %p45 = scmp.eq.s32.totalorder %s23, 1
    %p46 = por %p44, %p45
    %p48 = scmp.ne.s32.totalorder %s31, %s47
    %p49 = scmp.eq.s32.totalorder %s23, 0
    %p50 = por %p48, %p49
    %s52 = sadd.s32 %s51, 1
    %p55 = scmp.eq.s32.totalorder %s17, 1
    %p56 = scmp.ne.s32.totalorder %s51, %s53
    %p57 = scmp.eq.s32.totalorder %s17, 0
    %p58 = por %p56, %p57
    %p59 = scmp.ne.s32.totalorder %s51, %s53
    %p60 = scmp.eq.s32.totalorder %s22, 1
    %p61 = por %p59, %p60
    %p62 = scmp.ne.s32.totalorder %s53, %s54
    %p63 = scmp.eq.s32.totalorder %s22, 0
    %p64 = por %p62, %p63
    %p65 = scmp.ne.s32.totalorder %s53, %s54
    %p66 = scmp.eq.s32.totalorder %s23, 1
    %p67 = por %p65, %p66
    %p69 = scmp.ne.s32.totalorder %s54, %s68
    %p70 = scmp.eq.s32.totalorder %s23, 0
    %p71 = por %p69, %p70
    %s73 = sadd.s32 %s72, 1
    %p76 = scmp.eq.s32.totalorder %s17, 1
    %p77 = scmp.ne.s32.totalorder %s72, %s74
    %p78 = scmp.eq.s32.totalorder %s17, 0
    %p79 = por %p77, %p78
    %p80 = scmp.ne.s32.totalorder %s72, %s74
    %p81 = scmp.eq.s32.totalorder %s22, 1
    %p82 = por %p80, %p81
    %p83 = scmp.ne.s32.totalorder %s74, %s75
    %p84 = scmp.eq.s32.totalorder %s22, 0
    %p85 = por %p83, %p84
    %p86 = scmp.ne.s32.totalorder %s74, %s75
    %p87 = scmp.eq.s32.totalorder %s23, 1
    %p88 = por %p86, %p87
    %p90 = scmp.ne.s32.totalorder %s75, %s89
    %p91 = scmp.eq.s32.totalorder %s23, 0
    %p92 = por %p90, %p91
    %s94 = sadd.s32 %s93, 1
    %p97 = scmp.eq.s32.totalorder %s17, 1
    %p98 = scmp.ne.s32.totalorder %s93, %s95
    %p99 = scmp.eq.s32.totalorder %s17, 0
    %p100 = por %p98, %p99
    %p101 = scmp.ne.s32.totalorder %s93, %s95
    %p102 = scmp.eq.s32.totalorder %s22, 1
    %p103 = por %p101, %p102
    %p104 = scmp.ne.s32.totalorder %s95, %s96
    %p105 = scmp.eq.s32.totalorder %s22, 0
    %p106 = por %p104, %p105
    %p107 = scmp.ne.s32.totalorder %s95, %s96
    %p108 = scmp.eq.s32.totalorder %s23, 1
    %p109 = por %p107, %p108
    %p111 = scmp.ne.s32.totalorder %s96, %s110
    %p112 = scmp.eq.s32.totalorder %s23, 0
    %p113 = por %p111, %p112
    %s115 = sadd.s32 %s114, 1
    %p118 = scmp.eq.s32.totalorder %s17, 1
    %p119 = scmp.ne.s32.totalorder %s114, %s116
    %p120 = scmp.eq.s32.totalorder %s17, 0
    %p121 = por %p119, %p120
    %p122 = scmp.ne.s32.totalorder %s114, %s116
    %p123 = scmp.eq.s32.totalorder %s22, 1
    %p124 = por %p122, %p123
    %p125 = scmp.ne.s32.totalorder %s116, %s117
    %p126 = scmp.eq.s32.totalorder %s22, 0
    %p127 = por %p125, %p126
    %p128 = scmp.ne.s32.totalorder %s116, %s117
    %p129 = scmp.eq.s32.totalorder %s23, 1
    %p130 = por %p128, %p129
    %p132 = scmp.ne.s32.totalorder %s117, %s131
    %p133 = scmp.eq.s32.totalorder %s23, 0
    %p134 = por %p132, %p133
    %s136 = sadd.s32 %s135, 1
    %p139 = scmp.eq.s32.totalorder %s17, 1
    %p140 = scmp.ne.s32.totalorder %s135, %s137
    %p141 = scmp.eq.s32.totalorder %s17, 0
    %p142 = por %p140, %p141
    %p143 = scmp.ne.s32.totalorder %s135, %s137
    %p144 = scmp.eq.s32.totalorder %s22, 1
    %p145 = por %p143, %p144
    %p146 = scmp.ne.s32.totalorder %s137, %s138
    %p147 = scmp.eq.s32.totalorder %s22, 0
    %p148 = por %p146, %p147
    %p149 = scmp.ne.s32.totalorder %s137, %s138
    %p150 = scmp.eq.s32.totalorder %s23, 1
    %p151 = por %p149, %p150
    %p153 = scmp.ne.s32.totalorder %s138, %s152
    %p154 = scmp.eq.s32.totalorder %s23, 0
    %p155 = por %p153, %p154
    %s157 = sadd.s32 %s156, 1
    %p160 = scmp.eq.s32.totalorder %s17, 1
    %p161 = scmp.ne.s32.totalorder %s156, %s158
    %p162 = scmp.eq.s32.totalorder %s17, 0
    %p163 = por %p161, %p162
    %p164 = scmp.ne.s32.totalorder %s156, %s158
    %p165 = scmp.eq.s32.totalorder %s22, 1
    %p166 = por %p164, %p165
    %p167 = scmp.ne.s32.totalorder %s158, %s159
    %p168 = scmp.eq.s32.totalorder %s22, 0
    %p169 = por %p167, %p168
    %p170 = scmp.ne.s32.totalorder %s158, %s159
    %p171 = scmp.eq.s32.totalorder %s23, 1
    %p172 = por %p170, %p171
    %p174 = scmp.ne.s32.totalorder %s159, %s173
    %p175 = scmp.eq.s32.totalorder %s23, 0
    %p176 = por %p174, %p175
    %s178 = sadd.s32 %s177, 1
    %p181 = scmp.eq.s32.totalorder %s17, 1
    %p182 = scmp.ne.s32.totalorder %s177, %s179
    %p183 = scmp.eq.s32.totalorder %s17, 0
    %p184 = por %p182, %p183
    %p185 = scmp.ne.s32.totalorder %s177, %s179
    %p186 = scmp.eq.s32.totalorder %s22, 1
    %p187 = por %p185, %p186
    %p188 = scmp.ne.s32.totalorder %s179, %s180
    %p189 = scmp.eq.s32.totalorder %s22, 0
    %p190 = por %p188, %p189
    %p191 = scmp.ne.s32.totalorder %s179, %s180
    %p192 = scmp.eq.s32.totalorder %s23, 1
    %p193 = por %p191, %p192
    %p195 = scmp.ne.s32.totalorder %s180, %s194
    %p196 = scmp.eq.s32.totalorder %s23, 0
    %p197 = por %p195, %p196
    %s199 = sadd.s32 %s198, 1
    %p202 = scmp.eq.s32.totalorder %s17, 1
    %p203 = scmp.ne.s32.totalorder %s198, %s200
    %p204 = scmp.eq.s32.totalorder %s17, 0
    %p205 = por %p203, %p204
    %p206 = scmp.ne.s32.totalorder %s198, %s200
    %p207 = scmp.eq.s32.totalorder %s22, 1
    %p208 = por %p206, %p207
    %p209 = scmp.ne.s32.totalorder %s200, %s201
    %p210 = scmp.eq.s32.totalorder %s22, 0
    %p211 = por %p209, %p210
    %p212 = scmp.ne.s32.totalorder %s200, %s201
    %p213 = scmp.eq.s32.totalorder %s23, 1
    %p214 = por %p212, %p213
    %p216 = scmp.ne.s32.totalorder %s201, %s215
    %p217 = scmp.eq.s32.totalorder %s23, 0
    %p218 = por %p216, %p217
    %s219 = ssub.s32 %s17, %s24
    %p220 = scmp.eq.s32.totalorder %s219, 0
    %s222 = sadd.s32 %s221, 1
    %s223 = scalar_select %p220, %s221, %s222
    %p226 = pneg %p220
    %p227 = scmp.eq.s32.totalorder %s17, 1
    %p228 = por %p226, %p227
    %p229 = scmp.ne.s32.totalorder %s221, %s224
    %p230 = scmp.eq.s32.totalorder %s17, 0
    %p231 = por %p229, %p230
    %p232 = scmp.ne.s32.totalorder %s221, %s224
    %p233 = scmp.eq.s32.totalorder %s22, 1
    %p234 = por %p232, %p233
    %p235 = scmp.ne.s32.totalorder %s224, %s225
    %p236 = scmp.eq.s32.totalorder %s22, 0
    %p237 = por %p235, %p236
    %p238 = scmp.ne.s32.totalorder %s224, %s225
    %p239 = scmp.eq.s32.totalorder %s23, 1
    %p240 = por %p238, %p239
    %p242 = scmp.ne.s32.totalorder %s225, %s241
    %p243 = scmp.eq.s32.totalorder %s23, 0
    %p244 = por %p242, %p243
    %s245 = ssub.s32 %s17, %s24
    %p246 = scmp.eq.s32.totalorder %s245, 0
    %s248 = sadd.s32 %s247, 1
    %s249 = scalar_select %p246, %s247, %s248
    %p252 = pneg %p246
    %p253 = scmp.eq.s32.totalorder %s17, 1
    %p254 = por %p252, %p253
    %p255 = scmp.ne.s32.totalorder %s247, %s250
    %p256 = scmp.eq.s32.totalorder %s17, 0
    %p257 = por %p255, %p256
    %p258 = scmp.ne.s32.totalorder %s247, %s250
    %p259 = scmp.eq.s32.totalorder %s22, 1
    %p260 = por %p258, %p259
    %p261 = scmp.ne.s32.totalorder %s250, %s251
    %p262 = scmp.eq.s32.totalorder %s22, 0
    %p263 = por %p261, %p262
    %p264 = scmp.ne.s32.totalorder %s250, %s251
    %p265 = scmp.eq.s32.totalorder %s23, 1
    %p266 = por %p264, %p265
    %p268 = scmp.ne.s32.totalorder %s251, %s267
    %p269 = scmp.eq.s32.totalorder %s23, 0
    %p270 = por %p268, %p269
    %p271 = scmp.le.s32.totalorder 1, %s17
    %p272 = scmp.lt.s32.totalorder %s17, 3
    %p273 = pnand %p271, %p272
    %p274 = pneg %p273
    // Predicated region
    $region9: #{pointpillar_forward.3} parent=5 // pred_check
      _
    $region10: #{pointpillar_forward.3} parent=5 // pred_check_branch
      %276 = sbr.rel (%p273) target = $region12
    $region11: #{pointpillar_forward.3} parent=5 // pred_region
      %s277 = ssub.s32 %s17, 1
      // Predicated region
      $region13: #{pointpillar_forward.3} parent=11 // pred_check
        %p278 = pneg %p64
      $region14: #{pointpillar_forward.3} parent=11 // pred_check_branch
        %280 = sbr.rel (%p278) target = $region16
      $region15: #{pointpillar_forward.3} parent=11 // pred_region
        _
      $region16: #{pointpillar_forward.3} parent=11 // pred_fallthru
        _
      // Predicated region
      $region17: #{pointpillar_forward.3} parent=11 // pred_check
        %p281 = pneg %p85
      $region18: #{pointpillar_forward.3} parent=11 // pred_check_branch
        %283 = sbr.rel (%p281) target = $region20
      $region19: #{pointpillar_forward.3} parent=11 // pred_region
        _
      $region20: #{pointpillar_forward.3} parent=11 // pred_fallthru
        _
      // Predicated region
      $region21: #{pointpillar_forward.3} parent=11 // pred_check
        %p284 = pneg %p106
      $region22: #{pointpillar_forward.3} parent=11 // pred_check_branch
        %286 = sbr.rel (%p284) target = $region24
      $region23: #{pointpillar_forward.3} parent=11 // pred_region
        _
      $region24: #{pointpillar_forward.3} parent=11 // pred_fallthru
        _
      // Predicated region
      $region25: #{pointpillar_forward.3} parent=11 // pred_check
        %p287 = pneg %p127
      $region26: #{pointpillar_forward.3} parent=11 // pred_check_branch
        %289 = sbr.rel (%p287) target = $region28
      $region27: #{pointpillar_forward.3} parent=11 // pred_region
        _
      $region28: #{pointpillar_forward.3} parent=11 // pred_fallthru
        _
      // Predicated region
      $region29: #{pointpillar_forward.3} parent=11 // pred_check
        %p290 = pneg %p148
      $region30: #{pointpillar_forward.3} parent=11 // pred_check_branch
        %292 = sbr.rel (%p290) target = $region32
      $region31: #{pointpillar_forward.3} parent=11 // pred_region
        _
      $region32: #{pointpillar_forward.3} parent=11 // pred_fallthru
        _
      // Predicated region
      $region33: #{pointpillar_forward.3} parent=11 // pred_check
        %p293 = pneg %p169
      $region34: #{pointpillar_forward.3} parent=11 // pred_check_branch
        %295 = sbr.rel (%p293) target = $region36
      $region35: #{pointpillar_forward.3} parent=11 // pred_region
        _
      $region36: #{pointpillar_forward.3} parent=11 // pred_fallthru
        _
      // Predicated region
      $region37: #{pointpillar_forward.3} parent=11 // pred_check
        %p296 = pneg %p190
      $region38: #{pointpillar_forward.3} parent=11 // pred_check_branch
        %298 = sbr.rel (%p296) target = $region40
      $region39: #{pointpillar_forward.3} parent=11 // pred_region
        _
      $region40: #{pointpillar_forward.3} parent=11 // pred_fallthru
        _
      // Predicated region
      $region41: #{pointpillar_forward.3} parent=11 // pred_check
        %p299 = pneg %p211
      $region42: #{pointpillar_forward.3} parent=11 // pred_check_branch
        %301 = sbr.rel (%p299) target = $region44
      $region43: #{pointpillar_forward.3} parent=11 // pred_region
        _
      $region44: #{pointpillar_forward.3} parent=11 // pred_fallthru
        _
    $region12: #{pointpillar_forward.3} parent=5 // pred_fallthru
      _
    %p302 = scmp.lt.s32.totalorder %s17, 2
    // Predicated region
    $region45: #{pointpillar_forward.3} parent=5 // pred_check
      %p303 = pneg %p302
    $region46: #{pointpillar_forward.3} parent=5 // pred_check_branch
      %305 = sbr.rel (%p303) target = $region48
    $region47: #{pointpillar_forward.3} parent=5 // pred_region
      // Predicated region
      $region49: #{pointpillar_forward.3} parent=47 // pred_check
        %p306 = pneg %p37
      $region50: #{pointpillar_forward.3} parent=47 // pred_check_branch
        %308 = sbr.rel (%p306) target = $region52
      $region51: #{pointpillar_forward.3} parent=47 // pred_region
        %p309 = scmp.lt.s32.totalorder %s17, 1
        %s310 = scalar_select %p309, %s17, 1
        %s311 = smul.addr %s310, 24
        %s312 = smul.addr %s311, 4
        %s313 = scalar_lea.vmem %s0, %s312
      $region52: #{pointpillar_forward.3} parent=47 // pred_fallthru
        _
    $region48: #{pointpillar_forward.3} parent=5 // pred_fallthru
      _
    %p314 = scmp.le.s32.totalorder 1, %s17
    %p315 = scmp.lt.s32.totalorder %s17, 3
    %p316 = pnand %p314, %p315
    %p317 = pneg %p316
    // Predicated region
    $region53: #{pointpillar_forward.3} parent=5 // pred_check
      _
    $region54: #{pointpillar_forward.3} parent=5 // pred_check_branch
      %319 = sbr.rel (%p316) target = $region56
    $region55: #{pointpillar_forward.3} parent=5 // pred_region
      %s320 = ssub.s32 %s17, 1
      %p321 = scmp.lt.s32.totalorder %s22, 1
      %s322 = scalar_select %p321, %s22, 1
      %s323 = smul.addr %s322, 24
      %s324 = smul.addr %s323, 4
      %s325 = scalar_lea.vmem %s0, %s324
      %p326 = pneg %p43
      %p327 = pneg %p40
      %p328 = pneg %p64
      %p329 = pneg %p61
      %p330 = pneg %p85
      %p331 = pneg %p82
      %p332 = pneg %p106
      %p333 = pneg %p103
      %p334 = pneg %p127
      %p335 = pneg %p124
      %p336 = pneg %p148
      %p337 = pneg %p145
      %p338 = pneg %p169
      %p339 = pneg %p166
      %p340 = pneg %p190
      %p341 = pneg %p187
      %p342 = pneg %p211
      %p343 = pneg %p208
      %p344 = pneg %p237
      %p345 = pneg %p234
      %p346 = scmp.lt.s32.totalorder %s22, 1
      %s347 = scalar_select %p346, %s22, 1
      %s348 = smul.addr %s347, 16
      %s349 = smul.addr %s348, 4
      %s350 = scalar_lea.vmem %s9, %s349
      %p351 = pneg %p263
      %p352 = pneg %p260
      %p353 = scmp.lt.s32.totalorder %s22, 1
      %s354 = scalar_select %p353, %s22, 1
      %s355 = smul.addr %s354, 32
      %s356 = smul.addr %s355, 8
      %s357 = scalar_lea.vmem %s10, %s356
      %p358 = scmp.lt.s32.totalorder %s22, 1
      %s359 = scalar_select %p358, %s22, 1
      %s360 = smul.addr %s359, 24
      %s361 = smul.addr %s360, 4
      %s362 = scalar_lea.vmem %s0, %s361
      %p363 = scmp.lt.s32.totalorder %s22, 1
      %s364 = scalar_select %p363, %s22, 1
      %s365 = smul.addr %s364, 16
      %s366 = smul.addr %s365, 4
      %s367 = scalar_lea.vmem %s9, %s366
      %p368 = scmp.lt.s32.totalorder %s22, 1
      %s369 = scalar_select %p368, %s22, 1
      %s370 = smul.addr %s369, 32
      %s371 = smul.addr %s370, 8
      %s372 = scalar_lea.vmem %s10, %s371
      %v374 = vld [vmem:[%s362] sm:$0xff]
      %v375 = vld [vmem:[%s362 + $0x8] sm:$0xf]
      %v376 = vld [vmem:[%s362 + $0xc] sm:$0xff]
      %v377 = vld [vmem:[%s362 + $0x14] sm:$0xf]
      %v378 = vld [vmem:[%s362 + $0x18] sm:$0xff]
      %v379 = vld [vmem:[%s362 + $0x20] sm:$0xf]
      %v380 = vld [vmem:[%s362 + $0x24] sm:$0xff]
      %v381 = vld [vmem:[%s362 + $0x2c] sm:$0xf]
      %v382 = vld [vmem:[%s362 + $0x30] sm:$0xff]
      %v383 = vld [vmem:[%s362 + $0x38] sm:$0xf]
      %v384 = vld [vmem:[%s362 + $0x3c] sm:$0xff]
      %v385 = vld [vmem:[%s362 + $0x44] sm:$0xf]
      %v386 = vld [vmem:[%s362 + $0x48] sm:$0xff]
      %v387 = vld [vmem:[%s362 + $0x50] sm:$0xf]
      %v388 = vld [vmem:[%s362 + $0x54] sm:$0xff]
      %v389 = vld [vmem:[%s362 + $0x5c] sm:$0xf]
      %v390 = vld [vmem:[%s1] sm:$0xf]
      %v391 = vld [vmem:[%s1 + $0x4] sm:$0xf]
      %v392 = vld [vmem:[%s1 + $0x8] sm:$0xf]
      %v393 = vld [vmem:[%s1 + $0xc] sm:$0xf]
      %v394 = vld [vmem:[%s1 + $0x10] sm:$0xf]
      %v395 = vld [vmem:[%s1 + $0x14] sm:$0xf]
      %v396 = vld [vmem:[%s1 + $0x18] sm:$0xf]
      %v397 = vld [vmem:[%s1 + $0x1c] sm:$0xf]
      %v398 = vld [vmem:[%s1 + $0x20] sm:$0xf]
      %v399 = vld [vmem:[%s1 + $0x24] sm:$0xf]
      %v400 = vld [vmem:[%s1 + $0x28] sm:$0xf]
      %v401 = vld [vmem:[%s1 + $0x2c] sm:$0xf]
      %v402 = vld [vmem:[%s1 + $0x30] sm:$0xf]
      %v403 = vld [vmem:[%s1 + $0x34] sm:$0xf]
      %v404 = vld [vmem:[%s1 + $0x38] sm:$0xf]
      %v405 = vld [vmem:[%s1 + $0x3c] sm:$0xf]
      %v406 = vld [vmem:[%s1 + $0x40] sm:$0xf]
      %v407 = vld [vmem:[%s1 + $0x44] sm:$0xf]
      %v408 = vld [vmem:[%s1 + $0x48] sm:$0xf]
      %v409 = vld [vmem:[%s1 + $0x4c] sm:$0xf]
      %v410 = vld [vmem:[%s1 + $0x50] sm:$0xf]
      %v411 = vld [vmem:[%s1 + $0x54] sm:$0xf]
      %v412 = vld [vmem:[%s1 + $0x58] sm:$0xf]
      %v413 = vld [vmem:[%s1 + $0x5c] sm:$0xf]
      %v414 = vld [vmem:[%s1 + $0x60] sm:$0xf]
      %v415 = vld [vmem:[%s1 + $0x64] sm:$0xf]
      %v416 = vld [vmem:[%s1 + $0x68] sm:$0xf]
      %v417 = vld [vmem:[%s1 + $0x6c] sm:$0xf]
      %v418 = vld [vmem:[%s1 + $0x70] sm:$0xf]
      %v419 = vld [vmem:[%s1 + $0x74] sm:$0xf]
      %v420 = vld [vmem:[%s1 + $0x78] sm:$0xf]
      %v421 = vld [vmem:[%s1 + $0x7c] sm:$0xf]
      %v422 = vld [vmem:[%s1 + $0x80] sm:$0xf]
      %v423 = vld [vmem:[%s1 + $0x84] sm:$0xf]
      %v424 = vld [vmem:[%s1 + $0x88] sm:$0xf]
      %v425 = vld [vmem:[%s1 + $0x8c] sm:$0xf]
      %v426 = vld [vmem:[%s2] sm:$0x1]
      %v428 = vlaneseq
      %v429 = vshrl.u32 %v428, 7
      %v430 = vsub.s32 0, %v429
      %v431 = vrot.slane %v426, %v430
      %v449 = vunpack.c.l.b16 %v374
      %v450 = vunpack.c.h.b16 %v374
      %v451 = vunpack.c.l.b16 %v375
      %v452 = vunpack.c.l.b16 %v376
      %v453 = vunpack.c.h.b16 %v376
      %v454 = vunpack.c.l.b16 %v377
      %v455 = vunpack.c.l.b16 %v378
      %v456 = vunpack.c.h.b16 %v378
      %v457 = vunpack.c.l.b16 %v379
      %v458 = vunpack.c.l.b16 %v380
      %v459 = vunpack.c.h.b16 %v380
      %v460 = vunpack.c.l.b16 %v381
      %v461 = vunpack.c.l.b16 %v382
      %v462 = vunpack.c.h.b16 %v382
      %v463 = vunpack.c.l.b16 %v383
      %v464 = vunpack.c.l.b16 %v384
      %v465 = vunpack.c.h.b16 %v384
      %v466 = vunpack.c.l.b16 %v385
      %v467 = vunpack.c.l.b16 %v386
      %v468 = vunpack.c.h.b16 %v386
      %v469 = vunpack.c.l.b16 %v387
      %v470 = vunpack.c.l.b16 %v388
      %v471 = vunpack.c.h.b16 %v388
      %v472 = vunpack.c.l.b16 %v389
      %v473 = vpack.c.b16 %v452, %v449
      %v474 = vpack.c.b16 %v453, %v450
      %v475 = vpack.c.b16 %v454, %v451
      %v476 = vpack.c.b16 %v458, %v455
      %v477 = vpack.c.b16 %v459, %v456
      %v478 = vpack.c.b16 %v460, %v457
      %v479 = vpack.c.b16 %v464, %v461
      %v480 = vpack.c.b16 %v465, %v462
      %v481 = vpack.c.b16 %v466, %v463
      %v482 = vpack.c.b16 %v470, %v467
      %v483 = vpack.c.b16 %v471, %v468
      %v484 = vpack.c.b16 %v472, %v469
      %v529 = vunpack.c.l.b16 %v390
      %v530 = vunpack.c.l.b16 %v391
      %v531 = vunpack.c.l.b16 %v392
      %v532 = vunpack.c.l.b16 %v393
      %v533 = vunpack.c.l.b16 %v394
      %v534 = vunpack.c.l.b16 %v395
      %v535 = vunpack.c.l.b16 %v396
      %v536 = vunpack.c.l.b16 %v397
      %v537 = vunpack.c.l.b16 %v398
      %v538 = vunpack.c.l.b16 %v399
      %v539 = vunpack.c.l.b16 %v400
      %v540 = vunpack.c.l.b16 %v401
      %v541 = vunpack.c.l.b16 %v402
      %v542 = vunpack.c.l.b16 %v403
      %v543 = vunpack.c.l.b16 %v404
      %v544 = vunpack.c.l.b16 %v405
      %v545 = vunpack.c.l.b16 %v406
      %v546 = vunpack.c.l.b16 %v407
      %v547 = vunpack.c.l.b16 %v408
      %v548 = vunpack.c.l.b16 %v409
      %v549 = vunpack.c.l.b16 %v410
      %v550 = vunpack.c.l.b16 %v411
      %v551 = vunpack.c.l.b16 %v412
      %v552 = vunpack.c.l.b16 %v413
      %v553 = vunpack.c.l.b16 %v414
      %v554 = vunpack.c.l.b16 %v415
      %v555 = vunpack.c.l.b16 %v416
      %v556 = vunpack.c.l.b16 %v417
      %v557 = vunpack.c.l.b16 %v418
      %v558 = vunpack.c.l.b16 %v419
      %v559 = vunpack.c.l.b16 %v420
      %v560 = vunpack.c.l.b16 %v421
      %v561 = vunpack.c.l.b16 %v422
      %v562 = vunpack.c.l.b16 %v423
      %v563 = vunpack.c.l.b16 %v424
      %v564 = vunpack.c.l.b16 %v425
      %v565 = vpack.c.b16 %v530, %v529
      %v566 = vpack.c.b16 %v532, %v531
      %v567 = vpack.c.b16 %v534, %v533
      %v568 = vpack.c.b16 %v536, %v535
      %v569 = vpack.c.b16 %v538, %v537
      %v570 = vpack.c.b16 %v540, %v539
      %v571 = vpack.c.b16 %v542, %v541
      %v572 = vpack.c.b16 %v544, %v543
      %v573 = vpack.c.b16 %v546, %v545
      %v574 = vpack.c.b16 %v548, %v547
      %v575 = vpack.c.b16 %v550, %v549
      %v576 = vpack.c.b16 %v552, %v551
      %v577 = vpack.c.b16 %v554, %v553
      %v578 = vpack.c.b16 %v556, %v555
      %v579 = vpack.c.b16 %v558, %v557
      %v580 = vpack.c.b16 %v560, %v559
      %v581 = vpack.c.b16 %v562, %v561
      %v582 = vpack.c.b16 %v564, %v563
      %vm601 = vcmask 261120
      %v603 = vsel %vm601, %v475, 0
      %v606 = vsel %vm601, %v478, 0
      %v609 = vsel %vm601, %v481, 0
      %v612 = vsel %vm601, %v484, 0
      %614 = vmatprep.subr.bf16.mxu0 0
      %615 = vmatpush1.bf16.msra.mxu0 %v572
      %616 = vmatprep.subr.bf16.mxu0 0
      %617 = vmatpush1.bf16.msra.mxu0 %v571
      %618 = vmatprep.subr.bf16.mxu0 0
      %619 = vmatpush1.bf16.msra.mxu0 %v570
      %620 = vmatprep.subr.bf16.mxu0 0
      %621 = vmatpush1.bf16.msra.mxu0 %v569
      %622 = vmatprep.subr.bf16.mxu0 0
      %623 = vmatpush1.bf16.msra.mxu0 %v568
      %624 = vmatprep.subr.bf16.mxu0 0
      %625 = vmatpush1.bf16.msra.mxu0 %v567
      %626 = vmatprep.subr.bf16.mxu0 0
      %627 = vmatpush1.bf16.msra.mxu0 %v566
      %628 = vmatprep.subr.bf16.mxu0 0
      %629 = vmatpush1.bf16.msra.mxu0 %v565
      %630 = vmatprep.subr.bf16.mxu0 0
      %631 = vmatpush2.bf16.msra.mxu0 %v580
      %632 = vmatprep.subr.bf16.mxu0 0
      %633 = vmatpush2.bf16.msra.mxu0 %v579
      %634 = vmatprep.subr.bf16.mxu0 0
      %635 = vmatpush2.bf16.msra.mxu0 %v578
      %636 = vmatprep.subr.bf16.mxu0 0
      %637 = vmatpush2.bf16.msra.mxu0 %v577
      %638 = vmatprep.subr.bf16.mxu0 0
      %639 = vmatpush2.bf16.msra.mxu0 %v576
      %640 = vmatprep.subr.bf16.mxu0 0
      %641 = vmatpush2.bf16.msra.mxu0 %v575
      %642 = vmatprep.subr.bf16.mxu0 0
      %643 = vmatpush2.bf16.msra.mxu0 %v574
      %644 = vmatprep.subr.bf16.mxu0 0
      %645 = vmatpush2.bf16.msra.mxu0 %v573
      %646 = vmatprep.mubr.bf16.mxu0 %v474
      %647 = vmatmul.mubr.bf16.gmra.mxu0 %v473
      %v648 = vpop.f32.mrf.mxu0
      %v649 = vadd.f32 %v431, %v648
      %v650 = vpop.f32.mrf.mxu0
      %v651 = vpop.f32.mrf.mxu0
      %v652 = vadd.f32 %v431, %v651
      %v653 = vpop.f32.mrf.mxu0
      %654 = vmatprep.mubr.bf16.mxu0 %v477
      %655 = vmatmul.mubr.bf16.gmra.mxu0 %v476
      %v656 = vpop.f32.mrf.mxu0
      %v657 = vadd.f32 %v431, %v656
      %v658 = vpop.f32.mrf.mxu0
      %v659 = vpop.f32.mrf.mxu0
      %v660 = vadd.f32 %v431, %v659
      %v661 = vpop.f32.mrf.mxu0
      %662 = vmatprep.mubr.bf16.mxu0 %v480
      %663 = vmatmul.mubr.bf16.gmra.mxu0 %v479
      %v664 = vpop.f32.mrf.mxu0
      %v665 = vadd.f32 %v431, %v664
      %v666 = vpop.f32.mrf.mxu0
      %v667 = vpop.f32.mrf.mxu0
      %v668 = vadd.f32 %v431, %v667
      %v669 = vpop.f32.mrf.mxu0
      %670 = vmatprep.mubr.bf16.mxu0 %v483
      %671 = vmatmul.mubr.bf16.gmra.mxu0 %v482
      %v672 = vpop.f32.mrf.mxu0
      %v673 = vadd.f32 %v431, %v672
      %v674 = vpop.f32.mrf.mxu0
      %v675 = vpop.f32.mrf.mxu0
      %v676 = vadd.f32 %v431, %v675
      %v677 = vpop.f32.mrf.mxu0
      %678 = vdwg.mxu0
      %679 = vmatprep.subr.bf16.mxu0 0
      %680 = vmatpush1.bf16.msra.mxu0 0
      %681 = vmatprep.subr.bf16.mxu0 0
      %682 = vmatpush1.bf16.msra.mxu0 0
      %683 = vmatprep.subr.bf16.mxu0 0
      %684 = vmatpush1.bf16.msra.mxu0 0
      %685 = vmatprep.subr.bf16.mxu0 0
      %686 = vmatpush1.bf16.msra.mxu0 0
      %687 = vmatprep.subr.bf16.mxu0 0
      %688 = vmatpush1.bf16.msra.mxu0 0
      %689 = vmatprep.subr.bf16.mxu0 0
      %690 = vmatpush1.bf16.msra.mxu0 0
      %691 = vmatprep.subr.bf16.mxu0 0
      %692 = vmatpush1.bf16.msra.mxu0 %v582
      %693 = vmatprep.subr.bf16.mxu0 0
      %694 = vmatpush1.bf16.msra.mxu0 %v581
      %695 = vmatprep.subr.bf16.mxu0 0
      %696 = vmatpush2.bf16.msra.mxu0 0
      %697 = vmatprep.subr.bf16.mxu0 0
      %698 = vmatpush2.bf16.msra.mxu0 0
      %699 = vmatprep.subr.bf16.mxu0 0
      %700 = vmatpush2.bf16.msra.mxu0 0
      %701 = vmatprep.subr.bf16.mxu0 0
      %702 = vmatpush2.bf16.msra.mxu0 0
      %703 = vmatprep.subr.bf16.mxu0 0
      %704 = vmatpush2.bf16.msra.mxu0 0
      %705 = vmatprep.subr.bf16.mxu0 0
      %706 = vmatpush2.bf16.msra.mxu0 0
      %707 = vmatprep.subr.bf16.mxu0 0
      %708 = vmatpush2.bf16.msra.mxu0 0
      %709 = vmatprep.subr.bf16.mxu0 0
      %710 = vmatpush2.bf16.msra.mxu0 0
      %711 = vmatprep.mubr.bf16.mxu0 0
      %712 = vmatmul.mubr.bf16.gmra.mxu0 %v603
      %v713 = vpop.f32.mrf.mxu0
      %v714 = vadd.f32 %v649, %v713
      %v715 = vpop.f32.mrf.mxu0
      %v716 = vpop.f32.mrf.mxu0
      %v717 = vadd.f32 %v652, %v716
      %v718 = vpop.f32.mrf.mxu0
      %719 = vmatprep.mubr.bf16.mxu0 0
      %720 = vmatmul.mubr.bf16.gmra.mxu0 %v606
      %v721 = vpop.f32.mrf.mxu0
      %v722 = vadd.f32 %v657, %v721
      %v723 = vpop.f32.mrf.mxu0
      %v724 = vpop.f32.mrf.mxu0
      %v725 = vadd.f32 %v660, %v724
      %v726 = vpop.f32.mrf.mxu0
      %727 = vmatprep.mubr.bf16.mxu0 0
      %728 = vmatmul.mubr.bf16.gmra.mxu0 %v609
      %v729 = vpop.f32.mrf.mxu0
      %v730 = vadd.f32 %v665, %v729
      %v731 = vpop.f32.mrf.mxu0
      %v732 = vpop.f32.mrf.mxu0
      %v733 = vadd.f32 %v668, %v732
      %v734 = vpop.f32.mrf.mxu0
      %735 = vmatprep.mubr.bf16.mxu0 0
      %736 = vmatmul.mubr.bf16.gmra.mxu0 %v612
      %v737 = vpop.f32.mrf.mxu0
      %v738 = vadd.f32 %v673, %v737
      %v739 = vpop.f32.mrf.mxu0
      %v740 = vpop.f32.mrf.mxu0
      %v741 = vadd.f32 %v676, %v740
      %v742 = vpop.f32.mrf.mxu0
      %743 = vdwg.mxu0
      %v744 = vmax.f32 %v714, 0.0
      %v745 = vmax.f32 %v717, 0.0
      %v746 = vmax.f32 %v722, 0.0
      %v747 = vmax.f32 %v725, 0.0
      %v748 = vmax.f32 %v730, 0.0
      %v749 = vmax.f32 %v733, 0.0
      %v750 = vmax.f32 %v738, 0.0
      %v751 = vmax.f32 %v741, 0.0
      %v752 = vlaneseq
      %v753 = vshrl.u32 %v752, 7
      %v754 = vadd.s32 %v753, 8
      %v755 = vadd.s32 %v753, 16
      %v756 = vadd.s32 %v753, 24
      %v757 = vadd.s32 %v753, 32
      %v758 = vadd.s32 %v753, 40
      %v759 = vadd.s32 %v753, 48
      %v760 = vadd.s32 %v753, 56
      %vm761 = vcmp.lt.s32.totalorder %v753, 0
      %v762 = vsub.s32 0, %v753
      %v763 = vsel %vm761, %v762, %v753
      %v764 = vshrl.u32 %v763, 3
      %v765 = vand.u32 %v763, 7
      %v766 = vsub.s32 0, %v765
      %v767 = vsel %vm761, %v766, %v765
      %vm768 = vcmp.lt.s32.totalorder %v754, 0
      %v769 = vsub.s32 0, %v754
      %v770 = vsel %vm768, %v769, %v754
      %v771 = vshrl.u32 %v770, 3
      %v772 = vand.u32 %v770, 7
      %v773 = vsub.s32 0, %v772
      %v774 = vsel %vm768, %v773, %v772
      %vm775 = vcmp.lt.s32.totalorder %v755, 0
      %v776 = vsub.s32 0, %v755
      %v777 = vsel %vm775, %v776, %v755
      %v778 = vshrl.u32 %v777, 3
      %v779 = vand.u32 %v777, 7
      %v780 = vsub.s32 0, %v779
      %v781 = vsel %vm775, %v780, %v779
      %vm782 = vcmp.lt.s32.totalorder %v756, 0
      %v783 = vsub.s32 0, %v756
      %v784 = vsel %vm782, %v783, %v756
      %v785 = vshrl.u32 %v784, 3
      %v786 = vand.u32 %v784, 7
      %v787 = vsub.s32 0, %v786
      %v788 = vsel %vm782, %v787, %v786
      %vm789 = vcmp.lt.s32.totalorder %v757, 0
      %v790 = vsub.s32 0, %v757
      %v791 = vsel %vm789, %v790, %v757
      %v792 = vshrl.u32 %v791, 3
      %v793 = vand.u32 %v791, 7
      %v794 = vsub.s32 0, %v793
      %v795 = vsel %vm789, %v794, %v793
      %vm796 = vcmp.lt.s32.totalorder %v758, 0
      %v797 = vsub.s32 0, %v758
      %v798 = vsel %vm796, %v797, %v758
      %v799 = vshrl.u32 %v798, 3
      %v800 = vand.u32 %v798, 7
      %v801 = vsub.s32 0, %v800
      %v802 = vsel %vm796, %v801, %v800
      %vm803 = vcmp.lt.s32.totalorder %v759, 0
      %v804 = vsub.s32 0, %v759
      %v805 = vsel %vm803, %v804, %v759
      %v806 = vshrl.u32 %v805, 3
      %v807 = vand.u32 %v805, 7
      %v808 = vsub.s32 0, %v807
      %v809 = vsel %vm803, %v808, %v807
      %vm810 = vcmp.lt.s32.totalorder %v760, 0
      %v811 = vsub.s32 0, %v760
      %v812 = vsel %vm810, %v811, %v760
      %v813 = vshrl.u32 %v812, 3
      %v814 = vand.u32 %v812, 7
      %v815 = vsub.s32 0, %v814
      %v816 = vsel %vm810, %v815, %v814
      %vm817 = vcmp.ne.s32.totalorder %v767, 0
      %vm818 = vcmp.ne.s32.totalorder %v774, 0
      %vm819 = vcmp.ne.s32.totalorder %v781, 0
      %vm820 = vcmp.ne.s32.totalorder %v788, 0
      %vm821 = vcmp.ne.s32.totalorder %v795, 0
      %vm822 = vcmp.ne.s32.totalorder %v802, 0
      %vm823 = vcmp.ne.s32.totalorder %v809, 0
      %vm824 = vcmp.ne.s32.totalorder %v816, 0
      %vm825 = vcmp.lt.s32.totalorder %v767, 0
      %vm826 = vcmp.lt.s32.totalorder %v774, 0
      %vm827 = vcmp.lt.s32.totalorder %v781, 0
      %vm828 = vcmp.lt.s32.totalorder %v788, 0
      %vm829 = vcmp.lt.s32.totalorder %v795, 0
      %vm830 = vcmp.lt.s32.totalorder %v802, 0
      %vm831 = vcmp.lt.s32.totalorder %v809, 0
      %vm832 = vcmp.lt.s32.totalorder %v816, 0
      %vm833 = vmand %vm825, %vm817
      %vm834 = vmand %vm826, %vm818
      %vm835 = vmand %vm827, %vm819
      %vm836 = vmand %vm828, %vm820
      %vm837 = vmand %vm829, %vm821
      %vm838 = vmand %vm830, %vm822
      %vm839 = vmand %vm831, %vm823
      %vm840 = vmand %vm832, %vm824
      %v841 = vadd.s32 %v767, 8
      %v842 = vadd.s32 %v774, 8
      %v843 = vadd.s32 %v781, 8
      %v844 = vadd.s32 %v788, 8
      %v845 = vadd.s32 %v795, 8
      %v846 = vadd.s32 %v802, 8
      %v847 = vadd.s32 %v809, 8
      %v848 = vadd.s32 %v816, 8
      %v849 = vsel %vm833, %v841, %v767
      %v850 = vsel %vm834, %v842, %v774
      %v851 = vsel %vm835, %v843, %v781
      %v852 = vsel %vm836, %v844, %v788
      %v853 = vsel %vm837, %v845, %v795
      %v854 = vsel %vm838, %v846, %v802
      %v855 = vsel %vm839, %v847, %v809
      %v856 = vsel %vm840, %v848, %v816
      %vm857 = vcmp.ge.s32.totalorder %v849, 1
      %vm858 = vcmp.ge.s32.totalorder %v850, 1
      %vm859 = vcmp.ge.s32.totalorder %v851, 1
      %vm860 = vcmp.ge.s32.totalorder %v852, 1
      %vm861 = vcmp.ge.s32.totalorder %v853, 1
      %vm862 = vcmp.ge.s32.totalorder %v854, 1
      %vm863 = vcmp.ge.s32.totalorder %v855, 1
      %vm864 = vcmp.ge.s32.totalorder %v856, 1
      %vm865 = vcmp.lt.s32.totalorder %v849, 7
      %vm866 = vcmp.lt.s32.totalorder %v850, 7
      %vm867 = vcmp.lt.s32.totalorder %v851, 7
      %vm868 = vcmp.lt.s32.totalorder %v852, 7
      %vm869 = vcmp.lt.s32.totalorder %v853, 7
      %vm870 = vcmp.lt.s32.totalorder %v854, 7
      %vm871 = vcmp.lt.s32.totalorder %v855, 7
      %vm872 = vcmp.lt.s32.totalorder %v856, 7
      %vm880 = vcmask 1040384
      %v881 = vrot.slane %v744, 7
      %v882 = vrot.slane %v745, 7
      %v883 = vsel %vm880, %v881, %v882
      %v884 = vrot.slane %v746, 7
      %v885 = vsel %vm880, %v882, %v884
      %v886 = vrot.slane %v747, 7
      %v887 = vsel %vm880, %v884, %v886
      %v888 = vrot.slane %v748, 7
      %v889 = vsel %vm880, %v886, %v888
      %v890 = vrot.slane %v749, 7
      %v891 = vsel %vm880, %v888, %v890
      %v892 = vrot.slane %v750, 7
      %v893 = vsel %vm880, %v890, %v892
      %v901 = vsel %vm880, 0.0, %v881
      %v902 = vsel %vm858, %v901, 0.0
      %v903 = vsel %vm859, %v883, 0.0
      %v904 = vsel %vm860, %v885, 0.0
      %v905 = vsel %vm861, %v887, 0.0
      %v906 = vsel %vm862, %v889, 0.0
      %v907 = vsel %vm863, %v891, 0.0
      %v908 = vsel %vm864, %v893, 0.0
      %v909 = vpack.c.bf16 %v902, 0.0
      %v910 = vpack.c.bf16 %v904, %v903
      %v911 = vpack.c.bf16 %v906, %v905
      %v912 = vpack.c.bf16 %v908, %v907
      %v913 = vld [vmem:[%s3] sm:$0xf]
      %v914 = vld [vmem:[%s3 + $0x4] sm:$0xf]
      %v915 = vld [vmem:[%s3 + $0x8] sm:$0xf]
      %v916 = vld [vmem:[%s3 + $0xc] sm:$0xf]
      %v917 = vld [vmem:[%s3 + $0x10] sm:$0xf]
      %v918 = vld [vmem:[%s3 + $0x14] sm:$0xf]
      %v919 = vld [vmem:[%s3 + $0x18] sm:$0xf]
      %v920 = vld [vmem:[%s3 + $0x1c] sm:$0xf]
      %v921 = vpack.c.bf16 %v744, 0.0
      %v922 = vpack.c.bf16 %v746, %v745
      %v923 = vpack.c.bf16 %v748, %v747
      %v924 = vpack.c.bf16 %v750, %v749
      %s925 = scalar_lea.vmem %s3, 32
      %v926 = vld [vmem:[%s925] sm:$0xf]
      %v927 = vld [vmem:[%s925 + $0x4] sm:$0xf]
      %v928 = vld [vmem:[%s925 + $0x8] sm:$0xf]
      %v929 = vld [vmem:[%s925 + $0xc] sm:$0xf]
      %v930 = vld [vmem:[%s925 + $0x10] sm:$0xf]
      %v931 = vld [vmem:[%s925 + $0x14] sm:$0xf]
      %v932 = vld [vmem:[%s925 + $0x18] sm:$0xf]
      %v933 = vld [vmem:[%s925 + $0x1c] sm:$0xf]
      %v942 = vunpack.c.l.b16 %v926
      %v943 = vunpack.c.l.b16 %v927
      %v944 = vunpack.c.l.b16 %v928
      %v945 = vunpack.c.l.b16 %v929
      %v946 = vunpack.c.l.b16 %v930
      %v947 = vunpack.c.l.b16 %v931
      %v948 = vunpack.c.l.b16 %v932
      %v949 = vunpack.c.l.b16 %v933
      %v950 = vpack.c.b16 %v943, %v942
      %v951 = vpack.c.b16 %v945, %v944
      %v952 = vpack.c.b16 %v947, %v946
      %v953 = vpack.c.b16 %v949, %v948
      %vm958 = vcmask 523264
      %v960 = vsel %vm958, %v921, 0
      %v963 = vsel %vm958, %v922, 0
      %v966 = vsel %vm958, %v923, 0
      %v969 = vsel %vm958, %v924, 0
      %971 = vmatprep.subr.bf16.mxu0 0
      %972 = vmatpush1.bf16.msra.mxu0 0
      %973 = vmatprep.subr.bf16.mxu0 0
      %974 = vmatpush1.bf16.msra.mxu0 0
      %975 = vmatprep.subr.bf16.mxu0 0
      %976 = vmatpush1.bf16.msra.mxu0 0
      %977 = vmatprep.subr.bf16.mxu0 0
      %978 = vmatpush1.bf16.msra.mxu0 0
      %979 = vmatprep.subr.bf16.mxu0 0
      %980 = vmatpush1.bf16.msra.mxu0 %v953
      %981 = vmatprep.subr.bf16.mxu0 0
      %982 = vmatpush1.bf16.msra.mxu0 %v952
      %983 = vmatprep.subr.bf16.mxu0 0
      %984 = vmatpush1.bf16.msra.mxu0 %v951
      %985 = vmatprep.subr.bf16.mxu0 0
      %986 = vmatpush1.bf16.msra.mxu0 %v950
      %987 = vmatprep.subr.bf16.mxu0 0
      %988 = vmatpush2.bf16.msra.mxu0 0
      %989 = vmatprep.subr.bf16.mxu0 0
      %990 = vmatpush2.bf16.msra.mxu0 0
      %991 = vmatprep.subr.bf16.mxu0 0
      %992 = vmatpush2.bf16.msra.mxu0 0
      %993 = vmatprep.subr.bf16.mxu0 0
      %994 = vmatpush2.bf16.msra.mxu0 0
      %995 = vmatprep.subr.bf16.mxu0 0
      %996 = vmatpush2.bf16.msra.mxu0 0
      %997 = vmatprep.subr.bf16.mxu0 0
      %998 = vmatpush2.bf16.msra.mxu0 0
      %999 = vmatprep.subr.bf16.mxu0 0
      %1000 = vmatpush2.bf16.msra.mxu0 0
      %1001 = vmatprep.subr.bf16.mxu0 0
      %1002 = vmatpush2.bf16.msra.mxu0 0
      %1003 = vmatprep.mubr.bf16.mxu0 0
      %1004 = vmatmul.mubr.bf16.gmra.mxu0 %v960
      %v1005 = vpop.f32.mrf.mxu0
      %v1006 = vadd.f32 0.0, %v1005
      %v1007 = vpop.f32.mrf.mxu0
      %v1008 = vpop.f32.mrf.mxu0
      %v1009 = vadd.f32 0.0, %v1008
      %v1010 = vpop.f32.mrf.mxu0
      %1011 = vmatprep.mubr.bf16.mxu0 0
      %1012 = vmatmul.mubr.bf16.gmra.mxu0 %v963
      %v1013 = vpop.f32.mrf.mxu0
      %v1014 = vadd.f32 0.0, %v1013
      %v1015 = vpop.f32.mrf.mxu0
      %v1016 = vpop.f32.mrf.mxu0
      %v1017 = vadd.f32 0.0, %v1016
      %v1018 = vpop.f32.mrf.mxu0
      %1019 = vmatprep.mubr.bf16.mxu0 0
      %1020 = vmatmul.mubr.bf16.gmra.mxu0 %v966
      %v1021 = vpop.f32.mrf.mxu0
      %v1022 = vadd.f32 0.0, %v1021
      %v1023 = vpop.f32.mrf.mxu0
      %v1024 = vpop.f32.mrf.mxu0
      %v1025 = vadd.f32 0.0, %v1024
      %v1026 = vpop.f32.mrf.mxu0
      %1027 = vmatprep.mubr.bf16.mxu0 0
      %1028 = vmatmul.mubr.bf16.gmra.mxu0 %v969
      %v1029 = vpop.f32.mrf.mxu0
      %v1030 = vadd.f32 0.0, %v1029
      %v1031 = vpop.f32.mrf.mxu0
      %v1032 = vpop.f32.mrf.mxu0
      %v1033 = vadd.f32 0.0, %v1032
      %v1034 = vpop.f32.mrf.mxu0
      %1035 = vdwg.mxu0
      %v1044 = vunpack.c.l.b16 %v913
      %v1045 = vunpack.c.l.b16 %v914
      %v1046 = vunpack.c.l.b16 %v915
      %v1047 = vunpack.c.l.b16 %v916
      %v1048 = vunpack.c.l.b16 %v917
      %v1049 = vunpack.c.l.b16 %v918
      %v1050 = vunpack.c.l.b16 %v919
      %v1051 = vunpack.c.l.b16 %v920
      %v1052 = vpack.c.b16 %v1045, %v1044
      %v1053 = vpack.c.b16 %v1047, %v1046
      %v1054 = vpack.c.b16 %v1049, %v1048
      %v1055 = vpack.c.b16 %v1051, %v1050
      %v1061 = vsel %vm958, %v909, 0
      %v1064 = vsel %vm958, %v910, 0
      %v1067 = vsel %vm958, %v911, 0
      %v1070 = vsel %vm958, %v912, 0
      %1072 = vmatprep.subr.bf16.mxu0 0
      %1073 = vmatpush1.bf16.msra.mxu0 0
      %1074 = vmatprep.subr.bf16.mxu0 0
      %1075 = vmatpush1.bf16.msra.mxu0 0
      %1076 = vmatprep.subr.bf16.mxu0 0
      %1077 = vmatpush1.bf16.msra.mxu0 0
      %1078 = vmatprep.subr.bf16.mxu0 0
      %1079 = vmatpush1.bf16.msra.mxu0 0
      %1080 = vmatprep.subr.bf16.mxu0 0
      %1081 = vmatpush1.bf16.msra.mxu0 %v1055
      %1082 = vmatprep.subr.bf16.mxu0 0
      %1083 = vmatpush1.bf16.msra.mxu0 %v1054
      %1084 = vmatprep.subr.bf16.mxu0 0
      %1085 = vmatpush1.bf16.msra.mxu0 %v1053
      %1086 = vmatprep.subr.bf16.mxu0 0
      %1087 = vmatpush1.bf16.msra.mxu0 %v1052
      %1088 = vmatprep.subr.bf16.mxu0 0
      %1089 = vmatpush2.bf16.msra.mxu0 0
      %1090 = vmatprep.subr.bf16.mxu0 0
      %1091 = vmatpush2.bf16.msra.mxu0 0
      %1092 = vmatprep.subr.bf16.mxu0 0
      %1093 = vmatpush2.bf16.msra.mxu0 0
      %1094 = vmatprep.subr.bf16.mxu0 0
      %1095 = vmatpush2.bf16.msra.mxu0 0
      %1096 = vmatprep.subr.bf16.mxu0 0
      %1097 = vmatpush2.bf16.msra.mxu0 0
      %1098 = vmatprep.subr.bf16.mxu0 0
      %1099 = vmatpush2.bf16.msra.mxu0 0
      %1100 = vmatprep.subr.bf16.mxu0 0
      %1101 = vmatpush2.bf16.msra.mxu0 0
      %1102 = vmatprep.subr.bf16.mxu0 0
      %1103 = vmatpush2.bf16.msra.mxu0 0
      %1104 = vmatprep.mubr.bf16.mxu0 0
      %1105 = vmatmul.mubr.bf16.gmra.mxu0 %v1061
      %v1106 = vpop.f32.mrf.mxu0
      %v1107 = vadd.f32 %v1006, %v1106
      %v1108 = vpop.f32.mrf.mxu0
      %v1109 = vpop.f32.mrf.mxu0
      %v1110 = vadd.f32 %v1009, %v1109
      %v1111 = vpop.f32.mrf.mxu0
      %1112 = vmatprep.mubr.bf16.mxu0 0
      %1113 = vmatmul.mubr.bf16.gmra.mxu0 %v1064
      %v1114 = vpop.f32.mrf.mxu0
      %v1115 = vadd.f32 %v1014, %v1114
      %v1116 = vpop.f32.mrf.mxu0
      %v1117 = vpop.f32.mrf.mxu0
      %v1118 = vadd.f32 %v1017, %v1117
      %v1119 = vpop.f32.mrf.mxu0
      %1120 = vmatprep.mubr.bf16.mxu0 0
      %1121 = vmatmul.mubr.bf16.gmra.mxu0 %v1067
      %v1122 = vpop.f32.mrf.mxu0
      %v1123 = vadd.f32 %v1022, %v1122
      %v1124 = vpop.f32.mrf.mxu0
      %v1125 = vpop.f32.mrf.mxu0
      %v1126 = vadd.f32 %v1025, %v1125
      %v1127 = vpop.f32.mrf.mxu0
      %1128 = vmatprep.mubr.bf16.mxu0 0
      %1129 = vmatmul.mubr.bf16.gmra.mxu0 %v1070
      %v1130 = vpop.f32.mrf.mxu0
      %v1131 = vadd.f32 %v1030, %v1130
      %v1132 = vpop.f32.mrf.mxu0
      %v1133 = vpop.f32.mrf.mxu0
      %v1134 = vadd.f32 %v1033, %v1133
      %v1135 = vpop.f32.mrf.mxu0
      %1136 = vdwg.mxu0
      %vm1138 = vcmask 1046528
      %v1139 = vrot.slane %v744, 1
      %v1140 = vrot.slane %v745, 1
      %v1141 = vsel %vm1138, %v1139, %v1140
      %v1142 = vrot.slane %v746, 1
      %v1143 = vsel %vm1138, %v1140, %v1142
      %v1144 = vrot.slane %v747, 1
      %v1145 = vsel %vm1138, %v1142, %v1144
      %v1146 = vrot.slane %v748, 1
      %v1147 = vsel %vm1138, %v1144, %v1146
      %v1148 = vrot.slane %v749, 1
      %v1149 = vsel %vm1138, %v1146, %v1148
      %v1150 = vrot.slane %v750, 1
      %v1151 = vsel %vm1138, %v1148, %v1150
      %v1152 = vrot.slane %v751, 1
      %v1153 = vsel %vm1138, %v1150, %v1152
      %v1162 = vsel %vm1138, 0.0, %v1139
      %v1163 = vsel %vm865, %v1162, 0.0
      %v1164 = vsel %vm866, %v1141, 0.0
      %v1165 = vsel %vm867, %v1143, 0.0
      %v1166 = vsel %vm868, %v1145, 0.0
      %v1167 = vsel %vm869, %v1147, 0.0
      %v1168 = vsel %vm870, %v1149, 0.0
      %v1169 = vsel %vm871, %v1151, 0.0
      %v1170 = vsel %vm872, %v1153, 0.0
      %v1171 = vpack.c.bf16 %v1164, %v1163
      %v1172 = vpack.c.bf16 %v1166, %v1165
      %v1173 = vpack.c.bf16 %v1168, %v1167
      %v1174 = vpack.c.bf16 %v1170, %v1169
      %s1175 = scalar_lea.vmem %s3, 64
      %v1176 = vld [vmem:[%s1175] sm:$0xf]
      %v1177 = vld [vmem:[%s1175 + $0x4] sm:$0xf]
      %v1178 = vld [vmem:[%s1175 + $0x8] sm:$0xf]
      %v1179 = vld [vmem:[%s1175 + $0xc] sm:$0xf]
      %v1180 = vld [vmem:[%s1175 + $0x10] sm:$0xf]
      %v1181 = vld [vmem:[%s1175 + $0x14] sm:$0xf]
      %v1182 = vld [vmem:[%s1175 + $0x18] sm:$0xf]
      %v1183 = vld [vmem:[%s1175 + $0x1c] sm:$0xf]
      %v1192 = vunpack.c.l.b16 %v1176
      %v1193 = vunpack.c.l.b16 %v1177
      %v1194 = vunpack.c.l.b16 %v1178
      %v1195 = vunpack.c.l.b16 %v1179
      %v1196 = vunpack.c.l.b16 %v1180
      %v1197 = vunpack.c.l.b16 %v1181
      %v1198 = vunpack.c.l.b16 %v1182
      %v1199 = vunpack.c.l.b16 %v1183
      %v1200 = vpack.c.b16 %v1193, %v1192
      %v1201 = vpack.c.b16 %v1195, %v1194
      %v1202 = vpack.c.b16 %v1197, %v1196
      %v1203 = vpack.c.b16 %v1199, %v1198
      %v1209 = vsel %vm958, %v1171, 0
      %v1212 = vsel %vm958, %v1172, 0
      %v1215 = vsel %vm958, %v1173, 0
      %v1218 = vsel %vm958, %v1174, 0
      %1220 = vmatprep.subr.bf16.mxu0 0
      %1221 = vmatpush1.bf16.msra.mxu0 0
      %1222 = vmatprep.subr.bf16.mxu0 0
      %1223 = vmatpush1.bf16.msra.mxu0 0
      %1224 = vmatprep.subr.bf16.mxu0 0
      %1225 = vmatpush1.bf16.msra.mxu0 0
      %1226 = vmatprep.subr.bf16.mxu0 0
      %1227 = vmatpush1.bf16.msra.mxu0 0
      %1228 = vmatprep.subr.bf16.mxu0 0
      %1229 = vmatpush1.bf16.msra.mxu0 %v1203
      %1230 = vmatprep.subr.bf16.mxu0 0
      %1231 = vmatpush1.bf16.msra.mxu0 %v1202
      %1232 = vmatprep.subr.bf16.mxu0 0
      %1233 = vmatpush1.bf16.msra.mxu0 %v1201
      %1234 = vmatprep.subr.bf16.mxu0 0
      %1235 = vmatpush1.bf16.msra.mxu0 %v1200
      %1236 = vmatprep.subr.bf16.mxu0 0
      %1237 = vmatpush2.bf16.msra.mxu0 0
      %1238 = vmatprep.subr.bf16.mxu0 0
      %1239 = vmatpush2.bf16.msra.mxu0 0
      %1240 = vmatprep.subr.bf16.mxu0 0
      %1241 = vmatpush2.bf16.msra.mxu0 0
      %1242 = vmatprep.subr.bf16.mxu0 0
      %1243 = vmatpush2.bf16.msra.mxu0 0
      %1244 = vmatprep.subr.bf16.mxu0 0
      %1245 = vmatpush2.bf16.msra.mxu0 0
      %1246 = vmatprep.subr.bf16.mxu0 0
      %1247 = vmatpush2.bf16.msra.mxu0 0
      %1248 = vmatprep.subr.bf16.mxu0 0
      %1249 = vmatpush2.bf16.msra.mxu0 0
      %1250 = vmatprep.subr.bf16.mxu0 0
      %1251 = vmatpush2.bf16.msra.mxu0 0
      %1252 = vmatprep.mubr.bf16.mxu0 0
      %1253 = vmatmul.mubr.bf16.gmra.mxu0 %v1209
      %v1254 = vpop.f32.mrf.mxu0
      %v1255 = vadd.f32 0.0, %v1254
      %v1256 = vpop.f32.mrf.mxu0
      %v1257 = vpop.f32.mrf.mxu0
      %v1258 = vadd.f32 0.0, %v1257
      %v1259 = vpop.f32.mrf.mxu0
      %1260 = vmatprep.mubr.bf16.mxu0 0
      %1261 = vmatmul.mubr.bf16.gmra.mxu0 %v1212
      %v1262 = vpop.f32.mrf.mxu0
      %v1263 = vadd.f32 0.0, %v1262
      %v1264 = vpop.f32.mrf.mxu0
      %v1265 = vpop.f32.mrf.mxu0
      %v1266 = vadd.f32 0.0, %v1265
      %v1267 = vpop.f32.mrf.mxu0
      %1268 = vmatprep.mubr.bf16.mxu0 0
      %1269 = vmatmul.mubr.bf16.gmra.mxu0 %v1215
      %v1270 = vpop.f32.mrf.mxu0
      %v1271 = vadd.f32 0.0, %v1270
      %v1272 = vpop.f32.mrf.mxu0
      %v1273 = vpop.f32.mrf.mxu0
      %v1274 = vadd.f32 0.0, %v1273
      %v1275 = vpop.f32.mrf.mxu0
      %1276 = vmatprep.mubr.bf16.mxu0 0
      %1277 = vmatmul.mubr.bf16.gmra.mxu0 %v1218
      %v1278 = vpop.f32.mrf.mxu0
      %v1279 = vadd.f32 0.0, %v1278
      %v1280 = vpop.f32.mrf.mxu0
      %v1281 = vpop.f32.mrf.mxu0
      %v1282 = vadd.f32 0.0, %v1281
      %v1283 = vpop.f32.mrf.mxu0
      %1284 = vdwg.mxu0
      %v1285 = vadd.f32 %v1107, %v1255
      %v1286 = vadd.f32 %v1110, %v1258
      %v1287 = vadd.f32 %v1115, %v1263
      %v1288 = vadd.f32 %v1118, %v1266
      %v1289 = vadd.f32 %v1123, %v1271
      %v1290 = vadd.f32 %v1126, %v1274
      %v1291 = vadd.f32 %v1131, %v1279
      %v1292 = vadd.f32 %v1134, %v1282
      %v1293 = vrot.slane %v751, 7
      %v1294 = vsel %vm880, %v892, %v1293
      %v1296 = vsel %vm857, %v901, 0.0
      %v1297 = vsel %vm858, %v883, 0.0
      %v1298 = vsel %vm859, %v885, 0.0
      %v1299 = vsel %vm860, %v887, 0.0
      %v1300 = vsel %vm861, %v889, 0.0
      %v1301 = vsel %vm862, %v891, 0.0
      %v1302 = vsel %vm863, %v893, 0.0
      %v1303 = vsel %vm864, %v1294, 0.0
      %v1304 = vpack.c.bf16 %v1297, %v1296
      %v1305 = vpack.c.bf16 %v1299, %v1298
      %v1306 = vpack.c.bf16 %v1301, %v1300
      %v1307 = vpack.c.bf16 %v1303, %v1302
      %s1308 = scalar_lea.vmem %s3, 96
      %v1309 = vld [vmem:[%s1308] sm:$0xf]
      %v1310 = vld [vmem:[%s1308 + $0x4] sm:$0xf]
      %v1311 = vld [vmem:[%s1308 + $0x8] sm:$0xf]
      %v1312 = vld [vmem:[%s1308 + $0xc] sm:$0xf]
      %v1313 = vld [vmem:[%s1308 + $0x10] sm:$0xf]
      %v1314 = vld [vmem:[%s1308 + $0x14] sm:$0xf]
      %v1315 = vld [vmem:[%s1308 + $0x18] sm:$0xf]
      %v1316 = vld [vmem:[%s1308 + $0x1c] sm:$0xf]
      %v1325 = vunpack.c.l.b16 %v1309
      %v1326 = vunpack.c.l.b16 %v1310
      %v1327 = vunpack.c.l.b16 %v1311
      %v1328 = vunpack.c.l.b16 %v1312
      %v1329 = vunpack.c.l.b16 %v1313
      %v1330 = vunpack.c.l.b16 %v1314
      %v1331 = vunpack.c.l.b16 %v1315
      %v1332 = vunpack.c.l.b16 %v1316
      %v1333 = vpack.c.b16 %v1326, %v1325
      %v1334 = vpack.c.b16 %v1328, %v1327
      %v1335 = vpack.c.b16 %v1330, %v1329
      %v1336 = vpack.c.b16 %v1332, %v1331
      %v1342 = vsel %vm958, %v1304, 0
      %v1345 = vsel %vm958, %v1305, 0
      %v1348 = vsel %vm958, %v1306, 0
      %v1351 = vsel %vm958, %v1307, 0
      %1353 = vmatprep.subr.bf16.mxu0 0
      %1354 = vmatpush1.bf16.msra.mxu0 0
      %1355 = vmatprep.subr.bf16.mxu0 0
      %1356 = vmatpush1.bf16.msra.mxu0 0
      %1357 = vmatprep.subr.bf16.mxu0 0
      %1358 = vmatpush1.bf16.msra.mxu0 0
      %1359 = vmatprep.subr.bf16.mxu0 0
      %1360 = vmatpush1.bf16.msra.mxu0 0
      %1361 = vmatprep.subr.bf16.mxu0 0
      %1362 = vmatpush1.bf16.msra.mxu0 %v1336
      %1363 = vmatprep.subr.bf16.mxu0 0
      %1364 = vmatpush1.bf16.msra.mxu0 %v1335
      %1365 = vmatprep.subr.bf16.mxu0 0
      %1366 = vmatpush1.bf16.msra.mxu0 %v1334
      %1367 = vmatprep.subr.bf16.mxu0 0
      %1368 = vmatpush1.bf16.msra.mxu0 %v1333
      %1369 = vmatprep.subr.bf16.mxu0 0
      %1370 = vmatpush2.bf16.msra.mxu0 0
      %1371 = vmatprep.subr.bf16.mxu0 0
      %1372 = vmatpush2.bf16.msra.mxu0 0
      %1373 = vmatprep.subr.bf16.mxu0 0
      %1374 = vmatpush2.bf16.msra.mxu0 0
      %1375 = vmatprep.subr.bf16.mxu0 0
      %1376 = vmatpush2.bf16.msra.mxu0 0
      %1377 = vmatprep.subr.bf16.mxu0 0
      %1378 = vmatpush2.bf16.msra.mxu0 0
      %1379 = vmatprep.subr.bf16.mxu0 0
      %1380 = vmatpush2.bf16.msra.mxu0 0
      %1381 = vmatprep.subr.bf16.mxu0 0
      %1382 = vmatpush2.bf16.msra.mxu0 0
      %1383 = vmatprep.subr.bf16.mxu0 0
      %1384 = vmatpush2.bf16.msra.mxu0 0
      %1385 = vmatprep.mubr.bf16.mxu0 0
      %1386 = vmatmul.mubr.bf16.gmra.mxu0 %v1342
      %v1387 = vpop.f32.mrf.mxu0
      %v1388 = vadd.f32 0.0, %v1387
      %v1389 = vpop.f32.mrf.mxu0
      %v1390 = vpop.f32.mrf.mxu0
      %v1391 = vadd.f32 0.0, %v1390
      %v1392 = vpop.f32.mrf.mxu0
      %1393 = vmatprep.mubr.bf16.mxu0 0
      %1394 = vmatmul.mubr.bf16.gmra.mxu0 %v1345
      %v1395 = vpop.f32.mrf.mxu0
      %v1396 = vadd.f32 0.0, %v1395
      %v1397 = vpop.f32.mrf.mxu0
      %v1398 = vpop.f32.mrf.mxu0
      %v1399 = vadd.f32 0.0, %v1398
      %v1400 = vpop.f32.mrf.mxu0
      %1401 = vmatprep.mubr.bf16.mxu0 0
      %1402 = vmatmul.mubr.bf16.gmra.mxu0 %v1348
      %v1403 = vpop.f32.mrf.mxu0
      %v1404 = vadd.f32 0.0, %v1403
      %v1405 = vpop.f32.mrf.mxu0
      %v1406 = vpop.f32.mrf.mxu0
      %v1407 = vadd.f32 0.0, %v1406
      %v1408 = vpop.f32.mrf.mxu0
      %1409 = vmatprep.mubr.bf16.mxu0 0
      %1410 = vmatmul.mubr.bf16.gmra.mxu0 %v1351
      %v1411 = vpop.f32.mrf.mxu0
      %v1412 = vadd.f32 0.0, %v1411
      %v1413 = vpop.f32.mrf.mxu0
      %v1414 = vpop.f32.mrf.mxu0
      %v1415 = vadd.f32 0.0, %v1414
      %v1416 = vpop.f32.mrf.mxu0
      %1417 = vdwg.mxu0
      %v1418 = vadd.f32 %v1285, %v1388
      %v1419 = vadd.f32 %v1286, %v1391
      %v1420 = vadd.f32 %v1287, %v1396
      %v1421 = vadd.f32 %v1288, %v1399
      %v1422 = vadd.f32 %v1289, %v1404
      %v1423 = vadd.f32 %v1290, %v1407
      %v1424 = vadd.f32 %v1291, %v1412
      %v1425 = vadd.f32 %v1292, %v1415
      %v1426 = vpack.c.bf16 %v745, %v744
      %v1427 = vpack.c.bf16 %v747, %v746
      %v1428 = vpack.c.bf16 %v749, %v748
      %v1429 = vpack.c.bf16 %v751, %v750
      %s1430 = scalar_lea.vmem %s3, 128
      %v1431 = vld [vmem:[%s1430] sm:$0xf]
      %v1432 = vld [vmem:[%s1430 + $0x4] sm:$0xf]
      %v1433 = vld [vmem:[%s1430 + $0x8] sm:$0xf]
      %v1434 = vld [vmem:[%s1430 + $0xc] sm:$0xf]
      %v1435 = vld [vmem:[%s1430 + $0x10] sm:$0xf]
      %v1436 = vld [vmem:[%s1430 + $0x14] sm:$0xf]
      %v1437 = vld [vmem:[%s1430 + $0x18] sm:$0xf]
      %v1438 = vld [vmem:[%s1430 + $0x1c] sm:$0xf]
      %v1447 = vunpack.c.l.b16 %v1431
      %v1448 = vunpack.c.l.b16 %v1432
      %v1449 = vunpack.c.l.b16 %v1433
      %v1450 = vunpack.c.l.b16 %v1434
      %v1451 = vunpack.c.l.b16 %v1435
      %v1452 = vunpack.c.l.b16 %v1436
      %v1453 = vunpack.c.l.b16 %v1437
      %v1454 = vunpack.c.l.b16 %v1438
      %v1455 = vpack.c.b16 %v1448, %v1447
      %v1456 = vpack.c.b16 %v1450, %v1449
      %v1457 = vpack.c.b16 %v1452, %v1451
      %v1458 = vpack.c.b16 %v1454, %v1453
      %v1464 = vsel %vm958, %v1426, 0
      %v1467 = vsel %vm958, %v1427, 0
      %v1470 = vsel %vm958, %v1428, 0
      %v1473 = vsel %vm958, %v1429, 0
      %1475 = vmatprep.subr.bf16.mxu0 0
      %1476 = vmatpush1.bf16.msra.mxu0 0
      %1477 = vmatprep.subr.bf16.mxu0 0
      %1478 = vmatpush1.bf16.msra.mxu0 0
      %1479 = vmatprep.subr.bf16.mxu0 0
      %1480 = vmatpush1.bf16.msra.mxu0 0
      %1481 = vmatprep.subr.bf16.mxu0 0
      %1482 = vmatpush1.bf16.msra.mxu0 0
      %1483 = vmatprep.subr.bf16.mxu0 0
      %1484 = vmatpush1.bf16.msra.mxu0 %v1458
      %1485 = vmatprep.subr.bf16.mxu0 0
      %1486 = vmatpush1.bf16.msra.mxu0 %v1457
      %1487 = vmatprep.subr.bf16.mxu0 0
      %1488 = vmatpush1.bf16.msra.mxu0 %v1456
      %1489 = vmatprep.subr.bf16.mxu0 0
      %1490 = vmatpush1.bf16.msra.mxu0 %v1455
      %1491 = vmatprep.subr.bf16.mxu0 0
      %1492 = vmatpush2.bf16.msra.mxu0 0
      %1493 = vmatprep.subr.bf16.mxu0 0
      %1494 = vmatpush2.bf16.msra.mxu0 0
      %1495 = vmatprep.subr.bf16.mxu0 0
      %1496 = vmatpush2.bf16.msra.mxu0 0
      %1497 = vmatprep.subr.bf16.mxu0 0
      %1498 = vmatpush2.bf16.msra.mxu0 0
      %1499 = vmatprep.subr.bf16.mxu0 0
      %1500 = vmatpush2.bf16.msra.mxu0 0
      %1501 = vmatprep.subr.bf16.mxu0 0
      %1502 = vmatpush2.bf16.msra.mxu0 0
      %1503 = vmatprep.subr.bf16.mxu0 0
      %1504 = vmatpush2.bf16.msra.mxu0 0
      %1505 = vmatprep.subr.bf16.mxu0 0
      %1506 = vmatpush2.bf16.msra.mxu0 0
      %1507 = vmatprep.mubr.bf16.mxu0 0
      %1508 = vmatmul.mubr.bf16.gmra.mxu0 %v1464
      %v1509 = vpop.f32.mrf.mxu0
      %v1510 = vadd.f32 0.0, %v1509
      %v1511 = vpop.f32.mrf.mxu0
      %v1512 = vpop.f32.mrf.mxu0
      %v1513 = vadd.f32 0.0, %v1512
      %v1514 = vpop.f32.mrf.mxu0
      %1515 = vmatprep.mubr.bf16.mxu0 0
      %1516 = vmatmul.mubr.bf16.gmra.mxu0 %v1467
      %v1517 = vpop.f32.mrf.mxu0
      %v1518 = vadd.f32 0.0, %v1517
      %v1519 = vpop.f32.mrf.mxu0
      %v1520 = vpop.f32.mrf.mxu0
      %v1521 = vadd.f32 0.0, %v1520
      %v1522 = vpop.f32.mrf.mxu0
      %1523 = vmatprep.mubr.bf16.mxu0 0
      %1524 = vmatmul.mubr.bf16.gmra.mxu0 %v1470
      %v1525 = vpop.f32.mrf.mxu0
      %v1526 = vadd.f32 0.0, %v1525
      %v1527 = vpop.f32.mrf.mxu0
      %v1528 = vpop.f32.mrf.mxu0
      %v1529 = vadd.f32 0.0, %v1528
      %v1530 = vpop.f32.mrf.mxu0
      %1531 = vmatprep.mubr.bf16.mxu0 0
      %1532 = vmatmul.mubr.bf16.gmra.mxu0 %v1473
      %v1533 = vpop.f32.mrf.mxu0
      %v1534 = vadd.f32 0.0, %v1533
      %v1535 = vpop.f32.mrf.mxu0
      %v1536 = vpop.f32.mrf.mxu0
      %v1537 = vadd.f32 0.0, %v1536
      %v1538 = vpop.f32.mrf.mxu0
      %1539 = vdwg.mxu0
      %v1540 = vadd.f32 %v1418, %v1510
      %v1541 = vadd.f32 %v1419, %v1513
      %v1542 = vadd.f32 %v1420, %v1518
      %v1543 = vadd.f32 %v1421, %v1521
      %v1544 = vadd.f32 %v1422, %v1526
      %v1545 = vadd.f32 %v1423, %v1529
      %v1546 = vadd.f32 %v1424, %v1534
      %v1547 = vadd.f32 %v1425, %v1537
      %v1549 = vsel %vm1138, %v1152, 0.0
      %v1550 = vsel %vm865, %v1141, 0.0
      %v1551 = vsel %vm866, %v1143, 0.0
      %v1552 = vsel %vm867, %v1145, 0.0
      %v1553 = vsel %vm868, %v1147, 0.0
      %v1554 = vsel %vm869, %v1149, 0.0
      %v1555 = vsel %vm870, %v1151, 0.0
      %v1556 = vsel %vm871, %v1153, 0.0
      %v1557 = vsel %vm872, %v1549, 0.0
      %v1558 = vpack.c.bf16 %v1551, %v1550
      %v1559 = vpack.c.bf16 %v1553, %v1552
      %v1560 = vpack.c.bf16 %v1555, %v1554
      %v1561 = vpack.c.bf16 %v1557, %v1556
      %s1562 = scalar_lea.vmem %s3, 160
      %v1563 = vld [vmem:[%s1562] sm:$0xf]
      %v1564 = vld [vmem:[%s1562 + $0x4] sm:$0xf]
      %v1565 = vld [vmem:[%s1562 + $0x8] sm:$0xf]
      %v1566 = vld [vmem:[%s1562 + $0xc] sm:$0xf]
      %v1567 = vld [vmem:[%s1562 + $0x10] sm:$0xf]
      %v1568 = vld [vmem:[%s1562 + $0x14] sm:$0xf]
      %v1569 = vld [vmem:[%s1562 + $0x18] sm:$0xf]
      %v1570 = vld [vmem:[%s1562 + $0x1c] sm:$0xf]
      %v1579 = vunpack.c.l.b16 %v1563
      %v1580 = vunpack.c.l.b16 %v1564
      %v1581 = vunpack.c.l.b16 %v1565
      %v1582 = vunpack.c.l.b16 %v1566
      %v1583 = vunpack.c.l.b16 %v1567
      %v1584 = vunpack.c.l.b16 %v1568
      %v1585 = vunpack.c.l.b16 %v1569
      %v1586 = vunpack.c.l.b16 %v1570
      %v1587 = vpack.c.b16 %v1580, %v1579
      %v1588 = vpack.c.b16 %v1582, %v1581
      %v1589 = vpack.c.b16 %v1584, %v1583
      %v1590 = vpack.c.b16 %v1586, %v1585
      %v1596 = vsel %vm958, %v1558, 0
      %v1599 = vsel %vm958, %v1559, 0
      %v1602 = vsel %vm958, %v1560, 0
      %v1605 = vsel %vm958, %v1561, 0
      %1607 = vmatprep.subr.bf16.mxu0 0
      %1608 = vmatpush1.bf16.msra.mxu0 0
      %1609 = vmatprep.subr.bf16.mxu0 0
      %1610 = vmatpush1.bf16.msra.mxu0 0
      %1611 = vmatprep.subr.bf16.mxu0 0
      %1612 = vmatpush1.bf16.msra.mxu0 0
      %1613 = vmatprep.subr.bf16.mxu0 0
      %1614 = vmatpush1.bf16.msra.mxu0 0
      %1615 = vmatprep.subr.bf16.mxu0 0
      %1616 = vmatpush1.bf16.msra.mxu0 %v1590
      %1617 = vmatprep.subr.bf16.mxu0 0
      %1618 = vmatpush1.bf16.msra.mxu0 %v1589
      %1619 = vmatprep.subr.bf16.mxu0 0
      %1620 = vmatpush1.bf16.msra.mxu0 %v1588
      %1621 = vmatprep.subr.bf16.mxu0 0
      %1622 = vmatpush1.bf16.msra.mxu0 %v1587
      %1623 = vmatprep.subr.bf16.mxu0 0
      %1624 = vmatpush2.bf16.msra.mxu0 0
      %1625 = vmatprep.subr.bf16.mxu0 0
      %1626 = vmatpush2.bf16.msra.mxu0 0
      %1627 = vmatprep.subr.bf16.mxu0 0
      %1628 = vmatpush2.bf16.msra.mxu0 0
      %1629 = vmatprep.subr.bf16.mxu0 0
      %1630 = vmatpush2.bf16.msra.mxu0 0
      %1631 = vmatprep.subr.bf16.mxu0 0
      %1632 = vmatpush2.bf16.msra.mxu0 0
      %1633 = vmatprep.subr.bf16.mxu0 0
      %1634 = vmatpush2.bf16.msra.mxu0 0
      %1635 = vmatprep.subr.bf16.mxu0 0
      %1636 = vmatpush2.bf16.msra.mxu0 0
      %1637 = vmatprep.subr.bf16.mxu0 0
      %1638 = vmatpush2.bf16.msra.mxu0 0
      %1639 = vmatprep.mubr.bf16.mxu0 0
      %1640 = vmatmul.mubr.bf16.gmra.mxu0 %v1596
      %v1641 = vpop.f32.mrf.mxu0
      %v1642 = vadd.f32 0.0, %v1641
      %v1643 = vpop.f32.mrf.mxu0
      %v1644 = vpop.f32.mrf.mxu0
      %v1645 = vadd.f32 0.0, %v1644
      %v1646 = vpop.f32.mrf.mxu0
      %1647 = vmatprep.mubr.bf16.mxu0 0
      %1648 = vmatmul.mubr.bf16.gmra.mxu0 %v1599
      %v1649 = vpop.f32.mrf.mxu0
      %v1650 = vadd.f32 0.0, %v1649
      %v1651 = vpop.f32.mrf.mxu0
      %v1652 = vpop.f32.mrf.mxu0
      %v1653 = vadd.f32 0.0, %v1652
      %v1654 = vpop.f32.mrf.mxu0
      %1655 = vmatprep.mubr.bf16.mxu0 0
      %1656 = vmatmul.mubr.bf16.gmra.mxu0 %v1602
      %v1657 = vpop.f32.mrf.mxu0
      %v1658 = vadd.f32 0.0, %v1657
      %v1659 = vpop.f32.mrf.mxu0
      %v1660 = vpop.f32.mrf.mxu0
      %v1661 = vadd.f32 0.0, %v1660
      %v1662 = vpop.f32.mrf.mxu0
      %1663 = vmatprep.mubr.bf16.mxu0 0
      %1664 = vmatmul.mubr.bf16.gmra.mxu0 %v1605
      %v1665 = vpop.f32.mrf.mxu0
      %v1666 = vadd.f32 0.0, %v1665
      %v1667 = vpop.f32.mrf.mxu0
      %v1668 = vpop.f32.mrf.mxu0
      %v1669 = vadd.f32 0.0, %v1668
      %v1670 = vpop.f32.mrf.mxu0
      %1671 = vdwg.mxu0
      %v1672 = vadd.f32 %v1540, %v1642
      %v1673 = vadd.f32 %v1541, %v1645
      %v1674 = vadd.f32 %v1542, %v1650
      %v1675 = vadd.f32 %v1543, %v1653
      %v1676 = vadd.f32 %v1544, %v1658
      %v1677 = vadd.f32 %v1545, %v1661
      %v1678 = vadd.f32 %v1546, %v1666
      %v1679 = vadd.f32 %v1547, %v1669
      %v1681 = vsel %vm880, %v1293, 0.0
      %v1682 = vsel %vm857, %v883, 0.0
      %v1683 = vsel %vm858, %v885, 0.0
      %v1684 = vsel %vm859, %v887, 0.0
      %v1685 = vsel %vm860, %v889, 0.0
      %v1686 = vsel %vm861, %v891, 0.0
      %v1687 = vsel %vm862, %v893, 0.0
      %v1688 = vsel %vm863, %v1294, 0.0
      %v1689 = vsel %vm864, %v1681, 0.0
      %v1690 = vpack.c.bf16 %v1683, %v1682
      %v1691 = vpack.c.bf16 %v1685, %v1684
      %v1692 = vpack.c.bf16 %v1687, %v1686
      %v1693 = vpack.c.bf16 %v1689, %v1688
      %s1694 = scalar_lea.vmem %s3, 192
      %v1695 = vld [vmem:[%s1694] sm:$0xf]
      %v1696 = vld [vmem:[%s1694 + $0x4] sm:$0xf]
      %v1697 = vld [vmem:[%s1694 + $0x8] sm:$0xf]
      %v1698 = vld [vmem:[%s1694 + $0xc] sm:$0xf]
      %v1699 = vld [vmem:[%s1694 + $0x10] sm:$0xf]
      %v1700 = vld [vmem:[%s1694 + $0x14] sm:$0xf]
      %v1701 = vld [vmem:[%s1694 + $0x18] sm:$0xf]
      %v1702 = vld [vmem:[%s1694 + $0x1c] sm:$0xf]
      %v1711 = vunpack.c.l.b16 %v1695
      %v1712 = vunpack.c.l.b16 %v1696
      %v1713 = vunpack.c.l.b16 %v1697
      %v1714 = vunpack.c.l.b16 %v1698
      %v1715 = vunpack.c.l.b16 %v1699
      %v1716 = vunpack.c.l.b16 %v1700
      %v1717 = vunpack.c.l.b16 %v1701
      %v1718 = vunpack.c.l.b16 %v1702
      %v1719 = vpack.c.b16 %v1712, %v1711
      %v1720 = vpack.c.b16 %v1714, %v1713
      %v1721 = vpack.c.b16 %v1716, %v1715
      %v1722 = vpack.c.b16 %v1718, %v1717
      %v1728 = vsel %vm958, %v1690, 0
      %v1731 = vsel %vm958, %v1691, 0
      %v1734 = vsel %vm958, %v1692, 0
      %v1737 = vsel %vm958, %v1693, 0
      %1739 = vmatprep.subr.bf16.mxu0 0
      %1740 = vmatpush1.bf16.msra.mxu0 0
      %1741 = vmatprep.subr.bf16.mxu0 0
      %1742 = vmatpush1.bf16.msra.mxu0 0
      %1743 = vmatprep.subr.bf16.mxu0 0
      %1744 = vmatpush1.bf16.msra.mxu0 0
      %1745 = vmatprep.subr.bf16.mxu0 0
      %1746 = vmatpush1.bf16.msra.mxu0 0
      %1747 = vmatprep.subr.bf16.mxu0 0
      %1748 = vmatpush1.bf16.msra.mxu0 %v1722
      %1749 = vmatprep.subr.bf16.mxu0 0
      %1750 = vmatpush1.bf16.msra.mxu0 %v1721
      %1751 = vmatprep.subr.bf16.mxu0 0
      %1752 = vmatpush1.bf16.msra.mxu0 %v1720
      %1753 = vmatprep.subr.bf16.mxu0 0
      %1754 = vmatpush1.bf16.msra.mxu0 %v1719
      %1755 = vmatprep.subr.bf16.mxu0 0
      %1756 = vmatpush2.bf16.msra.mxu0 0
      %1757 = vmatprep.subr.bf16.mxu0 0
      %1758 = vmatpush2.bf16.msra.mxu0 0
      %1759 = vmatprep.subr.bf16.mxu0 0
      %1760 = vmatpush2.bf16.msra.mxu0 0
      %1761 = vmatprep.subr.bf16.mxu0 0
      %1762 = vmatpush2.bf16.msra.mxu0 0
      %1763 = vmatprep.subr.bf16.mxu0 0
      %1764 = vmatpush2.bf16.msra.mxu0 0
      %1765 = vmatprep.subr.bf16.mxu0 0
      %1766 = vmatpush2.bf16.msra.mxu0 0
      %1767 = vmatprep.subr.bf16.mxu0 0
      %1768 = vmatpush2.bf16.msra.mxu0 0
      %1769 = vmatprep.subr.bf16.mxu0 0
      %1770 = vmatpush2.bf16.msra.mxu0 0
      %1771 = vmatprep.mubr.bf16.mxu0 0
      %1772 = vmatmul.mubr.bf16.gmra.mxu0 %v1728
      %v1773 = vpop.f32.mrf.mxu0
      %v1774 = vadd.f32 0.0, %v1773
      %v1775 = vpop.f32.mrf.mxu0
      %v1776 = vpop.f32.mrf.mxu0
      %v1777 = vadd.f32 0.0, %v1776
      %v1778 = vpop.f32.mrf.mxu0
      %1779 = vmatprep.mubr.bf16.mxu0 0
      %1780 = vmatmul.mubr.bf16.gmra.mxu0 %v1731
      %v1781 = vpop.f32.mrf.mxu0
      %v1782 = vadd.f32 0.0, %v1781
      %v1783 = vpop.f32.mrf.mxu0
      %v1784 = vpop.f32.mrf.mxu0
      %v1785 = vadd.f32 0.0, %v1784
      %v1786 = vpop.f32.mrf.mxu0
      %1787 = vmatprep.mubr.bf16.mxu0 0
      %1788 = vmatmul.mubr.bf16.gmra.mxu0 %v1734
      %v1789 = vpop.f32.mrf.mxu0
      %v1790 = vadd.f32 0.0, %v1789
      %v1791 = vpop.f32.mrf.mxu0
      %v1792 = vpop.f32.mrf.mxu0
      %v1793 = vadd.f32 0.0, %v1792
      %v1794 = vpop.f32.mrf.mxu0
      %1795 = vmatprep.mubr.bf16.mxu0 0
      %1796 = vmatmul.mubr.bf16.gmra.mxu0 %v1737
      %v1797 = vpop.f32.mrf.mxu0
      %v1798 = vadd.f32 0.0, %v1797
      %v1799 = vpop.f32.mrf.mxu0
      %v1800 = vpop.f32.mrf.mxu0
      %v1801 = vadd.f32 0.0, %v1800
      %v1802 = vpop.f32.mrf.mxu0
      %1803 = vdwg.mxu0
      %v1804 = vadd.f32 %v1672, %v1774
      %v1805 = vadd.f32 %v1673, %v1777
      %v1806 = vadd.f32 %v1674, %v1782
      %v1807 = vadd.f32 %v1675, %v1785
      %v1808 = vadd.f32 %v1676, %v1790
      %v1809 = vadd.f32 %v1677, %v1793
      %v1810 = vadd.f32 %v1678, %v1798
      %v1811 = vadd.f32 %v1679, %v1801
      %v1812 = vpack.c.bf16 0.0, %v751
      %s1813 = scalar_lea.vmem %s3, 224
      %v1814 = vld [vmem:[%s1813] sm:$0xf]
      %v1815 = vld [vmem:[%s1813 + $0x4] sm:$0xf]
      %v1816 = vld [vmem:[%s1813 + $0x8] sm:$0xf]
      %v1817 = vld [vmem:[%s1813 + $0xc] sm:$0xf]
      %v1818 = vld [vmem:[%s1813 + $0x10] sm:$0xf]
      %v1819 = vld [vmem:[%s1813 + $0x14] sm:$0xf]
      %v1820 = vld [vmem:[%s1813 + $0x18] sm:$0xf]
      %v1821 = vld [vmem:[%s1813 + $0x1c] sm:$0xf]
      %v1830 = vunpack.c.l.b16 %v1814
      %v1831 = vunpack.c.l.b16 %v1815
      %v1832 = vunpack.c.l.b16 %v1816
      %v1833 = vunpack.c.l.b16 %v1817
      %v1834 = vunpack.c.l.b16 %v1818
      %v1835 = vunpack.c.l.b16 %v1819
      %v1836 = vunpack.c.l.b16 %v1820
      %v1837 = vunpack.c.l.b16 %v1821
      %v1838 = vpack.c.b16 %v1831, %v1830
      %v1839 = vpack.c.b16 %v1833, %v1832
      %v1840 = vpack.c.b16 %v1835, %v1834
      %v1841 = vpack.c.b16 %v1837, %v1836
      %v1847 = vsel %vm958, %v1812, 0
      %1849 = vmatprep.subr.bf16.mxu0 0
      %1850 = vmatpush1.bf16.msra.mxu0 0
      %1851 = vmatprep.subr.bf16.mxu0 0
      %1852 = vmatpush1.bf16.msra.mxu0 0
      %1853 = vmatprep.subr.bf16.mxu0 0
      %1854 = vmatpush1.bf16.msra.mxu0 0
      %1855 = vmatprep.subr.bf16.mxu0 0
      %1856 = vmatpush1.bf16.msra.mxu0 0
      %1857 = vmatprep.subr.bf16.mxu0 0
      %1858 = vmatpush1.bf16.msra.mxu0 %v1841
      %1859 = vmatprep.subr.bf16.mxu0 0
      %1860 = vmatpush1.bf16.msra.mxu0 %v1840
      %1861 = vmatprep.subr.bf16.mxu0 0
      %1862 = vmatpush1.bf16.msra.mxu0 %v1839
      %1863 = vmatprep.subr.bf16.mxu0 0
      %1864 = vmatpush1.bf16.msra.mxu0 %v1838
      %1865 = vmatprep.subr.bf16.mxu0 0
      %1866 = vmatpush2.bf16.msra.mxu0 0
      %1867 = vmatprep.subr.bf16.mxu0 0
      %1868 = vmatpush2.bf16.msra.mxu0 0
      %1869 = vmatprep.subr.bf16.mxu0 0
      %1870 = vmatpush2.bf16.msra.mxu0 0
      %1871 = vmatprep.subr.bf16.mxu0 0
      %1872 = vmatpush2.bf16.msra.mxu0 0
      %1873 = vmatprep.subr.bf16.mxu0 0
      %1874 = vmatpush2.bf16.msra.mxu0 0
      %1875 = vmatprep.subr.bf16.mxu0 0
      %1876 = vmatpush2.bf16.msra.mxu0 0
      %1877 = vmatprep.subr.bf16.mxu0 0
      %1878 = vmatpush2.bf16.msra.mxu0 0
      %1879 = vmatprep.subr.bf16.mxu0 0
      %1880 = vmatpush2.bf16.msra.mxu0 0
      %1881 = vmatprep.mubr.bf16.mxu0 0
      %1882 = vmatmul.mubr.bf16.gmra.mxu0 %v963
      %v1883 = vpop.f32.mrf.mxu0
      %v1884 = vadd.f32 0.0, %v1883
      %v1885 = vpop.f32.mrf.mxu0
      %v1886 = vpop.f32.mrf.mxu0
      %v1887 = vadd.f32 0.0, %v1886
      %v1888 = vpop.f32.mrf.mxu0
      %1889 = vmatprep.mubr.bf16.mxu0 0
      %1890 = vmatmul.mubr.bf16.gmra.mxu0 %v966
      %v1891 = vpop.f32.mrf.mxu0
      %v1892 = vadd.f32 0.0, %v1891
      %v1893 = vpop.f32.mrf.mxu0
      %v1894 = vpop.f32.mrf.mxu0
      %v1895 = vadd.f32 0.0, %v1894
      %v1896 = vpop.f32.mrf.mxu0
      %1897 = vmatprep.mubr.bf16.mxu0 0
      %1898 = vmatmul.mubr.bf16.gmra.mxu0 %v969
      %v1899 = vpop.f32.mrf.mxu0
      %v1900 = vadd.f32 0.0, %v1899
      %v1901 = vpop.f32.mrf.mxu0
      %v1902 = vpop.f32.mrf.mxu0
      %v1903 = vadd.f32 0.0, %v1902
      %v1904 = vpop.f32.mrf.mxu0
      %1905 = vmatprep.mubr.bf16.mxu0 0
      %1906 = vmatmul.mubr.bf16.gmra.mxu0 %v1847
      %v1907 = vpop.f32.mrf.mxu0
      %v1908 = vadd.f32 0.0, %v1907
      %v1909 = vpop.f32.mrf.mxu0
      %v1910 = vpop.f32.mrf.mxu0
      %v1911 = vadd.f32 0.0, %v1910
      %v1912 = vpop.f32.mrf.mxu0
      %1913 = vdwg.mxu0
      %v1914 = vadd.f32 %v1804, %v1884
      %v1915 = vadd.f32 %v1805, %v1887
      %v1916 = vadd.f32 %v1806, %v1892
      %v1917 = vadd.f32 %v1807, %v1895
      %v1918 = vadd.f32 %v1808, %v1900
      %v1919 = vadd.f32 %v1809, %v1903
      %v1920 = vadd.f32 %v1810, %v1908
      %v1921 = vadd.f32 %v1811, %v1911
      %v1922 = vsel %vm865, %v1143, 0.0
      %v1923 = vsel %vm866, %v1145, 0.0
      %v1924 = vsel %vm867, %v1147, 0.0
      %v1925 = vsel %vm868, %v1149, 0.0
      %v1926 = vsel %vm869, %v1151, 0.0
      %v1927 = vsel %vm870, %v1153, 0.0
      %v1928 = vsel %vm871, %v1549, 0.0
      %v1929 = vpack.c.bf16 %v1923, %v1922
      %v1930 = vpack.c.bf16 %v1925, %v1924
      %v1931 = vpack.c.bf16 %v1927, %v1926
      %v1932 = vpack.c.bf16 0.0, %v1928
      %s1933 = scalar_lea.vmem %s3, 256
      %v1934 = vld [vmem:[%s1933] sm:$0xf]
      %v1935 = vld [vmem:[%s1933 + $0x4] sm:$0xf]
      %v1936 = vld [vmem:[%s1933 + $0x8] sm:$0xf]
      %v1937 = vld [vmem:[%s1933 + $0xc] sm:$0xf]
      %v1938 = vld [vmem:[%s1933 + $0x10] sm:$0xf]
      %v1939 = vld [vmem:[%s1933 + $0x14] sm:$0xf]
      %v1940 = vld [vmem:[%s1933 + $0x18] sm:$0xf]
      %v1941 = vld [vmem:[%s1933 + $0x1c] sm:$0xf]
      %v1950 = vunpack.c.l.b16 %v1934
      %v1951 = vunpack.c.l.b16 %v1935
      %v1952 = vunpack.c.l.b16 %v1936
      %v1953 = vunpack.c.l.b16 %v1937
      %v1954 = vunpack.c.l.b16 %v1938
      %v1955 = vunpack.c.l.b16 %v1939
      %v1956 = vunpack.c.l.b16 %v1940
      %v1957 = vunpack.c.l.b16 %v1941
      %v1958 = vpack.c.b16 %v1951, %v1950
      %v1959 = vpack.c.b16 %v1953, %v1952
      %v1960 = vpack.c.b16 %v1955, %v1954
      %v1961 = vpack.c.b16 %v1957, %v1956
      %v1967 = vsel %vm958, %v1929, 0
      %v1970 = vsel %vm958, %v1930, 0
      %v1973 = vsel %vm958, %v1931, 0
      %v1976 = vsel %vm958, %v1932, 0
      %1978 = vmatprep.subr.bf16.mxu0 0
      %1979 = vmatpush1.bf16.msra.mxu0 0
      %1980 = vmatprep.subr.bf16.mxu0 0
      %1981 = vmatpush1.bf16.msra.mxu0 0
      %1982 = vmatprep.subr.bf16.mxu0 0
      %1983 = vmatpush1.bf16.msra.mxu0 0
      %1984 = vmatprep.subr.bf16.mxu0 0
      %1985 = vmatpush1.bf16.msra.mxu0 0
      %1986 = vmatprep.subr.bf16.mxu0 0
      %1987 = vmatpush1.bf16.msra.mxu0 %v1961
      %1988 = vmatprep.subr.bf16.mxu0 0
      %1989 = vmatpush1.bf16.msra.mxu0 %v1960
      %1990 = vmatprep.subr.bf16.mxu0 0
      %1991 = vmatpush1.bf16.msra.mxu0 %v1959
      %1992 = vmatprep.subr.bf16.mxu0 0
      %1993 = vmatpush1.bf16.msra.mxu0 %v1958
      %1994 = vmatprep.subr.bf16.mxu0 0
      %1995 = vmatpush2.bf16.msra.mxu0 0
      %1996 = vmatprep.subr.bf16.mxu0 0
      %1997 = vmatpush2.bf16.msra.mxu0 0
      %1998 = vmatprep.subr.bf16.mxu0 0
      %1999 = vmatpush2.bf16.msra.mxu0 0
      %2000 = vmatprep.subr.bf16.mxu0 0
      %2001 = vmatpush2.bf16.msra.mxu0 0
      %2002 = vmatprep.subr.bf16.mxu0 0
      %2003 = vmatpush2.bf16.msra.mxu0 0
      %2004 = vmatprep.subr.bf16.mxu0 0
      %2005 = vmatpush2.bf16.msra.mxu0 0
      %2006 = vmatprep.subr.bf16.mxu0 0
      %2007 = vmatpush2.bf16.msra.mxu0 0
      %2008 = vmatprep.subr.bf16.mxu0 0
      %2009 = vmatpush2.bf16.msra.mxu0 0
      %2010 = vmatprep.mubr.bf16.mxu0 0
      %2011 = vmatmul.mubr.bf16.gmra.mxu0 %v1967
      %v2012 = vpop.f32.mrf.mxu0
      %v2013 = vadd.f32 0.0, %v2012
      %v2014 = vpop.f32.mrf.mxu0
      %v2015 = vpop.f32.mrf.mxu0
      %v2016 = vadd.f32 0.0, %v2015
      %v2017 = vpop.f32.mrf.mxu0
      %2018 = vmatprep.mubr.bf16.mxu0 0
      %2019 = vmatmul.mubr.bf16.gmra.mxu0 %v1970
      %v2020 = vpop.f32.mrf.mxu0
      %v2021 = vadd.f32 0.0, %v2020
      %v2022 = vpop.f32.mrf.mxu0
      %v2023 = vpop.f32.mrf.mxu0
      %v2024 = vadd.f32 0.0, %v2023
      %v2025 = vpop.f32.mrf.mxu0
      %2026 = vmatprep.mubr.bf16.mxu0 0
      %2027 = vmatmul.mubr.bf16.gmra.mxu0 %v1973
      %v2028 = vpop.f32.mrf.mxu0
      %v2029 = vadd.f32 0.0, %v2028
      %v2030 = vpop.f32.mrf.mxu0
      %v2031 = vpop.f32.mrf.mxu0
      %v2032 = vadd.f32 0.0, %v2031
      %v2033 = vpop.f32.mrf.mxu0
      %2034 = vmatprep.mubr.bf16.mxu0 0
      %2035 = vmatmul.mubr.bf16.gmra.mxu0 %v1976
      %v2036 = vpop.f32.mrf.mxu0
      %v2037 = vadd.f32 0.0, %v2036
      %v2038 = vpop.f32.mrf.mxu0
      %v2039 = vpop.f32.mrf.mxu0
      %v2040 = vadd.f32 0.0, %v2039
      %v2041 = vpop.f32.mrf.mxu0
      %2042 = vdwg.mxu0
      %v2043 = vadd.f32 %v1914, %v2013
      %v2044 = vadd.f32 %v1915, %v2016
      %v2045 = vadd.f32 %v1916, %v2021
      %v2046 = vadd.f32 %v1917, %v2024
      %v2047 = vadd.f32 %v1918, %v2029
      %v2048 = vadd.f32 %v1919, %v2032
      %v2049 = vadd.f32 %v1920, %v2037
      %v2050 = vadd.f32 %v1921, %v2040
      %v2051 = vld [vmem:[%s4] sm:$0x1]
      %v2053 = vlaneseq
      %v2054 = vshrl.u32 %v2053, 7
      %v2055 = vsub.s32 0, %v2054
      %v2056 = vrot.slane %v2051, %v2055
      %v2058 = vadd.f32 %v2043, %v2056
      %v2059 = vadd.f32 %v2044, %v2056
      %v2060 = vadd.f32 %v2045, %v2056
      %v2061 = vadd.f32 %v2046, %v2056
      %v2062 = vadd.f32 %v2047, %v2056
      %v2063 = vadd.f32 %v2048, %v2056
      %v2064 = vadd.f32 %v2049, %v2056
      %v2065 = vadd.f32 %v2050, %v2056
      %v2066 = vmax.f32 %v2058, 0.0
      %v2067 = vmax.f32 %v2059, 0.0
      %v2068 = vmax.f32 %v2060, 0.0
      %v2069 = vmax.f32 %v2061, 0.0
      %v2070 = vmax.f32 %v2062, 0.0
      %v2071 = vmax.f32 %v2063, 0.0
      %v2072 = vmax.f32 %v2064, 0.0
      %v2073 = vmax.f32 %v2065, 0.0
      %v2074 = vpack.c.bf16 %v2067, %v2066
      %v2075 = vpack.c.bf16 %v2069, %v2068
      %v2076 = vpack.c.bf16 %v2071, %v2070
      %v2077 = vpack.c.bf16 %v2073, %v2072
      %v2078 = vld [vmem:[%s5] sm:$0xff]
      %v2079 = vld [vmem:[%s5 + $0x8] sm:$0xff]
      %v2080 = vld [vmem:[%s5 + $0x10] sm:$0xff]
      %v2081 = vld [vmem:[%s5 + $0x18] sm:$0xff]
      %v2082 = vld [vmem:[%s5 + $0x20] sm:$0xff]
      %v2083 = vld [vmem:[%s5 + $0x28] sm:$0xff]
      %v2084 = vld [vmem:[%s5 + $0x30] sm:$0xff]
      %v2085 = vld [vmem:[%s5 + $0x38] sm:$0xff]
      %v2086 = vld [vmem:[%s6] sm:$0x3]
      %v2088 = vlaneseq
      %v2089 = vshrl.u32 %v2088, 7
      %v2090 = vsub.s32 0, %v2089
      %v2091 = vrot.slane %v2086, %v2090
      %v2092 = vlaneseq
      %v2093 = vshrl.u32 %v2092, 7
      %v2094 = vsub.s32 1, %v2093
      %v2095 = vrot.slane %v2086, %v2094
      %v2106 = vunpack.c.l.b16 %v2078
      %v2107 = vunpack.c.h.b16 %v2078
      %v2108 = vunpack.c.l.b16 %v2079
      %v2109 = vunpack.c.h.b16 %v2079
      %v2110 = vunpack.c.l.b16 %v2080
      %v2111 = vunpack.c.h.b16 %v2080
      %v2112 = vunpack.c.l.b16 %v2081
      %v2113 = vunpack.c.h.b16 %v2081
      %v2114 = vunpack.c.l.b16 %v2082
      %v2115 = vunpack.c.h.b16 %v2082
      %v2116 = vunpack.c.l.b16 %v2083
      %v2117 = vunpack.c.h.b16 %v2083
      %v2118 = vunpack.c.l.b16 %v2084
      %v2119 = vunpack.c.h.b16 %v2084
      %v2120 = vunpack.c.l.b16 %v2085
      %v2121 = vunpack.c.h.b16 %v2085
      %v2122 = vpack.c.b16 %v2108, %v2106
      %v2123 = vpack.c.b16 %v2109, %v2107
      %v2124 = vpack.c.b16 %v2112, %v2110
      %v2125 = vpack.c.b16 %v2113, %v2111
      %v2126 = vpack.c.b16 %v2116, %v2114
      %v2127 = vpack.c.b16 %v2117, %v2115
      %v2128 = vpack.c.b16 %v2120, %v2118
      %v2129 = vpack.c.b16 %v2121, %v2119
      %v2139 = vsel %vm958, %v2074, 0
      %v2142 = vsel %vm958, %v2075, 0
      %v2145 = vsel %vm958, %v2076, 0
      %v2148 = vsel %vm958, %v2077, 0
      %2150 = vmatprep.subr.bf16.mxu0 0
      %2151 = vmatpush1.bf16.msra.mxu0 0
      %2152 = vmatprep.subr.bf16.mxu0 0
      %2153 = vmatpush1.bf16.msra.mxu0 0
      %2154 = vmatprep.subr.bf16.mxu0 0
      %2155 = vmatpush1.bf16.msra.mxu0 0
      %2156 = vmatprep.subr.bf16.mxu0 0
      %2157 = vmatpush1.bf16.msra.mxu0 0
      %2158 = vmatprep.subr.bf16.mxu0 %v2129
      %2159 = vmatpush1.bf16.msra.mxu0 %v2128
      %2160 = vmatprep.subr.bf16.mxu0 %v2127
      %2161 = vmatpush1.bf16.msra.mxu0 %v2126
      %2162 = vmatprep.subr.bf16.mxu0 %v2125
      %2163 = vmatpush1.bf16.msra.mxu0 %v2124
      %2164 = vmatprep.subr.bf16.mxu0 %v2123
      %2165 = vmatpush1.bf16.msra.mxu0 %v2122
      %2166 = vmatprep.subr.bf16.mxu0 0
      %2167 = vmatpush2.bf16.msra.mxu0 0
      %2168 = vmatprep.subr.bf16.mxu0 0
      %2169 = vmatpush2.bf16.msra.mxu0 0
      %2170 = vmatprep.subr.bf16.mxu0 0
      %2171 = vmatpush2.bf16.msra.mxu0 0
      %2172 = vmatprep.subr.bf16.mxu0 0
      %2173 = vmatpush2.bf16.msra.mxu0 0
      %2174 = vmatprep.subr.bf16.mxu0 0
      %2175 = vmatpush2.bf16.msra.mxu0 0
      %2176 = vmatprep.subr.bf16.mxu0 0
      %2177 = vmatpush2.bf16.msra.mxu0 0
      %2178 = vmatprep.subr.bf16.mxu0 0
      %2179 = vmatpush2.bf16.msra.mxu0 0
      %2180 = vmatprep.subr.bf16.mxu0 0
      %2181 = vmatpush2.bf16.msra.mxu0 0
      %2182 = vmatprep.mubr.bf16.mxu0 0
      %2183 = vmatmul.mubr.bf16.gmra.mxu0 %v2139
      %v2184 = vpop.f32.mrf.mxu0
      %v2185 = vadd.f32 %v2091, %v2184
      %v2186 = vpop.f32.mrf.mxu0
      %v2187 = vadd.f32 %v2095, %v2186
      %v2188 = vpop.f32.mrf.mxu0
      %v2189 = vadd.f32 %v2091, %v2188
      %v2190 = vpop.f32.mrf.mxu0
      %v2191 = vadd.f32 %v2095, %v2190
      %2192 = vmatprep.mubr.bf16.mxu0 0
      %2193 = vmatmul.mubr.bf16.gmra.mxu0 %v2142
      %v2194 = vpop.f32.mrf.mxu0
      %v2195 = vadd.f32 %v2091, %v2194
      %v2196 = vpop.f32.mrf.mxu0
      %v2197 = vadd.f32 %v2095, %v2196
      %v2198 = vpop.f32.mrf.mxu0
      %v2199 = vadd.f32 %v2091, %v2198
      %v2200 = vpop.f32.mrf.mxu0
      %v2201 = vadd.f32 %v2095, %v2200
      %2202 = vmatprep.mubr.bf16.mxu0 0
      %2203 = vmatmul.mubr.bf16.gmra.mxu0 %v2145
      %v2204 = vpop.f32.mrf.mxu0
      %v2205 = vadd.f32 %v2091, %v2204
      %v2206 = vpop.f32.mrf.mxu0
      %v2207 = vadd.f32 %v2095, %v2206
      %v2208 = vpop.f32.mrf.mxu0
      %v2209 = vadd.f32 %v2091, %v2208
      %v2210 = vpop.f32.mrf.mxu0
      %v2211 = vadd.f32 %v2095, %v2210
      %2212 = vmatprep.mubr.bf16.mxu0 0
      %2213 = vmatmul.mubr.bf16.gmra.mxu0 %v2148
      %v2214 = vpop.f32.mrf.mxu0
      %v2215 = vadd.f32 %v2091, %v2214
      %v2216 = vpop.f32.mrf.mxu0
      %v2217 = vadd.f32 %v2095, %v2216
      %v2218 = vpop.f32.mrf.mxu0
      %v2219 = vadd.f32 %v2091, %v2218
      %v2220 = vpop.f32.mrf.mxu0
      %v2221 = vadd.f32 %v2095, %v2220
      %2222 = vdwg.mxu0
      %v2223 = vmax.f32 %v2185, 0.0
      %v2224 = vmax.f32 %v2187, 0.0
      %v2225 = vmax.f32 %v2189, 0.0
      %v2226 = vmax.f32 %v2191, 0.0
      %v2227 = vmax.f32 %v2195, 0.0
      %v2228 = vmax.f32 %v2197, 0.0
      %v2229 = vmax.f32 %v2199, 0.0
      %v2230 = vmax.f32 %v2201, 0.0
      %v2231 = vmax.f32 %v2205, 0.0
      %v2232 = vmax.f32 %v2207, 0.0
      %v2233 = vmax.f32 %v2209, 0.0
      %v2234 = vmax.f32 %v2211, 0.0
      %v2235 = vmax.f32 %v2215, 0.0
      %v2236 = vmax.f32 %v2217, 0.0
      %v2237 = vmax.f32 %v2219, 0.0
      %v2238 = vmax.f32 %v2221, 0.0
      %v2239 = vpack.c.bf16 %v2225, %v2223
      %v2240 = vpack.c.bf16 %v2226, %v2224
      %v2241 = vpack.c.bf16 %v2229, %v2227
      %v2242 = vpack.c.bf16 %v2230, %v2228
      %v2243 = vpack.c.bf16 %v2233, %v2231
      %v2244 = vpack.c.bf16 %v2234, %v2232
      %v2245 = vpack.c.bf16 %v2237, %v2235
      %v2246 = vpack.c.bf16 %v2238, %v2236
      %v2255 = vunpack.c.l.b16 %v2239
      %v2256 = vunpack.c.l.b16 %v2240
      %v2257 = vunpack.c.h.b16 %v2239
      %v2258 = vunpack.c.h.b16 %v2240
      %v2259 = vunpack.c.l.b16 %v2241
      %v2260 = vunpack.c.l.b16 %v2242
      %v2261 = vunpack.c.h.b16 %v2241
      %v2262 = vunpack.c.h.b16 %v2242
      %v2263 = vunpack.c.l.b16 %v2243
      %v2264 = vunpack.c.l.b16 %v2244
      %v2265 = vunpack.c.h.b16 %v2243
      %v2266 = vunpack.c.h.b16 %v2244
      %v2267 = vunpack.c.l.b16 %v2245
      %v2268 = vunpack.c.l.b16 %v2246
      %v2269 = vunpack.c.h.b16 %v2245
      %v2270 = vunpack.c.h.b16 %v2246
      %v2271 = vpack.c.b16 %v2256, %v2255
      %v2272 = vpack.c.b16 %v2258, %v2257
      %v2273 = vpack.c.b16 %v2260, %v2259
      %v2274 = vpack.c.b16 %v2262, %v2261
      %v2275 = vpack.c.b16 %v2264, %v2263
      %v2276 = vpack.c.b16 %v2266, %v2265
      %v2277 = vpack.c.b16 %v2268, %v2267
      %v2278 = vpack.c.b16 %v2270, %v2269
      %2287 = vst [vmem:[%s367] sm:$0xff] %v2271
      %2288 = vst [vmem:[%s367 + $0x8] sm:$0xff] %v2272
      %2289 = vst [vmem:[%s367 + $0x10] sm:$0xff] %v2273
      %2290 = vst [vmem:[%s367 + $0x18] sm:$0xff] %v2274
      %2291 = vst [vmem:[%s367 + $0x20] sm:$0xff] %v2275
      %2292 = vst [vmem:[%s367 + $0x28] sm:$0xff] %v2276
      %2293 = vst [vmem:[%s367 + $0x30] sm:$0xff] %v2277
      %2294 = vst [vmem:[%s367 + $0x38] sm:$0xff] %v2278
      %v2295 = vld [vmem:[%s7] sm:$0xff]
      %v2296 = vld [vmem:[%s7 + $0x8] sm:$0xff]
      %v2297 = vld [vmem:[%s7 + $0x10] sm:$0xff]
      %v2298 = vld [vmem:[%s7 + $0x18] sm:$0xff]
      %v2299 = vld [vmem:[%s7 + $0x20] sm:$0xff]
      %v2300 = vld [vmem:[%s7 + $0x28] sm:$0xff]
      %v2301 = vld [vmem:[%s7 + $0x30] sm:$0xff]
      %v2302 = vld [vmem:[%s7 + $0x38] sm:$0xff]
      %v2303 = vld [vmem:[%s7 + $0x40] sm:$0xff]
      %v2304 = vld [vmem:[%s7 + $0x48] sm:$0xff]
      %v2305 = vld [vmem:[%s7 + $0x50] sm:$0xff]
      %v2306 = vld [vmem:[%s7 + $0x58] sm:$0xff]
      %v2307 = vld [vmem:[%s7 + $0x60] sm:$0xff]
      %v2308 = vld [vmem:[%s7 + $0x68] sm:$0xff]
      %v2309 = vld [vmem:[%s7 + $0x70] sm:$0xff]
      %v2310 = vld [vmem:[%s7 + $0x78] sm:$0xff]
      %v2311 = vld [vmem:[%s7 + $0x80] sm:$0xff]
      %v2312 = vld [vmem:[%s7 + $0x88] sm:$0xff]
      %v2313 = vld [vmem:[%s7 + $0x90] sm:$0xff]
      %v2314 = vld [vmem:[%s7 + $0x98] sm:$0xff]
      %v2315 = vld [vmem:[%s7 + $0xa0] sm:$0xff]
      %v2316 = vld [vmem:[%s7 + $0xa8] sm:$0xff]
      %v2317 = vld [vmem:[%s7 + $0xb0] sm:$0xff]
      %v2318 = vld [vmem:[%s7 + $0xb8] sm:$0xff]
      %v2319 = vld [vmem:[%s7 + $0xc0] sm:$0xff]
      %v2320 = vld [vmem:[%s7 + $0xc8] sm:$0xff]
      %v2321 = vld [vmem:[%s7 + $0xd0] sm:$0xff]
      %v2322 = vld [vmem:[%s7 + $0xd8] sm:$0xff]
      %v2323 = vld [vmem:[%s7 + $0xe0] sm:$0xff]
      %v2324 = vld [vmem:[%s7 + $0xe8] sm:$0xff]
      %v2325 = vld [vmem:[%s7 + $0xf0] sm:$0xff]
      %v2326 = vld [vmem:[%s7 + $0xf8] sm:$0xff]
      %v2327 = vld [vmem:[%s7 + $0x100] sm:$0xff]
      %v2328 = vld [vmem:[%s7 + $0x108] sm:$0xff]
      %v2329 = vld [vmem:[%s7 + $0x110] sm:$0xff]
      %v2330 = vld [vmem:[%s7 + $0x118] sm:$0xff]
      %v2331 = vld [vmem:[%s7 + $0x120] sm:$0xff]
      %v2332 = vld [vmem:[%s7 + $0x128] sm:$0xff]
      %v2333 = vld [vmem:[%s7 + $0x130] sm:$0xff]
      %v2334 = vld [vmem:[%s7 + $0x138] sm:$0xff]
      %v2335 = vld [vmem:[%s7 + $0x140] sm:$0xff]
      %v2336 = vld [vmem:[%s7 + $0x148] sm:$0xff]
      %v2337 = vld [vmem:[%s7 + $0x150] sm:$0xff]
      %v2338 = vld [vmem:[%s7 + $0x158] sm:$0xff]
      %v2339 = vld [vmem:[%s7 + $0x160] sm:$0xff]
      %v2340 = vld [vmem:[%s7 + $0x168] sm:$0xff]
      %v2341 = vld [vmem:[%s7 + $0x170] sm:$0xff]
      %v2342 = vld [vmem:[%s7 + $0x178] sm:$0xff]
      %v2343 = vld [vmem:[%s7 + $0x180] sm:$0xff]
      %v2344 = vld [vmem:[%s7 + $0x188] sm:$0xff]
      %v2345 = vld [vmem:[%s7 + $0x190] sm:$0xff]
      %v2346 = vld [vmem:[%s7 + $0x198] sm:$0xff]
      %v2347 = vld [vmem:[%s7 + $0x1a0] sm:$0xff]
      %v2348 = vld [vmem:[%s7 + $0x1a8] sm:$0xff]
      %v2349 = vld [vmem:[%s7 + $0x1b0] sm:$0xff]
      %v2350 = vld [vmem:[%s7 + $0x1b8] sm:$0xff]
      %v2351 = vld [vmem:[%s7 + $0x1c0] sm:$0xff]
      %v2352 = vld [vmem:[%s7 + $0x1c8] sm:$0xff]
      %v2353 = vld [vmem:[%s7 + $0x1d0] sm:$0xff]
      %v2354 = vld [vmem:[%s7 + $0x1d8] sm:$0xff]
      %v2355 = vld [vmem:[%s7 + $0x1e0] sm:$0xff]
      %v2356 = vld [vmem:[%s7 + $0x1e8] sm:$0xff]
      %v2357 = vld [vmem:[%s7 + $0x1f0] sm:$0xff]
      %v2358 = vld [vmem:[%s7 + $0x1f8] sm:$0xff]
      %v2359 = vld [vmem:[%s8] sm:$0xf]
      %v2361 = vlaneseq
      %v2362 = vshrl.u32 %v2361, 7
      %v2363 = vsub.s32 0, %v2362
      %v2364 = vrot.slane %v2359, %v2363
      %v2365 = vlaneseq
      %v2366 = vshrl.u32 %v2365, 7
      %v2367 = vsub.s32 1, %v2366
      %v2368 = vrot.slane %v2359, %v2367
      %v2369 = vlaneseq
      %v2370 = vshrl.u32 %v2369, 7
      %v2371 = vsub.s32 2, %v2370
      %v2372 = vrot.slane %v2359, %v2371
      %v2373 = vlaneseq
      %v2374 = vshrl.u32 %v2373, 7
      %v2375 = vsub.s32 3, %v2374
      %v2376 = vrot.slane %v2359, %v2375
      %v2445 = vunpack.c.l.b16 %v2295
      %v2446 = vunpack.c.h.b16 %v2295
      %v2447 = vunpack.c.l.b16 %v2296
      %v2448 = vunpack.c.h.b16 %v2296
      %v2449 = vunpack.c.l.b16 %v2297
      %v2450 = vunpack.c.h.b16 %v2297
      %v2451 = vunpack.c.l.b16 %v2298
      %v2452 = vunpack.c.h.b16 %v2298
      %v2453 = vunpack.c.l.b16 %v2299
      %v2454 = vunpack.c.h.b16 %v2299
      %v2455 = vunpack.c.l.b16 %v2300
      %v2456 = vunpack.c.h.b16 %v2300
      %v2457 = vunpack.c.l.b16 %v2301
      %v2458 = vunpack.c.h.b16 %v2301
      %v2459 = vunpack.c.l.b16 %v2302
      %v2460 = vunpack.c.h.b16 %v2302
      %v2461 = vunpack.c.l.b16 %v2303
      %v2462 = vunpack.c.h.b16 %v2303
      %v2463 = vunpack.c.l.b16 %v2304
      %v2464 = vunpack.c.h.b16 %v2304
      %v2465 = vunpack.c.l.b16 %v2305
      %v2466 = vunpack.c.h.b16 %v2305
      %v2467 = vunpack.c.l.b16 %v2306
      %v2468 = vunpack.c.h.b16 %v2306
      %v2469 = vunpack.c.l.b16 %v2307
      %v2470 = vunpack.c.h.b16 %v2307
      %v2471 = vunpack.c.l.b16 %v2308
      %v2472 = vunpack.c.h.b16 %v2308
      %v2473 = vunpack.c.l.b16 %v2309
      %v2474 = vunpack.c.h.b16 %v2309
      %v2475 = vunpack.c.l.b16 %v2310
      %v2476 = vunpack.c.h.b16 %v2310
      %v2477 = vunpack.c.l.b16 %v2311
      %v2478 = vunpack.c.h.b16 %v2311
      %v2479 = vunpack.c.l.b16 %v2312
      %v2480 = vunpack.c.h.b16 %v2312
      %v2481 = vunpack.c.l.b16 %v2313
      %v2482 = vunpack.c.h.b16 %v2313
      %v2483 = vunpack.c.l.b16 %v2314
      %v2484 = vunpack.c.h.b16 %v2314
      %v2485 = vunpack.c.l.b16 %v2315
      %v2486 = vunpack.c.h.b16 %v2315
      %v2487 = vunpack.c.l.b16 %v2316
      %v2488 = vunpack.c.h.b16 %v2316
      %v2489 = vunpack.c.l.b16 %v2317
      %v2490 = vunpack.c.h.b16 %v2317
      %v2491 = vunpack.c.l.b16 %v2318
      %v2492 = vunpack.c.h.b16 %v2318
      %v2493 = vunpack.c.l.b16 %v2319
      %v2494 = vunpack.c.h.b16 %v2319
      %v2495 = vunpack.c.l.b16 %v2320
      %v2496 = vunpack.c.h.b16 %v2320
      %v2497 = vunpack.c.l.b16 %v2321
      %v2498 = vunpack.c.h.b16 %v2321
      %v2499 = vunpack.c.l.b16 %v2322
      %v2500 = vunpack.c.h.b16 %v2322
      %v2501 = vunpack.c.l.b16 %v2323
      %v2502 = vunpack.c.h.b16 %v2323
      %v2503 = vunpack.c.l.b16 %v2324
      %v2504 = vunpack.c.h.b16 %v2324
      %v2505 = vunpack.c.l.b16 %v2325
      %v2506 = vunpack.c.h.b16 %v2325
      %v2507 = vunpack.c.l.b16 %v2326
      %v2508 = vunpack.c.h.b16 %v2326
      %v2509 = vunpack.c.l.b16 %v2327
      %v2510 = vunpack.c.h.b16 %v2327
      %v2511 = vunpack.c.l.b16 %v2328
      %v2512 = vunpack.c.h.b16 %v2328
      %v2513 = vunpack.c.l.b16 %v2329
      %v2514 = vunpack.c.h.b16 %v2329
      %v2515 = vunpack.c.l.b16 %v2330
      %v2516 = vunpack.c.h.b16 %v2330
      %v2517 = vunpack.c.l.b16 %v2331
      %v2518 = vunpack.c.h.b16 %v2331
      %v2519 = vunpack.c.l.b16 %v2332
      %v2520 = vunpack.c.h.b16 %v2332
      %v2521 = vunpack.c.l.b16 %v2333
      %v2522 = vunpack.c.h.b16 %v2333
      %v2523 = vunpack.c.l.b16 %v2334
      %v2524 = vunpack.c.h.b16 %v2334
      %v2525 = vunpack.c.l.b16 %v2335
      %v2526 = vunpack.c.h.b16 %v2335
      %v2527 = vunpack.c.l.b16 %v2336
      %v2528 = vunpack.c.h.b16 %v2336
      %v2529 = vunpack.c.l.b16 %v2337
      %v2530 = vunpack.c.h.b16 %v2337
      %v2531 = vunpack.c.l.b16 %v2338
      %v2532 = vunpack.c.h.b16 %v2338
      %v2533 = vunpack.c.l.b16 %v2339
      %v2534 = vunpack.c.h.b16 %v2339
      %v2535 = vunpack.c.l.b16 %v2340
      %v2536 = vunpack.c.h.b16 %v2340
      %v2537 = vunpack.c.l.b16 %v2341
      %v2538 = vunpack.c.h.b16 %v2341
      %v2539 = vunpack.c.l.b16 %v2342
      %v2540 = vunpack.c.h.b16 %v2342
      %v2541 = vunpack.c.l.b16 %v2343
      %v2542 = vunpack.c.h.b16 %v2343
      %v2543 = vunpack.c.l.b16 %v2344
      %v2544 = vunpack.c.h.b16 %v2344
      %v2545 = vunpack.c.l.b16 %v2345
      %v2546 = vunpack.c.h.b16 %v2345
      %v2547 = vunpack.c.l.b16 %v2346
      %v2548 = vunpack.c.h.b16 %v2346
      %v2549 = vunpack.c.l.b16 %v2347
      %v2550 = vunpack.c.h.b16 %v2347
      %v2551 = vunpack.c.l.b16 %v2348
      %v2552 = vunpack.c.h.b16 %v2348
      %v2553 = vunpack.c.l.b16 %v2349
      %v2554 = vunpack.c.h.b16 %v2349
      %v2555 = vunpack.c.l.b16 %v2350
      %v2556 = vunpack.c.h.b16 %v2350
      %v2557 = vunpack.c.l.b16 %v2351
      %v2558 = vunpack.c.h.b16 %v2351
      %v2559 = vunpack.c.l.b16 %v2352
      %v2560 = vunpack.c.h.b16 %v2352
      %v2561 = vunpack.c.l.b16 %v2353
      %v2562 = vunpack.c.h.b16 %v2353
      %v2563 = vunpack.c.l.b16 %v2354
      %v2564 = vunpack.c.h.b16 %v2354
      %v2565 = vunpack.c.l.b16 %v2355
      %v2566 = vunpack.c.h.b16 %v2355
      %v2567 = vunpack.c.l.b16 %v2356
      %v2568 = vunpack.c.h.b16 %v2356
      %v2569 = vunpack.c.l.b16 %v2357
      %v2570 = vunpack.c.h.b16 %v2357
      %v2571 = vunpack.c.l.b16 %v2358
      %v2572 = vunpack.c.h.b16 %v2358
      %v2573 = vpack.c.b16 %v2449, %v2445
      %v2574 = vpack.c.b16 %v2450, %v2446
      %v2575 = vpack.c.b16 %v2451, %v2447
      %v2576 = vpack.c.b16 %v2452, %v2448
      %v2577 = vpack.c.b16 %v2457, %v2453
      %v2578 = vpack.c.b16 %v2458, %v2454
      %v2579 = vpack.c.b16 %v2459, %v2455
      %v2580 = vpack.c.b16 %v2460, %v2456
      %v2581 = vpack.c.b16 %v2465, %v2461
      %v2582 = vpack.c.b16 %v2466, %v2462
      %v2583 = vpack.c.b16 %v2467, %v2463
      %v2584 = vpack.c.b16 %v2468, %v2464
      %v2585 = vpack.c.b16 %v2473, %v2469
      %v2586 = vpack.c.b16 %v2474, %v2470
      %v2587 = vpack.c.b16 %v2475, %v2471
      %v2588 = vpack.c.b16 %v2476, %v2472
      %v2589 = vpack.c.b16 %v2481, %v2477
      %v2590 = vpack.c.b16 %v2482, %v2478
      %v2591 = vpack.c.b16 %v2483, %v2479
      %v2592 = vpack.c.b16 %v2484, %v2480
      %v2593 = vpack.c.b16 %v2489, %v2485
      %v2594 = vpack.c.b16 %v2490, %v2486
      %v2595 = vpack.c.b16 %v2491, %v2487
      %v2596 = vpack.c.b16 %v2492, %v2488
      %v2597 = vpack.c.b16 %v2497, %v2493
      %v2598 = vpack.c.b16 %v2498, %v2494
      %v2599 = vpack.c.b16 %v2499, %v2495
      %v2600 = vpack.c.b16 %v2500, %v2496
      %v2601 = vpack.c.b16 %v2505, %v2501
      %v2602 = vpack.c.b16 %v2506, %v2502
      %v2603 = vpack.c.b16 %v2507, %v2503
      %v2604 = vpack.c.b16 %v2508, %v2504
      %v2605 = vpack.c.b16 %v2513, %v2509
      %v2606 = vpack.c.b16 %v2514, %v2510
      %v2607 = vpack.c.b16 %v2515, %v2511
      %v2608 = vpack.c.b16 %v2516, %v2512
      %v2609 = vpack.c.b16 %v2521, %v2517
      %v2610 = vpack.c.b16 %v2522, %v2518
      %v2611 = vpack.c.b16 %v2523, %v2519
      %v2612 = vpack.c.b16 %v2524, %v2520
      %v2613 = vpack.c.b16 %v2529, %v2525
      %v2614 = vpack.c.b16 %v2530, %v2526
      %v2615 = vpack.c.b16 %v2531, %v2527
      %v2616 = vpack.c.b16 %v2532, %v2528
      %v2617 = vpack.c.b16 %v2537, %v2533
      %v2618 = vpack.c.b16 %v2538, %v2534
      %v2619 = vpack.c.b16 %v2539, %v2535
      %v2620 = vpack.c.b16 %v2540, %v2536
      %v2621 = vpack.c.b16 %v2545, %v2541
      %v2622 = vpack.c.b16 %v2546, %v2542
      %v2623 = vpack.c.b16 %v2547, %v2543
      %v2624 = vpack.c.b16 %v2548, %v2544
      %v2625 = vpack.c.b16 %v2553, %v2549
      %v2626 = vpack.c.b16 %v2554, %v2550
      %v2627 = vpack.c.b16 %v2555, %v2551
      %v2628 = vpack.c.b16 %v2556, %v2552
      %v2629 = vpack.c.b16 %v2561, %v2557
      %v2630 = vpack.c.b16 %v2562, %v2558
      %v2631 = vpack.c.b16 %v2563, %v2559
      %v2632 = vpack.c.b16 %v2564, %v2560
      %v2633 = vpack.c.b16 %v2569, %v2565
      %v2634 = vpack.c.b16 %v2570, %v2566
      %v2635 = vpack.c.b16 %v2571, %v2567
      %v2636 = vpack.c.b16 %v2572, %v2568
      %2701 = vmatprep.subr.bf16.mxu0 %v2602
      %2702 = vmatpush1.bf16.msra.mxu0 %v2601
      %2703 = vmatprep.subr.bf16.mxu0 %v2598
      %2704 = vmatpush1.bf16.msra.mxu0 %v2597
      %2705 = vmatprep.subr.bf16.mxu0 %v2594
      %2706 = vmatpush1.bf16.msra.mxu0 %v2593
      %2707 = vmatprep.subr.bf16.mxu0 %v2590
      %2708 = vmatpush1.bf16.msra.mxu0 %v2589
      %2709 = vmatprep.subr.bf16.mxu0 %v2586
      %2710 = vmatpush1.bf16.msra.mxu0 %v2585
      %2711 = vmatprep.subr.bf16.mxu0 %v2582
      %2712 = vmatpush1.bf16.msra.mxu0 %v2581
      %2713 = vmatprep.subr.bf16.mxu0 %v2578
      %2714 = vmatpush1.bf16.msra.mxu0 %v2577
      %2715 = vmatprep.subr.bf16.mxu0 %v2574
      %2716 = vmatpush1.bf16.msra.mxu0 %v2573
      %2717 = vmatprep.subr.bf16.mxu0 %v2634
      %2718 = vmatpush2.bf16.msra.mxu0 %v2633
      %2719 = vmatprep.subr.bf16.mxu0 %v2630
      %2720 = vmatpush2.bf16.msra.mxu0 %v2629
      %2721 = vmatprep.subr.bf16.mxu0 %v2626
      %2722 = vmatpush2.bf16.msra.mxu0 %v2625
      %2723 = vmatprep.subr.bf16.mxu0 %v2622
      %2724 = vmatpush2.bf16.msra.mxu0 %v2621
      %2725 = vmatprep.subr.bf16.mxu0 %v2618
      %2726 = vmatpush2.bf16.msra.mxu0 %v2617
      %2727 = vmatprep.subr.bf16.mxu0 %v2614
      %2728 = vmatpush2.bf16.msra.mxu0 %v2613
      %2729 = vmatprep.subr.bf16.mxu0 %v2610
      %2730 = vmatpush2.bf16.msra.mxu0 %v2609
      %2731 = vmatprep.subr.bf16.mxu0 %v2606
      %2732 = vmatpush2.bf16.msra.mxu0 %v2605
      %2733 = vmatprep.mubr.bf16.mxu0 %v2240
      %2734 = vmatmul.mubr.bf16.gmra.mxu0 %v2239
      %v2735 = vpop.f32.mrf.mxu0
      %v2736 = vadd.f32 %v2364, %v2735
      %v2737 = vpop.f32.mrf.mxu0
      %v2738 = vadd.f32 %v2368, %v2737
      %v2739 = vpop.f32.mrf.mxu0
      %v2740 = vadd.f32 %v2364, %v2739
      %v2741 = vpop.f32.mrf.mxu0
      %v2742 = vadd.f32 %v2368, %v2741
      %2743 = vmatprep.mubr.bf16.mxu0 %v2242
      %2744 = vmatmul.mubr.bf16.gmra.mxu0 %v2241
      %v2745 = vpop.f32.mrf.mxu0
      %v2746 = vadd.f32 %v2364, %v2745
      %v2747 = vpop.f32.mrf.mxu0
      %v2748 = vadd.f32 %v2368, %v2747
      %v2749 = vpop.f32.mrf.mxu0
      %v2750 = vadd.f32 %v2364, %v2749
      %v2751 = vpop.f32.mrf.mxu0
      %v2752 = vadd.f32 %v2368, %v2751
      %2753 = vmatprep.mubr.bf16.mxu0 %v2244
      %2754 = vmatmul.mubr.bf16.gmra.mxu0 %v2243
      %v2755 = vpop.f32.mrf.mxu0
      %v2756 = vadd.f32 %v2364, %v2755
      %v2757 = vpop.f32.mrf.mxu0
      %v2758 = vadd.f32 %v2368, %v2757
      %v2759 = vpop.f32.mrf.mxu0
      %v2760 = vadd.f32 %v2364, %v2759
      %v2761 = vpop.f32.mrf.mxu0
      %v2762 = vadd.f32 %v2368, %v2761
      %2763 = vmatprep.mubr.bf16.mxu0 %v2246
      %2764 = vmatmul.mubr.bf16.gmra.mxu0 %v2245
      %v2765 = vpop.f32.mrf.mxu0
      %v2766 = vadd.f32 %v2364, %v2765
      %v2767 = vpop.f32.mrf.mxu0
      %v2768 = vadd.f32 %v2368, %v2767
      %v2769 = vpop.f32.mrf.mxu0
      %v2770 = vadd.f32 %v2364, %v2769
      %v2771 = vpop.f32.mrf.mxu0
      %v2772 = vadd.f32 %v2368, %v2771
      %2773 = vdwg.mxu0
      %2774 = vmatprep.subr.bf16.mxu0 %v2604
      %2775 = vmatpush1.bf16.msra.mxu0 %v2603
      %2776 = vmatprep.subr.bf16.mxu0 %v2600
      %2777 = vmatpush1.bf16.msra.mxu0 %v2599
      %2778 = vmatprep.subr.bf16.mxu0 %v2596
      %2779 = vmatpush1.bf16.msra.mxu0 %v2595
      %2780 = vmatprep.subr.bf16.mxu0 %v2592
      %2781 = vmatpush1.bf16.msra.mxu0 %v2591
      %2782 = vmatprep.subr.bf16.mxu0 %v2588
      %2783 = vmatpush1.bf16.msra.mxu0 %v2587
      %2784 = vmatprep.subr.bf16.mxu0 %v2584
      %2785 = vmatpush1.bf16.msra.mxu0 %v2583
      %2786 = vmatprep.subr.bf16.mxu0 %v2580
      %2787 = vmatpush1.bf16.msra.mxu0 %v2579
      %2788 = vmatprep.subr.bf16.mxu0 %v2576
      %2789 = vmatpush1.bf16.msra.mxu0 %v2575
      %2790 = vmatprep.subr.bf16.mxu0 %v2636
      %2791 = vmatpush2.bf16.msra.mxu0 %v2635
      %2792 = vmatprep.subr.bf16.mxu0 %v2632
      %2793 = vmatpush2.bf16.msra.mxu0 %v2631
      %2794 = vmatprep.subr.bf16.mxu0 %v2628
      %2795 = vmatpush2.bf16.msra.mxu0 %v2627
      %2796 = vmatprep.subr.bf16.mxu0 %v2624
      %2797 = vmatpush2.bf16.msra.mxu0 %v2623
      %2798 = vmatprep.subr.bf16.mxu0 %v2620
      %2799 = vmatpush2.bf16.msra.mxu0 %v2619
      %2800 = vmatprep.subr.bf16.mxu0 %v2616
      %2801 = vmatpush2.bf16.msra.mxu0 %v2615
      %2802 = vmatprep.subr.bf16.mxu0 %v2612
      %2803 = vmatpush2.bf16.msra.mxu0 %v2611
      %2804 = vmatprep.subr.bf16.mxu0 %v2608
      %2805 = vmatpush2.bf16.msra.mxu0 %v2607
      %2806 = vmatprep.mubr.bf16.mxu0 %v2240
      %2807 = vmatmul.mubr.bf16.gmra.mxu0 %v2239
      %v2808 = vpop.f32.mrf.mxu0
      %v2809 = vadd.f32 %v2372, %v2808
      %v2810 = vpop.f32.mrf.mxu0
      %v2811 = vadd.f32 %v2376, %v2810
      %v2812 = vpop.f32.mrf.mxu0
      %v2813 = vadd.f32 %v2372, %v2812
      %v2814 = vpop.f32.mrf.mxu0
      %v2815 = vadd.f32 %v2376, %v2814
      %2816 = vmatprep.mubr.bf16.mxu0 %v2242
      %2817 = vmatmul.mubr.bf16.gmra.mxu0 %v2241
      %v2818 = vpop.f32.mrf.mxu0
      %v2819 = vadd.f32 %v2372, %v2818
      %v2820 = vpop.f32.mrf.mxu0
      %v2821 = vadd.f32 %v2376, %v2820
      %v2822 = vpop.f32.mrf.mxu0
      %v2823 = vadd.f32 %v2372, %v2822
      %v2824 = vpop.f32.mrf.mxu0
      %v2825 = vadd.f32 %v2376, %v2824
      %2826 = vmatprep.mubr.bf16.mxu0 %v2244
      %2827 = vmatmul.mubr.bf16.gmra.mxu0 %v2243
      %v2828 = vpop.f32.mrf.mxu0
      %v2829 = vadd.f32 %v2372, %v2828
      %v2830 = vpop.f32.mrf.mxu0
      %v2831 = vadd.f32 %v2376, %v2830
      %v2832 = vpop.f32.mrf.mxu0
      %v2833 = vadd.f32 %v2372, %v2832
      %v2834 = vpop.f32.mrf.mxu0
      %v2835 = vadd.f32 %v2376, %v2834
      %2836 = vmatprep.mubr.bf16.mxu0 %v2246
      %2837 = vmatmul.mubr.bf16.gmra.mxu0 %v2245
      %v2838 = vpop.f32.mrf.mxu0
      %v2839 = vadd.f32 %v2372, %v2838
      %v2840 = vpop.f32.mrf.mxu0
      %v2841 = vadd.f32 %v2376, %v2840
      %v2842 = vpop.f32.mrf.mxu0
      %v2843 = vadd.f32 %v2372, %v2842
      %v2844 = vpop.f32.mrf.mxu0
      %v2845 = vadd.f32 %v2376, %v2844
      %2846 = vdwg.mxu0
      %2847 = vst [vmem:[%s372] sm:$0xff] %v2736
      %2848 = vst [vmem:[%s372 + $0x8] sm:$0xff] %v2738
      %2849 = vst [vmem:[%s372 + $0x10] sm:$0xff] %v2809
      %2850 = vst [vmem:[%s372 + $0x18] sm:$0xff] %v2811
      %2851 = vst [vmem:[%s372 + $0x20] sm:$0xff] %v2740
      %2852 = vst [vmem:[%s372 + $0x28] sm:$0xff] %v2742
      %2853 = vst [vmem:[%s372 + $0x30] sm:$0xff] %v2813
      %2854 = vst [vmem:[%s372 + $0x38] sm:$0xff] %v2815
      %2855 = vst [vmem:[%s372 + $0x40] sm:$0xff] %v2746
      %2856 = vst [vmem:[%s372 + $0x48] sm:$0xff] %v2748
      %2857 = vst [vmem:[%s372 + $0x50] sm:$0xff] %v2819
      %2858 = vst [vmem:[%s372 + $0x58] sm:$0xff] %v2821
      %2859 = vst [vmem:[%s372 + $0x60] sm:$0xff] %v2750
      %2860 = vst [vmem:[%s372 + $0x68] sm:$0xff] %v2752
      %2861 = vst [vmem:[%s372 + $0x70] sm:$0xff] %v2823
      %2862 = vst [vmem:[%s372 + $0x78] sm:$0xff] %v2825
      %2863 = vst [vmem:[%s372 + $0x80] sm:$0xff] %v2756
      %2864 = vst [vmem:[%s372 + $0x88] sm:$0xff] %v2758
      %2865 = vst [vmem:[%s372 + $0x90] sm:$0xff] %v2829
      %2866 = vst [vmem:[%s372 + $0x98] sm:$0xff] %v2831
      %2867 = vst [vmem:[%s372 + $0xa0] sm:$0xff] %v2760
      %2868 = vst [vmem:[%s372 + $0xa8] sm:$0xff] %v2762
      %2869 = vst [vmem:[%s372 + $0xb0] sm:$0xff] %v2833
      %2870 = vst [vmem:[%s372 + $0xb8] sm:$0xff] %v2835
      %2871 = vst [vmem:[%s372 + $0xc0] sm:$0xff] %v2766
      %2872 = vst [vmem:[%s372 + $0xc8] sm:$0xff] %v2768
      %2873 = vst [vmem:[%s372 + $0xd0] sm:$0xff] %v2839
      %2874 = vst [vmem:[%s372 + $0xd8] sm:$0xff] %v2841
      %2875 = vst [vmem:[%s372 + $0xe0] sm:$0xff] %v2770
      %2876 = vst [vmem:[%s372 + $0xe8] sm:$0xff] %v2772
      %2877 = vst [vmem:[%s372 + $0xf0] sm:$0xff] %v2843
      %2878 = vst [vmem:[%s372 + $0xf8] sm:$0xff] %v2845
      %p2879 = scmp.lt.s32.totalorder %s22, 1
      %s2880 = scalar_select %p2879, %s22, 1
      %s2881 = smul.addr %s2880, 16
      %s2882 = smul.addr %s2881, 4
      %s2883 = scalar_lea.vmem %s9, %s2882
      %p2884 = scmp.lt.s32.totalorder %s22, 1
      %s2885 = scalar_select %p2884, %s22, 1
      %s2886 = smul.addr %s2885, 32
      %s2887 = smul.addr %s2886, 8
      %s2888 = scalar_lea.vmem %s10, %s2887
      // Predicated region
      $region57: #{pointpillar_forward.3} parent=55 // pred_check
        %p2889 = pneg %p234
      $region58: #{pointpillar_forward.3} parent=55 // pred_check_branch
        %2891 = sbr.rel (%p2889) target = $region60
      $region59: #{pointpillar_forward.3} parent=55 // pred_region
        _
      $region60: #{pointpillar_forward.3} parent=55 // pred_fallthru
        _
      // Predicated region
      $region61: #{pointpillar_forward.3} parent=55 // pred_check
        %p2892 = pneg %p260
      $region62: #{pointpillar_forward.3} parent=55 // pred_check_branch
        %2894 = sbr.rel (%p2892) target = $region64
      $region63: #{pointpillar_forward.3} parent=55 // pred_region
        _
      $region64: #{pointpillar_forward.3} parent=55 // pred_fallthru
        _
    $region56: #{pointpillar_forward.3} parent=5 // pred_fallthru
      _
    %p2895 = scmp.le.s32.totalorder 2, %s17
    // Predicated region
    $region65: #{pointpillar_forward.3} parent=5 // pred_check
      %p2896 = pneg %p2895
    $region66: #{pointpillar_forward.3} parent=5 // pred_check_branch
      %2898 = sbr.rel (%p2896) target = $region68
    $region67: #{pointpillar_forward.3} parent=5 // pred_region
      %s2899 = ssub.s32 %s17, 2
      // Predicated region
      $region69: #{pointpillar_forward.3} parent=67 // pred_check
        %p2900 = pneg %p240
      $region70: #{pointpillar_forward.3} parent=67 // pred_check_branch
        %2902 = sbr.rel (%p2900) target = $region72
      $region71: #{pointpillar_forward.3} parent=67 // pred_region
        %p2903 = scmp.lt.s32.totalorder %s23, 1
        %s2904 = scalar_select %p2903, %s23, 1
        %s2905 = smul.addr %s2904, 16
        %s2906 = smul.addr %s2905, 4
        %s2907 = scalar_lea.vmem %s9, %s2906
      $region72: #{pointpillar_forward.3} parent=67 // pred_fallthru
        _
      // Predicated region
      $region73: #{pointpillar_forward.3} parent=67 // pred_check
        %p2908 = pneg %p266
      $region74: #{pointpillar_forward.3} parent=67 // pred_check_branch
        %2910 = sbr.rel (%p2908) target = $region76
      $region75: #{pointpillar_forward.3} parent=67 // pred_region
        %p2911 = scmp.lt.s32.totalorder %s23, 1
        %s2912 = scalar_select %p2911, %s23, 1
        %s2913 = smul.addr %s2912, 32
        %s2914 = smul.addr %s2913, 8
        %s2915 = scalar_lea.vmem %s10, %s2914
      $region76: #{pointpillar_forward.3} parent=67 // pred_fallthru
        _
    $region68: #{pointpillar_forward.3} parent=5 // pred_fallthru
      _
  $region6: #{pointpillar_forward.3} parent=0 // loop_footer
    %s21 = sadd.s32 1, %s17
  $region7: #{pointpillar_forward.3} parent=0 // loop_footer_branch
    %16 = sbr.rel target = $region3
  $region8: #{pointpillar_forward.3} parent=0 // loop_exit
    _

</llo_original>
